<compile_context>
chip_gen: v7x
topology: tpu7x:2x2x1
jax: 0.10.0
libtpu: 0.0.40
codegen_flags: <defaults>
</compile_context>

<pallas_src>
import jax
import jax.numpy as jnp
import numpy as np
from jax.experimental import pallas as pl
from jax.experimental.pallas import tpu as pltpu

# Set to jnp.bfloat16 on v5e/v6e/v7x for ~2x MXU rate (f32 accumulate kept);
# left at f32 here so the check against the f32 reference is exact-tolerance.
COMPUTE_DTYPE = jnp.float32


# ---------------------------------------------------------------------------
# Kernel A: fused nearest-x2 upsample + 3x3 conv (2-D polyphase) + BN partials
# grid = (N,); one batch element per step.
# ---------------------------------------------------------------------------
def upconv_conv_stats_kernel(x_ref, w_ref, conv_ref, stats_ref, a_scratch):
    # x_ref:     (1, h+2, w+2, Cin)   zero-padded pre-upsample input (NHWC)
    # w_ref:     (4, 4*Cin, Cpad)     combined weights per parity p = rp*2 + cp
    # conv_ref:  (1, 4, h, w, Cpad)   conv output; dim 1 = (row, col) parity
    # stats_ref: (1, 2, Cpad)         [sum, sum_of_squares] partials for this tile
    # a_scratch: (h*w, 4*Cin)         im2col staging buffer (VMEM)
    hh = conv_ref.shape[2]
    ww = conv_ref.shape[3]
    cin = x_ref.shape[3]
    cpad = conv_ref.shape[4]

    x = x_ref[0].astype(w_ref.dtype)                     # (h+2, w+2, Cin)

    s_sum = jnp.zeros((1, cpad), jnp.float32)
    s_sq = jnp.zeros((1, cpad), jnp.float32)

    for p in range(4):
        rp, cp = p // 2, p % 2
        # im2col with K = 4*Cin: 2 combined row taps x 2 combined column taps.
        # Output (rp, cp, i, j) reads X_pad[i+rp+a, j+cp+b] for a,b in {0,1}.
        for a in range(2):
            for b in range(2):
                t = a * 2 + b
                tap = x[rp + a:rp + a + hh, cp + b:cp + b + ww, :]   # (h, w, Cin)
                a_scratch[:, t * cin:(t + 1) * cin] = tap.reshape(hh * ww, cin)

        acc = jnp.dot(a_scratch[...], w_ref[p],
                      preferred_element_type=jnp.float32)            # (h*w, Cpad)

        # BN partial statistics (fused epilogue: no extra HBM read of conv output).
        s_sum = s_sum + jnp.sum(acc, axis=0, keepdims=True)
        s_sq = s_sq + jnp.sum(acc * acc, axis=0, keepdims=True)

        conv_ref[0, p] = acc.reshape(hh, ww, cpad).astype(conv_ref.dtype)

    stats_ref[0] = jnp.concatenate([s_sum, s_sq], axis=0)


# ---------------------------------------------------------------------------
# Kernel B: apply folded BatchNorm affine (scale/shift) + ReLU, tile-by-tile.
# grid = (N, 4) -> 4*N independent 'parallel' tiles (megacore friendly).
# ---------------------------------------------------------------------------
def bn_relu_kernel(y_ref, scale_ref, shift_ref, o_ref):
    # y_ref/o_ref: (1, 1, h, w, Cpad) ; scale_ref/shift_ref: (1, Cpad)
    y = y_ref[...].astype(jnp.float32)
    out = y * scale_ref[0] + shift_ref[0]
    o_ref[...] = jnp.maximum(out, 0.0).astype(o_ref.dtype)


# ---------------------------------------------------------------------------
# Wrapper
# ---------------------------------------------------------------------------
def _up_conv_forward(x_nchw, w_oihw, bias, gamma, beta, eps=1e-5):
    del bias  # exactly cancelled by train-mode BatchNorm mean subtraction
    n, cin, h, w = x_nchw.shape
    cout = w_oihw.shape[0]
    cpad = ((cout + 127) // 128) * 128
    hout, wout = 2 * h, 2 * w

    # NCHW -> NHWC + pre-upsample spatial zero pad of 1 (the x2 upsample and the
    # conv's pad=1 are folded into the kernel's indexing).
    # TODO(synk): in the full R2AttU_Net keep activations NHWC end-to-end so this
    # transpose happens once at the model boundary, and add a row-band grid axis
    # (1-row halo) so a single image block never exceeds VMEM at production sizes.
    x = jnp.transpose(x_nchw, (0, 2, 3, 1)).astype(jnp.float32)
    x_pad = jnp.pad(x, ((0, 0), (1, 1), (1, 1), (0, 0))).astype(COMPUTE_DTYPE)

    # OIHW -> HWIO, then 2-D polyphase weight combination: for each output
    # (row, col) parity the 3x3 kernel collapses to a 2x2 kernel over the
    # pre-upsample image.  Zero-pad Cout -> Cpad (lane-dense stores).
    whwio = jnp.transpose(w_oihw, (2, 3, 1, 0)).astype(jnp.float32)   # (3,3,Cin,Cout)
    # Row taps: even rows -> [W0, W1+W2]; odd rows -> [W0+W1, W2].
    w_r0 = jnp.stack([whwio[0], whwio[1] + whwio[2]], axis=0)          # (2,3,Cin,Cout)
    w_r1 = jnp.stack([whwio[0] + whwio[1], whwio[2]], axis=0)

    def col_combine(wr):
        w_c0 = jnp.stack([wr[:, 0], wr[:, 1] + wr[:, 2]], axis=1)      # (2,2,Cin,Cout)
        w_c1 = jnp.stack([wr[:, 0] + wr[:, 1], wr[:, 2]], axis=1)
        return w_c0, w_c1

    w00, w01 = col_combine(w_r0)
    w10, w11 = col_combine(w_r1)
    wc = jnp.stack([w00, w01, w10, w11], axis=0)                        # (4,2,2,Cin,Cout)
    wc = jnp.pad(wc, [(0, 0)] * 4 + [(0, cpad - cout)])
    wc = wc.reshape(4, 4 * cin, cpad).astype(COMPUTE_DTYPE)

    conv, stats = pl.pallas_call(
        upconv_conv_stats_kernel,
        out_shape=(
            jax.ShapeDtypeStruct((n, 4, h, w, cpad), jnp.float32),
            jax.ShapeDtypeStruct((n, 2, cpad), jnp.float32),
        ),
        grid=(n,),
        in_specs=[
            pl.BlockSpec((1, h + 2, w + 2, cin), lambda i: (i, 0, 0, 0)),
            pl.BlockSpec((4, 4 * cin, cpad), lambda i: (0, 0, 0)),
        ],
        out_specs=(
            pl.BlockSpec((1, 4, h, w, cpad), lambda i: (i, 0, 0, 0, 0)),
            pl.BlockSpec((1, 2, cpad), lambda i: (i, 0, 0)),
        ),
        scratch_shapes=[pltpu.VMEM((h * w, 4 * cin), COMPUTE_DTYPE)],
        compiler_params=pltpu.CompilerParams(
            dimension_semantics=("parallel",),
            vmem_limit_bytes=32 * 1024 * 1024),
    )(x_pad, wc)

    # Finalize batch statistics (tiny per-channel math) and fold gamma/beta into a
    # single scale/shift so the second kernel is one FMA + ReLU per element.
    count = jnp.float32(n * hout * wout)
    mean = jnp.sum(stats[:, 0, :], axis=0) / count
    var = jnp.maximum(jnp.sum(stats[:, 1, :], axis=0) / count - mean * mean, 0.0)
    gamma_p = jnp.pad(gamma.astype(jnp.float32), (0, cpad - cout))
    beta_p = jnp.pad(beta.astype(jnp.float32), (0, cpad - cout))
    scale = gamma_p * jax.lax.rsqrt(var + eps)
    shift = beta_p - mean * scale

    out_p = pl.pallas_call(
        bn_relu_kernel,
        out_shape=jax.ShapeDtypeStruct((n, 4, h, w, cpad), jnp.float32),
        grid=(n, 4),
        in_specs=[
            pl.BlockSpec((1, 1, h, w, cpad), lambda i, p: (i, p, 0, 0, 0)),
            pl.BlockSpec((1, cpad), lambda i, p: (0, 0)),
            pl.BlockSpec((1, cpad), lambda i, p: (0, 0)),
        ],
        out_specs=pl.BlockSpec((1, 1, h, w, cpad), lambda i, p: (i, p, 0, 0, 0)),
        compiler_params=pltpu.CompilerParams(
            dimension_semantics=("parallel", "parallel"),
            vmem_limit_bytes=32 * 1024 * 1024),
    )(conv, scale.reshape(1, cpad), shift.reshape(1, cpad))

    # (N, 4, h, w, Cpad) -> NCHW (N, Cout, 2h, 2w): slice padded channels, split the
    # parity dim, then the parity de-interleave rides the (required) layout
    # transpose; the final reshape merges adjacent dims (no data movement).
    out = out_p[..., :cout].reshape(n, 2, 2, h, w, cout)      # dims: (n, rp, cp, h, w, c)
    out = jnp.transpose(out, (0, 5, 3, 1, 4, 2)).reshape(n, cout, hout, wout)
    return out


up_conv_forward = jax.jit(_up_conv_forward)


# ---------------------------------------------------------------------------
# Pure-JAX reference (true module semantics: upsample -> conv+bias -> BN -> ReLU)
# ---------------------------------------------------------------------------
def up_conv_reference(x_nchw, w_oihw, bias, gamma, beta, eps=1e-5):
    x = jnp.transpose(x_nchw, (0, 2, 3, 1)).astype(jnp.float32)
    x = jnp.repeat(jnp.repeat(x, 2, axis=1), 2, axis=2)
    w = jnp.transpose(w_oihw, (2, 3, 1, 0)).astype(jnp.float32)
    y = jax.lax.conv_general_dilated(
        x, w, window_strides=(1, 1), padding="SAME",
        dimension_numbers=("NHWC", "HWIO", "NHWC"),
        precision=jax.lax.Precision.HIGHEST)
    y = y + bias[None, None, None, :]
    mean = jnp.mean(y, axis=(0, 1, 2), keepdims=True)
    var = jnp.mean((y - mean) ** 2, axis=(0, 1, 2), keepdims=True)
    yhat = (y - mean) * jax.lax.rsqrt(var + eps)
    out = jnp.maximum(yhat * gamma + beta, 0.0)
    return jnp.transpose(out, (0, 3, 1, 2))


if __name__ == "__main__":
    # Small shapes consistent with the module: batch=2, ch_in=4, ch_out=8, 16x16.
    N, C_IN, C_OUT, H, W = 2, 4, 8, 16, 16

    key = jax.random.PRNGKey(0)
    kx, kw, kb, kg, kbt = jax.random.split(key, 5)

    x = jax.random.normal(kx, (N, C_IN, H, W), jnp.float32)
    fan_in = C_IN * 3 * 3
    w_oihw = jax.random.normal(kw, (C_OUT, C_IN, 3, 3), jnp.float32) / np.sqrt(fan_in)
    bias = jax.random.normal(kb, (C_OUT,), jnp.float32) * 0.1
    gamma = 1.0 + 0.1 * jax.random.normal(kg, (C_OUT,), jnp.float32)
    beta = 0.1 * jax.random.normal(kbt, (C_OUT,), jnp.float32)

    out = jax.block_until_ready(up_conv_forward(x, w_oihw, bias, gamma, beta))
    ref = jax.block_until_ready(up_conv_reference(x, w_oihw, bias, gamma, beta))

    assert out.shape == (N, C_OUT, 2 * H, 2 * W), out.shape
    np.testing.assert_allclose(np.asarray(out), np.asarray(ref), atol=1e-4, rtol=1e-4)

    print("KERNEL_OK")
</pallas_src>

<mosaic_0001>
module attributes {stable_mosaic.version = 11 : i64} {
  func.func @upconv_conv_stats_kernel(%arg0: i32, %arg1: memref<1x18x18x4xf32, #tpu.memory_space<vmem>>, %arg2: memref<4x16x128xf32, #tpu.memory_space<vmem>>, %arg3: memref<1x4x16x16x128xf32, #tpu.memory_space<vmem>>, %arg4: memref<1x2x128xf32, #tpu.memory_space<vmem>>, %arg5: memref<256x16xf32, #tpu.memory_space<vmem>>) attributes {dimension_semantics = [#tpu.dimension_semantics<parallel>], iteration_bounds = array<i64: 2>, scalar_prefetch = 0 : i64, scratch_operands = 1 : i64, tpu.core_type = #tpu.core_type<tc>, window_params = [{transform_indices = @transform_0, window_bounds = array<i64: 1, 18, 18, 4>}, {pipeline_mode = #tpu.pipeline_mode<synchronous>, transform_indices = @transform_1, window_bounds = array<i64: 4, 16, 128>}, {transform_indices = @transform_2, window_bounds = array<i64: 1, 4, 16, 16, 128>}, {transform_indices = @transform_3, window_bounds = array<i64: 1, 2, 128>}]} {
    %c0 = arith.constant 0 : index
    %c0_0 = arith.constant 0 : index
    %c0_1 = arith.constant 0 : index
    %c0_2 = arith.constant 0 : index
    %0 = vector.load %arg1[%c0, %c0_0, %c0_1, %c0_2] : memref<1x18x18x4xf32, #tpu.memory_space<vmem>>, vector<1x18x18x4xf32>
    %1 = vector.shape_cast %0 : vector<1x18x18x4xf32> to vector<18x18x4xf32>
    %cst = arith.constant 0.000000e+00 : f32
    %2 = vector.broadcast %cst : f32 to vector<1x128xf32>
    %cst_3 = arith.constant 0.000000e+00 : f32
    %3 = vector.broadcast %cst_3 : f32 to vector<1x128xf32>
    %4 = vector.extract_strided_slice %1 {offsets = [0, 0, 0], sizes = [16, 16, 4], strides = [1, 1, 1]} : vector<18x18x4xf32> to vector<16x16x4xf32>
    %5 = vector.shape_cast %4 : vector<16x16x4xf32> to vector<256x4xf32>
    %c0_4 = arith.constant 0 : index
    %c0_5 = arith.constant 0 : index
    %6 = vector.load %arg5[%c0_4, %c0_5] : memref<256x16xf32, #tpu.memory_space<vmem>>, vector<256x4xf32>
    tpu.vector_store %arg5[%c0_4, %c0_5], %5 {strides = array<i32>} : memref<256x16xf32, #tpu.memory_space<vmem>>, vector<256x4xf32>,
    %7 = vector.extract_strided_slice %1 {offsets = [0, 1, 0], sizes = [16, 16, 4], strides = [1, 1, 1]} : vector<18x18x4xf32> to vector<16x16x4xf32>
    %8 = vector.shape_cast %7 : vector<16x16x4xf32> to vector<256x4xf32>
    %c0_6 = arith.constant 0 : index
    %c4 = arith.constant 4 : index
    %9 = vector.load %arg5[%c0_6, %c4] : memref<256x16xf32, #tpu.memory_space<vmem>>, vector<256x4xf32>
    tpu.vector_store %arg5[%c0_6, %c4], %8 {strides = array<i32>} : memref<256x16xf32, #tpu.memory_space<vmem>>, vector<256x4xf32>,
    %10 = vector.extract_strided_slice %1 {offsets = [1, 0, 0], sizes = [16, 16, 4], strides = [1, 1, 1]} : vector<18x18x4xf32> to vector<16x16x4xf32>
    %11 = vector.shape_cast %10 : vector<16x16x4xf32> to vector<256x4xf32>
    %c0_7 = arith.constant 0 : index
    %c8 = arith.constant 8 : index
    %12 = vector.load %arg5[%c0_7, %c8] : memref<256x16xf32, #tpu.memory_space<vmem>>, vector<256x4xf32>
    tpu.vector_store %arg5[%c0_7, %c8], %11 {strides = array<i32>} : memref<256x16xf32, #tpu.memory_space<vmem>>, vector<256x4xf32>,
    %13 = vector.extract_strided_slice %1 {offsets = [1, 1, 0], sizes = [16, 16, 4], strides = [1, 1, 1]} : vector<18x18x4xf32> to vector<16x16x4xf32>
    %14 = vector.shape_cast %13 : vector<16x16x4xf32> to vector<256x4xf32>
    %c0_8 = arith.constant 0 : index
    %c12 = arith.constant 12 : index
    %15 = vector.load %arg5[%c0_8, %c12] : memref<256x16xf32, #tpu.memory_space<vmem>>, vector<256x4xf32>
    tpu.vector_store %arg5[%c0_8, %c12], %14 {strides = array<i32>} : memref<256x16xf32, #tpu.memory_space<vmem>>, vector<256x4xf32>,
    %c0_9 = arith.constant 0 : index
    %c0_10 = arith.constant 0 : index
    %16 = vector.load %arg5[%c0_9, %c0_10] : memref<256x16xf32, #tpu.memory_space<vmem>>, vector<256x16xf32>
    %c0_11 = arith.constant 0 : index
    %c0_12 = arith.constant 0 : index
    %c0_13 = arith.constant 0 : index
    %17 = vector.load %arg2[%c0_11, %c0_12, %c0_13] : memref<4x16x128xf32, #tpu.memory_space<vmem>>, vector<1x16x128xf32>
    %18 = vector.shape_cast %17 : vector<1x16x128xf32> to vector<16x128xf32>
    %cst_14 = arith.constant dense<0.000000e+00> : vector<256x128xf32>
    %19 = tpu.matmul %16, %18, %cst_14 {dimension_numbers = #tpu.dot_dimension_numbers<[1], [0], [0], [1], [0, 0, 1, 1], [], []>} : vector<256x16xf32>, vector<16x128xf32>, vector<256x128xf32> -> vector<256x128xf32>
    %cst_15 = arith.constant dense<0.000000e+00> : vector<128xf32>
    %20 = vector.multi_reduction <add>, %19, %cst_15 [0] : vector<256x128xf32> to vector<128xf32>
    %21 = vector.shape_cast %20 : vector<128xf32> to vector<1x128xf32>
    %22 = arith.addf %2, %21 : vector<1x128xf32>
    %23 = arith.mulf %19, %19 : vector<256x128xf32>
    %cst_16 = arith.constant dense<0.000000e+00> : vector<128xf32>
    %24 = vector.multi_reduction <add>, %23, %cst_16 [0] : vector<256x128xf32> to vector<128xf32>
    %25 = vector.shape_cast %24 : vector<128xf32> to vector<1x128xf32>
    %26 = arith.addf %3, %25 : vector<1x128xf32>
    %27 = vector.shape_cast %19 : vector<256x128xf32> to vector<16x16x128xf32>
    %c0_17 = arith.constant 0 : index
    %c0_18 = arith.constant 0 : index
    %c0_19 = arith.constant 0 : index
    %c0_20 = arith.constant 0 : index
    %c0_21 = arith.constant 0 : index
    %28 = vector.load %arg3[%c0_17, %c0_18, %c0_19, %c0_20, %c0_21] : memref<1x4x16x16x128xf32, #tpu.memory_space<vmem>>, vector<1x1x16x16x128xf32>
    %29 = vector.shape_cast %28 : vector<1x1x16x16x128xf32> to vector<16x16x128xf32>
    %30 = vector.shape_cast %27 : vector<16x16x128xf32> to vector<1x1x16x16x128xf32>
    tpu.vector_store %arg3[%c0_17, %c0_18, %c0_19, %c0_20, %c0_21], %30 {strides = array<i32>} : memref<1x4x16x16x128xf32, #tpu.memory_space<vmem>>, vector<1x1x16x16x128xf32>,
    %31 = vector.extract_strided_slice %1 {offsets = [0, 1, 0], sizes = [16, 16, 4], strides = [1, 1, 1]} : vector<18x18x4xf32> to vector<16x16x4xf32>
    %32 = vector.shape_cast %31 : vector<16x16x4xf32> to vector<256x4xf32>
    %c0_22 = arith.constant 0 : index
    %c0_23 = arith.constant 0 : index
    %33 = vector.load %arg5[%c0_22, %c0_23] : memref<256x16xf32, #tpu.memory_space<vmem>>, vector<256x4xf32>
    tpu.vector_store %arg5[%c0_22, %c0_23], %32 {strides = array<i32>} : memref<256x16xf32, #tpu.memory_space<vmem>>, vector<256x4xf32>,
    %34 = vector.extract_strided_slice %1 {offsets = [0, 2, 0], sizes = [16, 16, 4], strides = [1, 1, 1]} : vector<18x18x4xf32> to vector<16x16x4xf32>
    %35 = vector.shape_cast %34 : vector<16x16x4xf32> to vector<256x4xf32>
    %c0_24 = arith.constant 0 : index
    %c4_25 = arith.constant 4 : index
    %36 = vector.load %arg5[%c0_24, %c4_25] : memref<256x16xf32, #tpu.memory_space<vmem>>, vector<256x4xf32>
    tpu.vector_store %arg5[%c0_24, %c4_25], %35 {strides = array<i32>} : memref<256x16xf32, #tpu.memory_space<vmem>>, vector<256x4xf32>,
    %37 = vector.extract_strided_slice %1 {offsets = [1, 1, 0], sizes = [16, 16, 4], strides = [1, 1, 1]} : vector<18x18x4xf32> to vector<16x16x4xf32>
    %38 = vector.shape_cast %37 : vector<16x16x4xf32> to vector<256x4xf32>
    %c0_26 = arith.constant 0 : index
    %c8_27 = arith.constant 8 : index
    %39 = vector.load %arg5[%c0_26, %c8_27] : memref<256x16xf32, #tpu.memory_space<vmem>>, vector<256x4xf32>
    tpu.vector_store %arg5[%c0_26, %c8_27], %38 {strides = array<i32>} : memref<256x16xf32, #tpu.memory_space<vmem>>, vector<256x4xf32>,
    %40 = vector.extract_strided_slice %1 {offsets = [1, 2, 0], sizes = [16, 16, 4], strides = [1, 1, 1]} : vector<18x18x4xf32> to vector<16x16x4xf32>
    %41 = vector.shape_cast %40 : vector<16x16x4xf32> to vector<256x4xf32>
    %c0_28 = arith.constant 0 : index
    %c12_29 = arith.constant 12 : index
    %42 = vector.load %arg5[%c0_28, %c12_29] : memref<256x16xf32, #tpu.memory_space<vmem>>, vector<256x4xf32>
    tpu.vector_store %arg5[%c0_28, %c12_29], %41 {strides = array<i32>} : memref<256x16xf32, #tpu.memory_space<vmem>>, vector<256x4xf32>,
    %c0_30 = arith.constant 0 : index
    %c0_31 = arith.constant 0 : index
    %43 = vector.load %arg5[%c0_30, %c0_31] : memref<256x16xf32, #tpu.memory_space<vmem>>, vector<256x16xf32>
    %c1 = arith.constant 1 : index
    %c0_32 = arith.constant 0 : index
    %c0_33 = arith.constant 0 : index
    %44 = vector.load %arg2[%c1, %c0_32, %c0_33] : memref<4x16x128xf32, #tpu.memory_space<vmem>>, vector<1x16x128xf32>
    %45 = vector.shape_cast %44 : vector<1x16x128xf32> to vector<16x128xf32>
    %cst_34 = arith.constant dense<0.000000e+00> : vector<256x128xf32>
    %46 = tpu.matmul %43, %45, %cst_34 {dimension_numbers = #tpu.dot_dimension_numbers<[1], [0], [0], [1], [0, 0, 1, 1], [], []>} : vector<256x16xf32>, vector<16x128xf32>, vector<256x128xf32> -> vector<256x128xf32>
    %cst_35 = arith.constant dense<0.000000e+00> : vector<128xf32>
    %47 = vector.multi_reduction <add>, %46, %cst_35 [0] : vector<256x128xf32> to vector<128xf32>
    %48 = vector.shape_cast %47 : vector<128xf32> to vector<1x128xf32>
    %49 = arith.addf %22, %48 : vector<1x128xf32>
    %50 = arith.mulf %46, %46 : vector<256x128xf32>
    %cst_36 = arith.constant dense<0.000000e+00> : vector<128xf32>
    %51 = vector.multi_reduction <add>, %50, %cst_36 [0] : vector<256x128xf32> to vector<128xf32>
    %52 = vector.shape_cast %51 : vector<128xf32> to vector<1x128xf32>
    %53 = arith.addf %26, %52 : vector<1x128xf32>
    %54 = vector.shape_cast %46 : vector<256x128xf32> to vector<16x16x128xf32>
    %c0_37 = arith.constant 0 : index
    %c1_38 = arith.constant 1 : index
    %c0_39 = arith.constant 0 : index
    %c0_40 = arith.constant 0 : index
    %c0_41 = arith.constant 0 : index
    %55 = vector.load %arg3[%c0_37, %c1_38, %c0_39, %c0_40, %c0_41] : memref<1x4x16x16x128xf32, #tpu.memory_space<vmem>>, vector<1x1x16x16x128xf32>
    %56 = vector.shape_cast %55 : vector<1x1x16x16x128xf32> to vector<16x16x128xf32>
    %57 = vector.shape_cast %54 : vector<16x16x128xf32> to vector<1x1x16x16x128xf32>
    tpu.vector_store %arg3[%c0_37, %c1_38, %c0_39, %c0_40, %c0_41], %57 {strides = array<i32>} : memref<1x4x16x16x128xf32, #tpu.memory_space<vmem>>, vector<1x1x16x16x128xf32>,
    %58 = vector.extract_strided_slice %1 {offsets = [1, 0, 0], sizes = [16, 16, 4], strides = [1, 1, 1]} : vector<18x18x4xf32> to vector<16x16x4xf32>
    %59 = vector.shape_cast %58 : vector<16x16x4xf32> to vector<256x4xf32>
    %c0_42 = arith.constant 0 : index
    %c0_43 = arith.constant 0 : index
    %60 = vector.load %arg5[%c0_42, %c0_43] : memref<256x16xf32, #tpu.memory_space<vmem>>, vector<256x4xf32>
    tpu.vector_store %arg5[%c0_42, %c0_43], %59 {strides = array<i32>} : memref<256x16xf32, #tpu.memory_space<vmem>>, vector<256x4xf32>,
    %61 = vector.extract_strided_slice %1 {offsets = [1, 1, 0], sizes = [16, 16, 4], strides = [1, 1, 1]} : vector<18x18x4xf32> to vector<16x16x4xf32>
    %62 = vector.shape_cast %61 : vector<16x16x4xf32> to vector<256x4xf32>
    %c0_44 = arith.constant 0 : index
    %c4_45 = arith.constant 4 : index
    %63 = vector.load %arg5[%c0_44, %c4_45] : memref<256x16xf32, #tpu.memory_space<vmem>>, vector<256x4xf32>
    tpu.vector_store %arg5[%c0_44, %c4_45], %62 {strides = array<i32>} : memref<256x16xf32, #tpu.memory_space<vmem>>, vector<256x4xf32>,
    %64 = vector.extract_strided_slice %1 {offsets = [2, 0, 0], sizes = [16, 16, 4], strides = [1, 1, 1]} : vector<18x18x4xf32> to vector<16x16x4xf32>
    %65 = vector.shape_cast %64 : vector<16x16x4xf32> to vector<256x4xf32>
    %c0_46 = arith.constant 0 : index
    %c8_47 = arith.constant 8 : index
    %66 = vector.load %arg5[%c0_46, %c8_47] : memref<256x16xf32, #tpu.memory_space<vmem>>, vector<256x4xf32>
    tpu.vector_store %arg5[%c0_46, %c8_47], %65 {strides = array<i32>} : memref<256x16xf32, #tpu.memory_space<vmem>>, vector<256x4xf32>,
    %67 = vector.extract_strided_slice %1 {offsets = [2, 1, 0], sizes = [16, 16, 4], strides = [1, 1, 1]} : vector<18x18x4xf32> to vector<16x16x4xf32>
    %68 = vector.shape_cast %67 : vector<16x16x4xf32> to vector<256x4xf32>
    %c0_48 = arith.constant 0 : index
    %c12_49 = arith.constant 12 : index
    %69 = vector.load %arg5[%c0_48, %c12_49] : memref<256x16xf32, #tpu.memory_space<vmem>>, vector<256x4xf32>
    tpu.vector_store %arg5[%c0_48, %c12_49], %68 {strides = array<i32>} : memref<256x16xf32, #tpu.memory_space<vmem>>, vector<256x4xf32>,
    %c0_50 = arith.constant 0 : index
    %c0_51 = arith.constant 0 : index
    %70 = vector.load %arg5[%c0_50, %c0_51] : memref<256x16xf32, #tpu.memory_space<vmem>>, vector<256x16xf32>
    %c2 = arith.constant 2 : index
    %c0_52 = arith.constant 0 : index
    %c0_53 = arith.constant 0 : index
    %71 = vector.load %arg2[%c2, %c0_52, %c0_53] : memref<4x16x128xf32, #tpu.memory_space<vmem>>, vector<1x16x128xf32>
    %72 = vector.shape_cast %71 : vector<1x16x128xf32> to vector<16x128xf32>
    %cst_54 = arith.constant dense<0.000000e+00> : vector<256x128xf32>
    %73 = tpu.matmul %70, %72, %cst_54 {dimension_numbers = #tpu.dot_dimension_numbers<[1], [0], [0], [1], [0, 0, 1, 1], [], []>} : vector<256x16xf32>, vector<16x128xf32>, vector<256x128xf32> -> vector<256x128xf32>
    %cst_55 = arith.constant dense<0.000000e+00> : vector<128xf32>
    %74 = vector.multi_reduction <add>, %73, %cst_55 [0] : vector<256x128xf32> to vector<128xf32>
    %75 = vector.shape_cast %74 : vector<128xf32> to vector<1x128xf32>
    %76 = arith.addf %49, %75 : vector<1x128xf32>
    %77 = arith.mulf %73, %73 : vector<256x128xf32>
    %cst_56 = arith.constant dense<0.000000e+00> : vector<128xf32>
    %78 = vector.multi_reduction <add>, %77, %cst_56 [0] : vector<256x128xf32> to vector<128xf32>
    %79 = vector.shape_cast %78 : vector<128xf32> to vector<1x128xf32>
    %80 = arith.addf %53, %79 : vector<1x128xf32>
    %81 = vector.shape_cast %73 : vector<256x128xf32> to vector<16x16x128xf32>
    %c0_57 = arith.constant 0 : index
    %c2_58 = arith.constant 2 : index
    %c0_59 = arith.constant 0 : index
    %c0_60 = arith.constant 0 : index
    %c0_61 = arith.constant 0 : index
    %82 = vector.load %arg3[%c0_57, %c2_58, %c0_59, %c0_60, %c0_61] : memref<1x4x16x16x128xf32, #tpu.memory_space<vmem>>, vector<1x1x16x16x128xf32>
    %83 = vector.shape_cast %82 : vector<1x1x16x16x128xf32> to vector<16x16x128xf32>
    %84 = vector.shape_cast %81 : vector<16x16x128xf32> to vector<1x1x16x16x128xf32>
    tpu.vector_store %arg3[%c0_57, %c2_58, %c0_59, %c0_60, %c0_61], %84 {strides = array<i32>} : memref<1x4x16x16x128xf32, #tpu.memory_space<vmem>>, vector<1x1x16x16x128xf32>,
    %85 = vector.extract_strided_slice %1 {offsets = [1, 1, 0], sizes = [16, 16, 4], strides = [1, 1, 1]} : vector<18x18x4xf32> to vector<16x16x4xf32>
    %86 = vector.shape_cast %85 : vector<16x16x4xf32> to vector<256x4xf32>
    %c0_62 = arith.constant 0 : index
    %c0_63 = arith.constant 0 : index
    %87 = vector.load %arg5[%c0_62, %c0_63] : memref<256x16xf32, #tpu.memory_space<vmem>>, vector<256x4xf32>
    tpu.vector_store %arg5[%c0_62, %c0_63], %86 {strides = array<i32>} : memref<256x16xf32, #tpu.memory_space<vmem>>, vector<256x4xf32>,
    %88 = vector.extract_strided_slice %1 {offsets = [1, 2, 0], sizes = [16, 16, 4], strides = [1, 1, 1]} : vector<18x18x4xf32> to vector<16x16x4xf32>
    %89 = vector.shape_cast %88 : vector<16x16x4xf32> to vector<256x4xf32>
    %c0_64 = arith.constant 0 : index
    %c4_65 = arith.constant 4 : index
    %90 = vector.load %arg5[%c0_64, %c4_65] : memref<256x16xf32, #tpu.memory_space<vmem>>, vector<256x4xf32>
    tpu.vector_store %arg5[%c0_64, %c4_65], %89 {strides = array<i32>} : memref<256x16xf32, #tpu.memory_space<vmem>>, vector<256x4xf32>,
    %91 = vector.extract_strided_slice %1 {offsets = [2, 1, 0], sizes = [16, 16, 4], strides = [1, 1, 1]} : vector<18x18x4xf32> to vector<16x16x4xf32>
    %92 = vector.shape_cast %91 : vector<16x16x4xf32> to vector<256x4xf32>
    %c0_66 = arith.constant 0 : index
    %c8_67 = arith.constant 8 : index
    %93 = vector.load %arg5[%c0_66, %c8_67] : memref<256x16xf32, #tpu.memory_space<vmem>>, vector<256x4xf32>
    tpu.vector_store %arg5[%c0_66, %c8_67], %92 {strides = array<i32>} : memref<256x16xf32, #tpu.memory_space<vmem>>, vector<256x4xf32>,
    %94 = vector.extract_strided_slice %1 {offsets = [2, 2, 0], sizes = [16, 16, 4], strides = [1, 1, 1]} : vector<18x18x4xf32> to vector<16x16x4xf32>
    %95 = vector.shape_cast %94 : vector<16x16x4xf32> to vector<256x4xf32>
    %c0_68 = arith.constant 0 : index
    %c12_69 = arith.constant 12 : index
    %96 = vector.load %arg5[%c0_68, %c12_69] : memref<256x16xf32, #tpu.memory_space<vmem>>, vector<256x4xf32>
    tpu.vector_store %arg5[%c0_68, %c12_69], %95 {strides = array<i32>} : memref<256x16xf32, #tpu.memory_space<vmem>>, vector<256x4xf32>,
    %c0_70 = arith.constant 0 : index
    %c0_71 = arith.constant 0 : index
    %97 = vector.load %arg5[%c0_70, %c0_71] : memref<256x16xf32, #tpu.memory_space<vmem>>, vector<256x16xf32>
    %c3 = arith.constant 3 : index
    %c0_72 = arith.constant 0 : index
    %c0_73 = arith.constant 0 : index
    %98 = vector.load %arg2[%c3, %c0_72, %c0_73] : memref<4x16x128xf32, #tpu.memory_space<vmem>>, vector<1x16x128xf32>
    %99 = vector.shape_cast %98 : vector<1x16x128xf32> to vector<16x128xf32>
    %cst_74 = arith.constant dense<0.000000e+00> : vector<256x128xf32>
    %100 = tpu.matmul %97, %99, %cst_74 {dimension_numbers = #tpu.dot_dimension_numbers<[1], [0], [0], [1], [0, 0, 1, 1], [], []>} : vector<256x16xf32>, vector<16x128xf32>, vector<256x128xf32> -> vector<256x128xf32>
    %cst_75 = arith.constant dense<0.000000e+00> : vector<128xf32>
    %101 = vector.multi_reduction <add>, %100, %cst_75 [0] : vector<256x128xf32> to vector<128xf32>
    %102 = vector.shape_cast %101 : vector<128xf32> to vector<1x128xf32>
    %103 = arith.addf %76, %102 : vector<1x128xf32>
    %104 = arith.mulf %100, %100 : vector<256x128xf32>
    %cst_76 = arith.constant dense<0.000000e+00> : vector<128xf32>
    %105 = vector.multi_reduction <add>, %104, %cst_76 [0] : vector<256x128xf32> to vector<128xf32>
    %106 = vector.shape_cast %105 : vector<128xf32> to vector<1x128xf32>
    %107 = arith.addf %80, %106 : vector<1x128xf32>
    %108 = vector.shape_cast %100 : vector<256x128xf32> to vector<16x16x128xf32>
    %c0_77 = arith.constant 0 : index
    %c3_78 = arith.constant 3 : index
    %c0_79 = arith.constant 0 : index
    %c0_80 = arith.constant 0 : index
    %c0_81 = arith.constant 0 : index
    %109 = vector.load %arg3[%c0_77, %c3_78, %c0_79, %c0_80, %c0_81] : memref<1x4x16x16x128xf32, #tpu.memory_space<vmem>>, vector<1x1x16x16x128xf32>
    %110 = vector.shape_cast %109 : vector<1x1x16x16x128xf32> to vector<16x16x128xf32>
    %111 = vector.shape_cast %108 : vector<16x16x128xf32> to vector<1x1x16x16x128xf32>
    tpu.vector_store %arg3[%c0_77, %c3_78, %c0_79, %c0_80, %c0_81], %111 {strides = array<i32>} : memref<1x4x16x16x128xf32, #tpu.memory_space<vmem>>, vector<1x1x16x16x128xf32>,
    %112 = tpu.concatenate %103, %107 in 0 : vector<1x128xf32>, vector<1x128xf32> -> vector<2x128xf32>
    %c0_82 = arith.constant 0 : index
    %c0_83 = arith.constant 0 : index
    %c0_84 = arith.constant 0 : index
    %113 = vector.load %arg4[%c0_82, %c0_83, %c0_84] : memref<1x2x128xf32, #tpu.memory_space<vmem>>, vector<1x2x128xf32>
    %114 = vector.shape_cast %113 : vector<1x2x128xf32> to vector<2x128xf32>
    %115 = vector.shape_cast %112 : vector<2x128xf32> to vector<1x2x128xf32>
    tpu.vector_store %arg4[%c0_82, %c0_83, %c0_84], %115 {strides = array<i32>} : memref<1x2x128xf32, #tpu.memory_space<vmem>>, vector<1x2x128xf32>,
    return
  }
  func.func @transform_0(%arg0: i32) -> (i32, i32, i32, i32) {
    %c0_i32 = arith.constant 0 : i32
    %c0_i32_0 = arith.constant 0 : i32
    %c0_i32_1 = arith.constant 0 : i32
    %c0_i32_2 = arith.constant 0 : i32
    return %arg0, %c0_i32, %c0_i32_0, %c0_i32_1 : i32, i32, i32, i32
  }
  func.func @transform_1(%arg0: i32) -> (i32, i32, i32) {
    %c0_i32 = arith.constant 0 : i32
    %c0_i32_0 = arith.constant 0 : i32
    %c0_i32_1 = arith.constant 0 : i32
    %c0_i32_2 = arith.constant 0 : i32
    return %c0_i32, %c0_i32_0, %c0_i32_1 : i32, i32, i32
  }
  func.func @transform_2(%arg0: i32) -> (i32, i32, i32, i32, i32) {
    %c0_i32 = arith.constant 0 : i32
    %c0_i32_0 = arith.constant 0 : i32
    %c0_i32_1 = arith.constant 0 : i32
    %c0_i32_2 = arith.constant 0 : i32
    %c0_i32_3 = arith.constant 0 : i32
    return %arg0, %c0_i32, %c0_i32_0, %c0_i32_1, %c0_i32_2 : i32, i32, i32, i32, i32
  }
  func.func @transform_3(%arg0: i32) -> (i32, i32, i32) {
    %c0_i32 = arith.constant 0 : i32
    %c0_i32_0 = arith.constant 0 : i32
    %c0_i32_1 = arith.constant 0 : i32
    return %arg0, %c0_i32, %c0_i32_0 : i32, i32, i32
  }
}

module attributes {stable_mosaic.version = 11 : i64} {
  func.func @bn_relu_kernel(%arg0: i32, %arg1: i32, %arg2: memref<1x1x16x16x128xf32, #tpu.memory_space<vmem>>, %arg3: memref<1x128xf32, #tpu.memory_space<vmem>>, %arg4: memref<1x128xf32, #tpu.memory_space<vmem>>, %arg5: memref<1x1x16x16x128xf32, #tpu.memory_space<vmem>>) attributes {dimension_semantics = [#tpu.dimension_semantics<parallel>, #tpu.dimension_semantics<parallel>], iteration_bounds = array<i64: 2, 4>, scalar_prefetch = 0 : i64, scratch_operands = 0 : i64, tpu.core_type = #tpu.core_type<tc>, window_params = [{transform_indices = @transform_0, window_bounds = array<i64: 1, 1, 16, 16, 128>}, {pipeline_mode = #tpu.pipeline_mode<synchronous>, transform_indices = @transform_1, window_bounds = array<i64: 1, 128>}, {pipeline_mode = #tpu.pipeline_mode<synchronous>, transform_indices = @transform_2, window_bounds = array<i64: 1, 128>}, {transform_indices = @transform_3, window_bounds = array<i64: 1, 1, 16, 16, 128>}]} {
    %c0 = arith.constant 0 : index
    %c0_0 = arith.constant 0 : index
    %c0_1 = arith.constant 0 : index
    %c0_2 = arith.constant 0 : index
    %c0_3 = arith.constant 0 : index
    %0 = vector.load %arg2[%c0, %c0_0, %c0_1, %c0_2, %c0_3] : memref<1x1x16x16x128xf32, #tpu.memory_space<vmem>>, vector<1x1x16x16x128xf32>
    %c0_4 = arith.constant 0 : index
    %c0_5 = arith.constant 0 : index
    %1 = vector.load %arg3[%c0_4, %c0_5] : memref<1x128xf32, #tpu.memory_space<vmem>>, vector<1x128xf32>
    %2 = vector.shape_cast %1 : vector<1x128xf32> to vector<128xf32>
    %3 = vector.shape_cast %2 : vector<128xf32> to vector<1x1x1x1x128xf32>
    %4 = vector.broadcast %3 : vector<1x1x1x1x128xf32> to vector<1x1x16x16x128xf32>
    %5 = arith.mulf %0, %4 : vector<1x1x16x16x128xf32>
    %c0_6 = arith.constant 0 : index
    %c0_7 = arith.constant 0 : index
    %6 = vector.load %arg4[%c0_6, %c0_7] : memref<1x128xf32, #tpu.memory_space<vmem>>, vector<1x128xf32>
    %7 = vector.shape_cast %6 : vector<1x128xf32> to vector<128xf32>
    %8 = vector.shape_cast %7 : vector<128xf32> to vector<1x1x1x1x128xf32>
    %9 = vector.broadcast %8 : vector<1x1x1x1x128xf32> to vector<1x1x16x16x128xf32>
    %10 = arith.addf %5, %9 : vector<1x1x16x16x128xf32>
    %cst = arith.constant 0.000000e+00 : f32
    %11 = vector.broadcast %cst : f32 to vector<1x1x16x16x128xf32>
    %12 = arith.maximumf %10, %11 : vector<1x1x16x16x128xf32>
    %c0_8 = arith.constant 0 : index
    %c0_9 = arith.constant 0 : index
    %c0_10 = arith.constant 0 : index
    %c0_11 = arith.constant 0 : index
    %c0_12 = arith.constant 0 : index
    %13 = vector.load %arg5[%c0_8, %c0_9, %c0_10, %c0_11, %c0_12] : memref<1x1x16x16x128xf32, #tpu.memory_space<vmem>>, vector<1x1x16x16x128xf32>
    tpu.vector_store %arg5[%c0_8, %c0_9, %c0_10, %c0_11, %c0_12], %12 {strides = array<i32>} : memref<1x1x16x16x128xf32, #tpu.memory_space<vmem>>, vector<1x1x16x16x128xf32>,
    return
  }
  func.func @transform_0(%arg0: i32, %arg1: i32) -> (i32, i32, i32, i32, i32) {
    %c0_i32 = arith.constant 0 : i32
    %c0_i32_0 = arith.constant 0 : i32
    %c0_i32_1 = arith.constant 0 : i32
    %c0_i32_2 = arith.constant 0 : i32
    return %arg0, %arg1, %c0_i32, %c0_i32_0, %c0_i32_1 : i32, i32, i32, i32, i32
  }
  func.func @transform_1(%arg0: i32, %arg1: i32) -> (i32, i32) {
    %c0_i32 = arith.constant 0 : i32
    %c0_i32_0 = arith.constant 0 : i32
    %c0_i32_1 = arith.constant 0 : i32
    return %c0_i32, %c0_i32_0 : i32, i32
  }
  func.func @transform_2(%arg0: i32, %arg1: i32) -> (i32, i32) {
    %c0_i32 = arith.constant 0 : i32
    %c0_i32_0 = arith.constant 0 : i32
    %c0_i32_1 = arith.constant 0 : i32
    return %c0_i32, %c0_i32_0 : i32, i32
  }
  func.func @transform_3(%arg0: i32, %arg1: i32) -> (i32, i32, i32, i32, i32) {
    %c0_i32 = arith.constant 0 : i32
    %c0_i32_0 = arith.constant 0 : i32
    %c0_i32_1 = arith.constant 0 : i32
    %c0_i32_2 = arith.constant 0 : i32
    return %arg0, %arg1, %c0_i32, %c0_i32_0, %c0_i32_1 : i32, i32, i32, i32, i32
  }
}

</mosaic_0001>

<llo_original>
// kernel: _up_conv_forward.3
$region0: #{_up_conv_forward.3}
  #allocation0 [shape = 'u32[]', space=smem, size = 0x4, offset = 0x4, fixed_abs, tag = 'smem constant byte address 0x4 - core index']
  #allocation1 [shape = 'u32[144,128]{1,0:T(1,128)}', space=vmem, size = 0x12000, scoped, tag = 'internal scratch']
  %s0 = inlined_call_operand.vmem [shape: f32[2,4,16,16,128], index: 0, kind: input, shape index: {}]
  %s1 = inlined_call_operand.vmem [shape: f32[1,128], index: 1, kind: input, shape index: {}]
  %s2 = inlined_call_operand.vmem [shape: f32[1,128], index: 2, kind: input, shape index: {}]
  %s3 = inlined_call_operand.vmem [shape: f32[2,4,16,16,128], index: 3, kind: output, shape index: {}]
  %s4 = sld [smem:[#allocation0]]
  $region45: #{_up_conv_forward.3} parent=0
    _
  %s6 = ssub.s32 1, %s4
  %s7 = scalar_select 0, %s6, %s4
  loop: start=0, step=1, limit=10
  $region2: #{_up_conv_forward.3} parent=0 // loop_pre_header
    _
  $region3: #{_up_conv_forward.3} parent=0 // loop_header
    %s9 = sphi 0, %s13
    %p10 = scmp.ge.s32.totalorder %s9, 10
    %s16 = sphi 0, %s28
    %s17 = sphi 0, %s24
    %s18 = sphi 0, %s16
    %s19 = sphi 0, %s17
    %s20 = sphi 0, %s18
    %s21 = sphi 0, %s19
    %s33 = sphi 0, %s35
    %s36 = sphi 0, %s33
    %s37 = sphi 0, %s36
    %s53 = sphi 0, %s37
    %s57 = sphi 0, %s57
    %s59 = sphi 0, %s57
    %s60 = sphi 0, %s59
    %s74 = sphi 0, %s60
    %s78 = sphi 0, %s78
    %s80 = sphi 0, %s78
    %s81 = sphi 0, %s80
    %s95 = sphi 0, %s81
    %s103 = sphi 0, %s105
    %s106 = sphi 0, %s103
    %s107 = sphi 0, %s106
    %s123 = sphi 0, %s107
  $region4: #{_up_conv_forward.3} parent=0 // loop_header_branch
    %12 = sbr.rel (%p10) target = $region8
  $region5: #{_up_conv_forward.3} parent=0 // loop_body
    %s14 = ssub.s32 %s9, 1
    %s15 = ssub.s32 %s9, 2
    %s22 = sadd.s32 1, %s17
    %p23 = scmp.ge.s32.totalorder %s22, 4
    %s24 = scalar_select %p23, 0, %s22
    %s25 = sadd.s32 1, %s16
    %s26 = scalar_select %p23, %s25, %s16
    %p27 = scmp.ge.s32.totalorder %s26, 2
    %s28 = scalar_select %p27, 0, %s26
    %s29 = ssub.s32 %s16, %s28
    %s30 = ssub.s32 %s17, %s24
    %s31 = sor.u32 %s29, %s30
    %p32 = scmp.eq.s32.totalorder %s31, 0
    %s34 = sadd.s32 %s33, 1
    %s35 = scalar_select %p32, %s33, %s34
    %p38 = pneg %p32
    %p39 = scmp.eq.s32.totalorder %s9, 7
    %p40 = por %p38, %p39
    %p41 = scmp.ne.s32.totalorder %s33, %s36
    %p42 = scmp.eq.s32.totalorder %s9, 0
    %p43 = por %p41, %p42
    %p44 = scmp.ne.s32.totalorder %s33, %s36
    %p45 = scmp.eq.s32.totalorder %s14, 7
    %p46 = por %p44, %p45
    %p47 = scmp.ne.s32.totalorder %s36, %s37
    %p48 = scmp.eq.s32.totalorder %s14, 0
    %p49 = por %p47, %p48
    %p50 = scmp.ne.s32.totalorder %s36, %s37
    %p51 = scmp.eq.s32.totalorder %s15, 7
    %p52 = por %p50, %p51
    %p54 = scmp.ne.s32.totalorder %s37, %s53
    %p55 = scmp.eq.s32.totalorder %s15, 0
    %p56 = por %p54, %p55
    %s58 = sadd.s32 %s57, 1
    %p61 = scmp.eq.s32.totalorder %s9, 7
    %p62 = scmp.ne.s32.totalorder %s57, %s59
    %p63 = scmp.eq.s32.totalorder %s9, 0
    %p64 = por %p62, %p63
    %p65 = scmp.ne.s32.totalorder %s57, %s59
    %p66 = scmp.eq.s32.totalorder %s14, 7
    %p67 = por %p65, %p66
    %p68 = scmp.ne.s32.totalorder %s59, %s60
    %p69 = scmp.eq.s32.totalorder %s14, 0
    %p70 = por %p68, %p69
    %p71 = scmp.ne.s32.totalorder %s59, %s60
    %p72 = scmp.eq.s32.totalorder %s15, 7
    %p73 = por %p71, %p72
    %p75 = scmp.ne.s32.totalorder %s60, %s74
    %p76 = scmp.eq.s32.totalorder %s15, 0
    %p77 = por %p75, %p76
    %s79 = sadd.s32 %s78, 1
    %p82 = scmp.eq.s32.totalorder %s9, 7
    %p83 = scmp.ne.s32.totalorder %s78, %s80
    %p84 = scmp.eq.s32.totalorder %s9, 0
    %p85 = por %p83, %p84
    %p86 = scmp.ne.s32.totalorder %s78, %s80
    %p87 = scmp.eq.s32.totalorder %s14, 7
    %p88 = por %p86, %p87
    %p89 = scmp.ne.s32.totalorder %s80, %s81
    %p90 = scmp.eq.s32.totalorder %s14, 0
    %p91 = por %p89, %p90
    %p92 = scmp.ne.s32.totalorder %s80, %s81
    %p93 = scmp.eq.s32.totalorder %s15, 7
    %p94 = por %p92, %p93
    %p96 = scmp.ne.s32.totalorder %s81, %s95
    %p97 = scmp.eq.s32.totalorder %s15, 0
    %p98 = por %p96, %p97
    %s99 = ssub.s32 %s16, %s28
    %s100 = ssub.s32 %s17, %s24
    %s101 = sor.u32 %s99, %s100
    %p102 = scmp.eq.s32.totalorder %s101, 0
    %s104 = sadd.s32 %s103, 1
    %s105 = scalar_select %p102, %s103, %s104
    %p108 = pneg %p102
    %p109 = scmp.eq.s32.totalorder %s9, 7
    %p110 = por %p108, %p109
    %p111 = scmp.ne.s32.totalorder %s103, %s106
    %p112 = scmp.eq.s32.totalorder %s9, 0
    %p113 = por %p111, %p112
    %p114 = scmp.ne.s32.totalorder %s103, %s106
    %p115 = scmp.eq.s32.totalorder %s14, 7
    %p116 = por %p114, %p115
    %p117 = scmp.ne.s32.totalorder %s106, %s107
    %p118 = scmp.eq.s32.totalorder %s14, 0
    %p119 = por %p117, %p118
    %p120 = scmp.ne.s32.totalorder %s106, %s107
    %p121 = scmp.eq.s32.totalorder %s15, 7
    %p122 = por %p120, %p121
    %p124 = scmp.ne.s32.totalorder %s107, %s123
    %p125 = scmp.eq.s32.totalorder %s15, 0
    %p126 = por %p124, %p125
    %p127 = scmp.le.s32.totalorder 1, %s9
    %p128 = scmp.lt.s32.totalorder %s9, 9
    %p129 = pnand %p127, %p128
    %p130 = pneg %p129
    // Predicated region
    $region9: #{_up_conv_forward.3} parent=5 // pred_check
      _
    $region10: #{_up_conv_forward.3} parent=5 // pred_check_branch
      %132 = sbr.rel (%p129) target = $region12
    $region11: #{_up_conv_forward.3} parent=5 // pred_region
      %s133 = ssub.s32 %s9, 1
      // Predicated region
      $region13: #{_up_conv_forward.3} parent=11 // pred_check
        %p134 = pneg %p70
      $region14: #{_up_conv_forward.3} parent=11 // pred_check_branch
        %136 = sbr.rel (%p134) target = $region16
      $region15: #{_up_conv_forward.3} parent=11 // pred_region
        _
      $region16: #{_up_conv_forward.3} parent=11 // pred_fallthru
        _
      // Predicated region
      $region17: #{_up_conv_forward.3} parent=11 // pred_check
        %p137 = pneg %p91
      $region18: #{_up_conv_forward.3} parent=11 // pred_check_branch
        %139 = sbr.rel (%p137) target = $region20
      $region19: #{_up_conv_forward.3} parent=11 // pred_region
        _
      $region20: #{_up_conv_forward.3} parent=11 // pred_fallthru
        _
    $region12: #{_up_conv_forward.3} parent=5 // pred_fallthru
      _
    %p140 = scmp.lt.s32.totalorder %s9, 8
    // Predicated region
    $region21: #{_up_conv_forward.3} parent=5 // pred_check
      %p141 = pneg %p140
    $region22: #{_up_conv_forward.3} parent=5 // pred_check_branch
      %143 = sbr.rel (%p141) target = $region24
    $region23: #{_up_conv_forward.3} parent=5 // pred_region
      // Predicated region
      $region25: #{_up_conv_forward.3} parent=23 // pred_check
        %p144 = pneg %p43
      $region26: #{_up_conv_forward.3} parent=23 // pred_check_branch
        %146 = sbr.rel (%p144) target = $region28
      $region27: #{_up_conv_forward.3} parent=23 // pred_region
        %p147 = scmp.lt.s32.totalorder %s16, 1
        %s148 = scalar_select %p147, %s16, 1
        %p149 = scmp.lt.s32.totalorder %s17, 3
        %s150 = scalar_select %p149, %s17, 3
        %s151 = smul.addr %s150, 32
        %s152 = smul.addr %s148, 128
        %s153 = sadd.s32 %s151, %s152
        %s154 = smul.addr %s153, 8
        %s155 = scalar_lea.vmem %s0, %s154
      $region28: #{_up_conv_forward.3} parent=23 // pred_fallthru
        _
    $region24: #{_up_conv_forward.3} parent=5 // pred_fallthru
      _
    %p156 = scmp.le.s32.totalorder 1, %s9
    %p157 = scmp.lt.s32.totalorder %s9, 9
    %p158 = pnand %p156, %p157
    %p159 = pneg %p158
    // Predicated region
    $region29: #{_up_conv_forward.3} parent=5 // pred_check
      _
    $region30: #{_up_conv_forward.3} parent=5 // pred_check_branch
      %161 = sbr.rel (%p158) target = $region32
    $region31: #{_up_conv_forward.3} parent=5 // pred_region
      %s162 = ssub.s32 %s9, 1
      %p163 = scmp.lt.s32.totalorder %s18, 1
      %s164 = scalar_select %p163, %s18, 1
      %p165 = scmp.lt.s32.totalorder %s19, 3
      %s166 = scalar_select %p165, %s19, 3
      %s167 = smul.addr %s166, 32
      %s168 = smul.addr %s164, 128
      %s169 = sadd.s32 %s167, %s168
      %s170 = smul.addr %s169, 8
      %s171 = scalar_lea.vmem %s0, %s170
      %p172 = pneg %p49
      %p173 = pneg %p46
      %p174 = pneg %p70
      %p175 = pneg %p67
      %p176 = pneg %p91
      %p177 = pneg %p88
      %p178 = pneg %p119
      %p179 = pneg %p116
      %p180 = scmp.lt.s32.totalorder %s18, 1
      %s181 = scalar_select %p180, %s18, 1
      %p182 = scmp.lt.s32.totalorder %s19, 3
      %s183 = scalar_select %p182, %s19, 3
      %s184 = smul.addr %s183, 32
      %s185 = smul.addr %s181, 128
      %s186 = sadd.s32 %s184, %s185
      %s187 = smul.addr %s186, 8
      %s188 = scalar_lea.vmem %s3, %s187
      %p189 = scmp.lt.s32.totalorder %s18, 1
      %s190 = scalar_select %p189, %s18, 1
      %p191 = scmp.lt.s32.totalorder %s19, 3
      %s192 = scalar_select %p191, %s19, 3
      %s193 = smul.addr %s192, 32
      %s194 = smul.addr %s190, 128
      %s195 = sadd.s32 %s193, %s194
      %s196 = smul.addr %s195, 8
      %s197 = scalar_lea.vmem %s0, %s196
      %p198 = scmp.lt.s32.totalorder %s18, 1
      %s199 = scalar_select %p198, %s18, 1
      %p200 = scmp.lt.s32.totalorder %s19, 3
      %s201 = scalar_select %p200, %s19, 3
      %s202 = smul.addr %s201, 32
      %s203 = smul.addr %s199, 128
      %s204 = sadd.s32 %s202, %s203
      %s205 = smul.addr %s204, 8
      %s206 = scalar_lea.vmem %s3, %s205
      %v207 = vld [vmem:[%s197] sm:$0xff]
      %v208 = vld [vmem:[%s197 + $0x8] sm:$0xff]
      %v209 = vld [vmem:[%s197 + $0x10] sm:$0xff]
      %v210 = vld [vmem:[%s197 + $0x18] sm:$0xff]
      %v211 = vld [vmem:[%s197 + $0x20] sm:$0xff]
      %v212 = vld [vmem:[%s197 + $0x28] sm:$0xff]
      %v213 = vld [vmem:[%s197 + $0x30] sm:$0xff]
      %v214 = vld [vmem:[%s197 + $0x38] sm:$0xff]
      %v215 = vld [vmem:[%s197 + $0x40] sm:$0xff]
      %v216 = vld [vmem:[%s197 + $0x48] sm:$0xff]
      %v217 = vld [vmem:[%s197 + $0x50] sm:$0xff]
      %v218 = vld [vmem:[%s197 + $0x58] sm:$0xff]
      %v219 = vld [vmem:[%s197 + $0x60] sm:$0xff]
      %v220 = vld [vmem:[%s197 + $0x68] sm:$0xff]
      %v221 = vld [vmem:[%s197 + $0x70] sm:$0xff]
      %v222 = vld [vmem:[%s197 + $0x78] sm:$0xff]
      %v223 = vld [vmem:[%s197 + $0x80] sm:$0xff]
      %v224 = vld [vmem:[%s197 + $0x88] sm:$0xff]
      %v225 = vld [vmem:[%s197 + $0x90] sm:$0xff]
      %v226 = vld [vmem:[%s197 + $0x98] sm:$0xff]
      %v227 = vld [vmem:[%s197 + $0xa0] sm:$0xff]
      %v228 = vld [vmem:[%s197 + $0xa8] sm:$0xff]
      %v229 = vld [vmem:[%s197 + $0xb0] sm:$0xff]
      %v230 = vld [vmem:[%s197 + $0xb8] sm:$0xff]
      %v231 = vld [vmem:[%s197 + $0xc0] sm:$0xff]
      %v232 = vld [vmem:[%s197 + $0xc8] sm:$0xff]
      %v233 = vld [vmem:[%s197 + $0xd0] sm:$0xff]
      %v234 = vld [vmem:[%s197 + $0xd8] sm:$0xff]
      %v235 = vld [vmem:[%s197 + $0xe0] sm:$0xff]
      %v236 = vld [vmem:[%s197 + $0xe8] sm:$0xff]
      %v237 = vld [vmem:[%s197 + $0xf0] sm:$0xff]
      %v238 = vld [vmem:[%s197 + $0xf8] sm:$0xff]
      %v239 = vld [vmem:[%s1] sm:$0x1]
      %v241 = vlaneseq
      %v242 = vshrl.u32 %v241, 7
      %v243 = vsub.s32 0, %v242
      %v244 = vrot.slane %v239, %v243
      %v246 = vmul.f32 %v207, %v244
      %v247 = vmul.f32 %v208, %v244
      %v248 = vmul.f32 %v209, %v244
      %v249 = vmul.f32 %v210, %v244
      %v250 = vmul.f32 %v211, %v244
      %v251 = vmul.f32 %v212, %v244
      %v252 = vmul.f32 %v213, %v244
      %v253 = vmul.f32 %v214, %v244
      %v254 = vmul.f32 %v215, %v244
      %v255 = vmul.f32 %v216, %v244
      %v256 = vmul.f32 %v217, %v244
      %v257 = vmul.f32 %v218, %v244
      %v258 = vmul.f32 %v219, %v244
      %v259 = vmul.f32 %v220, %v244
      %v260 = vmul.f32 %v221, %v244
      %v261 = vmul.f32 %v222, %v244
      %v262 = vmul.f32 %v223, %v244
      %v263 = vmul.f32 %v224, %v244
      %v264 = vmul.f32 %v225, %v244
      %v265 = vmul.f32 %v226, %v244
      %v266 = vmul.f32 %v227, %v244
      %v267 = vmul.f32 %v228, %v244
      %v268 = vmul.f32 %v229, %v244
      %v269 = vmul.f32 %v230, %v244
      %v270 = vmul.f32 %v231, %v244
      %v271 = vmul.f32 %v232, %v244
      %v272 = vmul.f32 %v233, %v244
      %v273 = vmul.f32 %v234, %v244
      %v274 = vmul.f32 %v235, %v244
      %v275 = vmul.f32 %v236, %v244
      %v276 = vmul.f32 %v237, %v244
      %v277 = vmul.f32 %v238, %v244
      %v278 = vld [vmem:[%s2] sm:$0x1]
      %v280 = vlaneseq
      %v281 = vshrl.u32 %v280, 7
      %v282 = vsub.s32 0, %v281
      %v283 = vrot.slane %v278, %v282
      %v285 = vadd.f32 %v246, %v283
      %v286 = vadd.f32 %v247, %v283
      %v287 = vadd.f32 %v248, %v283
      %v288 = vadd.f32 %v249, %v283
      %v289 = vadd.f32 %v250, %v283
      %v290 = vadd.f32 %v251, %v283
      %v291 = vadd.f32 %v252, %v283
      %v292 = vadd.f32 %v253, %v283
      %v293 = vadd.f32 %v254, %v283
      %v294 = vadd.f32 %v255, %v283
      %v295 = vadd.f32 %v256, %v283
      %v296 = vadd.f32 %v257, %v283
      %v297 = vadd.f32 %v258, %v283
      %v298 = vadd.f32 %v259, %v283
      %v299 = vadd.f32 %v260, %v283
      %v300 = vadd.f32 %v261, %v283
      %v301 = vadd.f32 %v262, %v283
      %v302 = vadd.f32 %v263, %v283
      %v303 = vadd.f32 %v264, %v283
      %v304 = vadd.f32 %v265, %v283
      %v305 = vadd.f32 %v266, %v283
      %v306 = vadd.f32 %v267, %v283
      %v307 = vadd.f32 %v268, %v283
      %v308 = vadd.f32 %v269, %v283
      %v309 = vadd.f32 %v270, %v283
      %v310 = vadd.f32 %v271, %v283
      %v311 = vadd.f32 %v272, %v283
      %v312 = vadd.f32 %v273, %v283
      %v313 = vadd.f32 %v274, %v283
      %v314 = vadd.f32 %v275, %v283
      %v315 = vadd.f32 %v276, %v283
      %v316 = vadd.f32 %v277, %v283
      %v317 = vmax.f32 %v285, 0.0
      %v318 = vmax.f32 %v286, 0.0
      %v319 = vmax.f32 %v287, 0.0
      %v320 = vmax.f32 %v288, 0.0
      %v321 = vmax.f32 %v289, 0.0
      %v322 = vmax.f32 %v290, 0.0
      %v323 = vmax.f32 %v291, 0.0
      %v324 = vmax.f32 %v292, 0.0
      %v325 = vmax.f32 %v293, 0.0
      %v326 = vmax.f32 %v294, 0.0
      %v327 = vmax.f32 %v295, 0.0
      %v328 = vmax.f32 %v296, 0.0
      %v329 = vmax.f32 %v297, 0.0
      %v330 = vmax.f32 %v298, 0.0
      %v331 = vmax.f32 %v299, 0.0
      %v332 = vmax.f32 %v300, 0.0
      %v333 = vmax.f32 %v301, 0.0
      %v334 = vmax.f32 %v302, 0.0
      %v335 = vmax.f32 %v303, 0.0
      %v336 = vmax.f32 %v304, 0.0
      %v337 = vmax.f32 %v305, 0.0
      %v338 = vmax.f32 %v306, 0.0
      %v339 = vmax.f32 %v307, 0.0
      %v340 = vmax.f32 %v308, 0.0
      %v341 = vmax.f32 %v309, 0.0
      %v342 = vmax.f32 %v310, 0.0
      %v343 = vmax.f32 %v311, 0.0
      %v344 = vmax.f32 %v312, 0.0
      %v345 = vmax.f32 %v313, 0.0
      %v346 = vmax.f32 %v314, 0.0
      %v347 = vmax.f32 %v315, 0.0
      %v348 = vmax.f32 %v316, 0.0
      %349 = vst [vmem:[%s206] sm:$0xff] %v317
      %350 = vst [vmem:[%s206 + $0x8] sm:$0xff] %v318
      %351 = vst [vmem:[%s206 + $0x10] sm:$0xff] %v319
      %352 = vst [vmem:[%s206 + $0x18] sm:$0xff] %v320
      %353 = vst [vmem:[%s206 + $0x20] sm:$0xff] %v321
      %354 = vst [vmem:[%s206 + $0x28] sm:$0xff] %v322
      %355 = vst [vmem:[%s206 + $0x30] sm:$0xff] %v323
      %356 = vst [vmem:[%s206 + $0x38] sm:$0xff] %v324
      %357 = vst [vmem:[%s206 + $0x40] sm:$0xff] %v325
      %358 = vst [vmem:[%s206 + $0x48] sm:$0xff] %v326
      %359 = vst [vmem:[%s206 + $0x50] sm:$0xff] %v327
      %360 = vst [vmem:[%s206 + $0x58] sm:$0xff] %v328
      %361 = vst [vmem:[%s206 + $0x60] sm:$0xff] %v329
      %362 = vst [vmem:[%s206 + $0x68] sm:$0xff] %v330
      %363 = vst [vmem:[%s206 + $0x70] sm:$0xff] %v331
      %364 = vst [vmem:[%s206 + $0x78] sm:$0xff] %v332
      %365 = vst [vmem:[%s206 + $0x80] sm:$0xff] %v333
      %366 = vst [vmem:[%s206 + $0x88] sm:$0xff] %v334
      %367 = vst [vmem:[%s206 + $0x90] sm:$0xff] %v335
      %368 = vst [vmem:[%s206 + $0x98] sm:$0xff] %v336
      %369 = vst [vmem:[%s206 + $0xa0] sm:$0xff] %v337
      %370 = vst [vmem:[%s206 + $0xa8] sm:$0xff] %v338
      %371 = vst [vmem:[%s206 + $0xb0] sm:$0xff] %v339
      %372 = vst [vmem:[%s206 + $0xb8] sm:$0xff] %v340
      %373 = vst [vmem:[%s206 + $0xc0] sm:$0xff] %v341
      %374 = vst [vmem:[%s206 + $0xc8] sm:$0xff] %v342
      %375 = vst [vmem:[%s206 + $0xd0] sm:$0xff] %v343
      %376 = vst [vmem:[%s206 + $0xd8] sm:$0xff] %v344
      %377 = vst [vmem:[%s206 + $0xe0] sm:$0xff] %v345
      %378 = vst [vmem:[%s206 + $0xe8] sm:$0xff] %v346
      %379 = vst [vmem:[%s206 + $0xf0] sm:$0xff] %v347
      %380 = vst [vmem:[%s206 + $0xf8] sm:$0xff] %v348
      %p381 = scmp.lt.s32.totalorder %s18, 1
      %s382 = scalar_select %p381, %s18, 1
      %p383 = scmp.lt.s32.totalorder %s19, 3
      %s384 = scalar_select %p383, %s19, 3
      %s385 = smul.addr %s384, 32
      %s386 = smul.addr %s382, 128
      %s387 = sadd.s32 %s385, %s386
      %s388 = smul.addr %s387, 8
      %s389 = scalar_lea.vmem %s3, %s388
      // Predicated region
      $region33: #{_up_conv_forward.3} parent=31 // pred_check
        %p390 = pneg %p116
      $region34: #{_up_conv_forward.3} parent=31 // pred_check_branch
        %392 = sbr.rel (%p390) target = $region36
      $region35: #{_up_conv_forward.3} parent=31 // pred_region
        _
      $region36: #{_up_conv_forward.3} parent=31 // pred_fallthru
        _
    $region32: #{_up_conv_forward.3} parent=5 // pred_fallthru
      _
    %p393 = scmp.le.s32.totalorder 2, %s9
    // Predicated region
    $region37: #{_up_conv_forward.3} parent=5 // pred_check
      %p394 = pneg %p393
    $region38: #{_up_conv_forward.3} parent=5 // pred_check_branch
      %396 = sbr.rel (%p394) target = $region40
    $region39: #{_up_conv_forward.3} parent=5 // pred_region
      %s397 = ssub.s32 %s9, 2
      // Predicated region
      $region41: #{_up_conv_forward.3} parent=39 // pred_check
        %p398 = pneg %p122
      $region42: #{_up_conv_forward.3} parent=39 // pred_check_branch
        %400 = sbr.rel (%p398) target = $region44
      $region43: #{_up_conv_forward.3} parent=39 // pred_region
        %p401 = scmp.lt.s32.totalorder %s20, 1
        %s402 = scalar_select %p401, %s20, 1
        %p403 = scmp.lt.s32.totalorder %s21, 3
        %s404 = scalar_select %p403, %s21, 3
        %s405 = smul.addr %s404, 32
        %s406 = smul.addr %s402, 128
        %s407 = sadd.s32 %s405, %s406
        %s408 = smul.addr %s407, 8
        %s409 = scalar_lea.vmem %s3, %s408
      $region44: #{_up_conv_forward.3} parent=39 // pred_fallthru
        _
    $region40: #{_up_conv_forward.3} parent=5 // pred_fallthru
      _
  $region6: #{_up_conv_forward.3} parent=0 // loop_footer
    %s13 = sadd.s32 1, %s9
  $region7: #{_up_conv_forward.3} parent=0 // loop_footer_branch
    %8 = sbr.rel target = $region3
  $region8: #{_up_conv_forward.3} parent=0 // loop_exit
    _

// kernel: _up_conv_forward.2
$region0: #{_up_conv_forward.2}
  #allocation0 [shape = 'u32[]', space=smem, size = 0x4, offset = 0x4, fixed_abs, tag = 'smem constant byte address 0x4 - core index']
  #allocation1 [shape = 'u32[144,128]{1,0:T(1,128)}', space=vmem, size = 0x12000, scoped, tag = 'internal scratch']
  #allocation2 [shape = 'f32[256,16]{1,0:T(8,128)}', space=vmem, size = 0x20000, scoped, tag = 'scratch operand']
  %s0 = inlined_call_operand.vmem [shape: f32[2,18,18,4], index: 0, kind: input, shape index: {}]
  %s1 = inlined_call_operand.vmem [shape: f32[4,16,128], index: 1, kind: input, shape index: {}]
  %s2 = inlined_call_operand.vmem [shape: f32[2,4,16,16,128], index: 2, kind: output, shape index: {0}]
  %s3 = inlined_call_operand.vmem [shape: f32[2,2,128], index: 3, kind: output, shape index: {1}]
  %4 = xla_tuple %s2, %s3
  %s5 = sld [smem:[#allocation0]]
  $region49: #{_up_conv_forward.2} parent=0
    _
  %s7 = ssub.s32 1, %s5
  %s8 = scalar_select 0, %s7, %s5
  loop: start=0, step=1, limit=4
  $region2: #{_up_conv_forward.2} parent=0 // loop_pre_header
    _
  $region3: #{_up_conv_forward.2} parent=0 // loop_header
    %s10 = sphi 0, %s14
    %p11 = scmp.ge.s32.totalorder %s10, 4
    %s20 = sphi 0, %s22
    %s23 = sphi 0, %s20
    %s24 = sphi 0, %s23
    %s40 = sphi 0, %s24
    %s44 = sphi 0, %s44
    %s46 = sphi 0, %s44
    %s47 = sphi 0, %s46
    %s61 = sphi 0, %s47
    %s67 = sphi 0, %s69
    %s70 = sphi 0, %s67
    %s71 = sphi 0, %s70
    %s87 = sphi 0, %s71
    %s93 = sphi 0, %s95
    %s96 = sphi 0, %s93
    %s97 = sphi 0, %s96
    %s113 = sphi 0, %s97
  $region4: #{_up_conv_forward.2} parent=0 // loop_header_branch
    %13 = sbr.rel (%p11) target = $region8
  $region5: #{_up_conv_forward.2} parent=0 // loop_body
    %s15 = ssub.s32 %s10, 1
    %s16 = ssub.s32 %s10, 2
    %s17 = sadd.s32 %s10, 1
    %s18 = ssub.s32 %s10, %s17
    %p19 = scmp.eq.s32.totalorder %s18, 0
    %s21 = sadd.s32 %s20, 1
    %s22 = scalar_select %p19, %s20, %s21
    %p25 = pneg %p19
    %p26 = scmp.eq.s32.totalorder %s10, 1
    %p27 = por %p25, %p26
    %p28 = scmp.ne.s32.totalorder %s20, %s23
    %p29 = scmp.eq.s32.totalorder %s10, 0
    %p30 = por %p28, %p29
    %p31 = scmp.ne.s32.totalorder %s20, %s23
    %p32 = scmp.eq.s32.totalorder %s15, 1
    %p33 = por %p31, %p32
    %p34 = scmp.ne.s32.totalorder %s23, %s24
    %p35 = scmp.eq.s32.totalorder %s15, 0
    %p36 = por %p34, %p35
    %p37 = scmp.ne.s32.totalorder %s23, %s24
    %p38 = scmp.eq.s32.totalorder %s16, 1
    %p39 = por %p37, %p38
    %p41 = scmp.ne.s32.totalorder %s24, %s40
    %p42 = scmp.eq.s32.totalorder %s16, 0
    %p43 = por %p41, %p42
    %s45 = sadd.s32 %s44, 1
    %p48 = scmp.eq.s32.totalorder %s10, 1
    %p49 = scmp.ne.s32.totalorder %s44, %s46
    %p50 = scmp.eq.s32.totalorder %s10, 0
    %p51 = por %p49, %p50
    %p52 = scmp.ne.s32.totalorder %s44, %s46
    %p53 = scmp.eq.s32.totalorder %s15, 1
    %p54 = por %p52, %p53
    %p55 = scmp.ne.s32.totalorder %s46, %s47
    %p56 = scmp.eq.s32.totalorder %s15, 0
    %p57 = por %p55, %p56
    %p58 = scmp.ne.s32.totalorder %s46, %s47
    %p59 = scmp.eq.s32.totalorder %s16, 1
    %p60 = por %p58, %p59
    %p62 = scmp.ne.s32.totalorder %s47, %s61
    %p63 = scmp.eq.s32.totalorder %s16, 0
    %p64 = por %p62, %p63
    %s65 = ssub.s32 %s10, %s17
    %p66 = scmp.eq.s32.totalorder %s65, 0
    %s68 = sadd.s32 %s67, 1
    %s69 = scalar_select %p66, %s67, %s68
    %p72 = pneg %p66
    %p73 = scmp.eq.s32.totalorder %s10, 1
    %p74 = por %p72, %p73
    %p75 = scmp.ne.s32.totalorder %s67, %s70
    %p76 = scmp.eq.s32.totalorder %s10, 0
    %p77 = por %p75, %p76
    %p78 = scmp.ne.s32.totalorder %s67, %s70
    %p79 = scmp.eq.s32.totalorder %s15, 1
    %p80 = por %p78, %p79
    %p81 = scmp.ne.s32.totalorder %s70, %s71
    %p82 = scmp.eq.s32.totalorder %s15, 0
    %p83 = por %p81, %p82
    %p84 = scmp.ne.s32.totalorder %s70, %s71
    %p85 = scmp.eq.s32.totalorder %s16, 1
    %p86 = por %p84, %p85
    %p88 = scmp.ne.s32.totalorder %s71, %s87
    %p89 = scmp.eq.s32.totalorder %s16, 0
    %p90 = por %p88, %p89
    %s91 = ssub.s32 %s10, %s17
    %p92 = scmp.eq.s32.totalorder %s91, 0
    %s94 = sadd.s32 %s93, 1
    %s95 = scalar_select %p92, %s93, %s94
    %p98 = pneg %p92
    %p99 = scmp.eq.s32.totalorder %s10, 1
    %p100 = por %p98, %p99
    %p101 = scmp.ne.s32.totalorder %s93, %s96
    %p102 = scmp.eq.s32.totalorder %s10, 0
    %p103 = por %p101, %p102
    %p104 = scmp.ne.s32.totalorder %s93, %s96
    %p105 = scmp.eq.s32.totalorder %s15, 1
    %p106 = por %p104, %p105
    %p107 = scmp.ne.s32.totalorder %s96, %s97
    %p108 = scmp.eq.s32.totalorder %s15, 0
    %p109 = por %p107, %p108
    %p110 = scmp.ne.s32.totalorder %s96, %s97
    %p111 = scmp.eq.s32.totalorder %s16, 1
    %p112 = por %p110, %p111
    %p114 = scmp.ne.s32.totalorder %s97, %s113
    %p115 = scmp.eq.s32.totalorder %s16, 0
    %p116 = por %p114, %p115
    %p117 = scmp.le.s32.totalorder 1, %s10
    %p118 = scmp.lt.s32.totalorder %s10, 3
    %p119 = pnand %p117, %p118
    %p120 = pneg %p119
    // Predicated region
    $region9: #{_up_conv_forward.2} parent=5 // pred_check
      _
    $region10: #{_up_conv_forward.2} parent=5 // pred_check_branch
      %122 = sbr.rel (%p119) target = $region12
    $region11: #{_up_conv_forward.2} parent=5 // pred_region
      %s123 = ssub.s32 %s10, 1
      // Predicated region
      $region13: #{_up_conv_forward.2} parent=11 // pred_check
        %p124 = pneg %p57
      $region14: #{_up_conv_forward.2} parent=11 // pred_check_branch
        %126 = sbr.rel (%p124) target = $region16
      $region15: #{_up_conv_forward.2} parent=11 // pred_region
        _
      $region16: #{_up_conv_forward.2} parent=11 // pred_fallthru
        _
    $region12: #{_up_conv_forward.2} parent=5 // pred_fallthru
      _
    %p127 = scmp.lt.s32.totalorder %s10, 2
    // Predicated region
    $region17: #{_up_conv_forward.2} parent=5 // pred_check
      %p128 = pneg %p127
    $region18: #{_up_conv_forward.2} parent=5 // pred_check_branch
      %130 = sbr.rel (%p128) target = $region20
    $region19: #{_up_conv_forward.2} parent=5 // pred_region
      // Predicated region
      $region21: #{_up_conv_forward.2} parent=19 // pred_check
        %p131 = pneg %p30
      $region22: #{_up_conv_forward.2} parent=19 // pred_check_branch
        %133 = sbr.rel (%p131) target = $region24
      $region23: #{_up_conv_forward.2} parent=19 // pred_region
        %p134 = scmp.lt.s32.totalorder %s10, 1
        %s135 = scalar_select %p134, %s10, 1
        %s136 = smul.addr %s135, 54
        %s137 = smul.addr %s136, 8
        %s138 = scalar_lea.vmem %s0, %s137
      $region24: #{_up_conv_forward.2} parent=19 // pred_fallthru
        _
    $region20: #{_up_conv_forward.2} parent=5 // pred_fallthru
      _
    %p139 = scmp.le.s32.totalorder 1, %s10
    %p140 = scmp.lt.s32.totalorder %s10, 3
    %p141 = pnand %p139, %p140
    %p142 = pneg %p141
    // Predicated region
    $region25: #{_up_conv_forward.2} parent=5 // pred_check
      _
    $region26: #{_up_conv_forward.2} parent=5 // pred_check_branch
      %144 = sbr.rel (%p141) target = $region28
    $region27: #{_up_conv_forward.2} parent=5 // pred_region
      %s145 = ssub.s32 %s10, 1
      %p146 = scmp.lt.s32.totalorder %s15, 1
      %s147 = scalar_select %p146, %s15, 1
      %s148 = smul.addr %s147, 54
      %s149 = smul.addr %s148, 8
      %s150 = scalar_lea.vmem %s0, %s149
      %p151 = pneg %p36
      %p152 = pneg %p33
      %p153 = pneg %p57
      %p154 = pneg %p54
      %p155 = pneg %p83
      %p156 = pneg %p80
      %p157 = scmp.lt.s32.totalorder %s15, 1
      %s158 = scalar_select %p157, %s15, 1
      %s159 = smul.addr %s158, 128
      %s160 = smul.addr %s159, 8
      %s161 = scalar_lea.vmem %s2, %s160
      %p162 = pneg %p109
      %p163 = pneg %p106
      %p164 = scmp.lt.s32.totalorder %s15, 1
      %s165 = scalar_select %p164, %s15, 1
      %s166 = smul.addr %s165, 2
      %s167 = scalar_lea.vmem %s3, %s166
      %p168 = scmp.lt.s32.totalorder %s15, 1
      %s169 = scalar_select %p168, %s15, 1
      %s170 = smul.addr %s169, 54
      %s171 = smul.addr %s170, 8
      %s172 = scalar_lea.vmem %s0, %s171
      %p173 = scmp.lt.s32.totalorder %s15, 1
      %s174 = scalar_select %p173, %s15, 1
      %s175 = smul.addr %s174, 128
      %s176 = smul.addr %s175, 8
      %s177 = scalar_lea.vmem %s2, %s176
      %p178 = scmp.lt.s32.totalorder %s15, 1
      %s179 = scalar_select %p178, %s15, 1
      %s180 = smul.addr %s179, 2
      %s181 = scalar_lea.vmem %s3, %s180
      %v182 = vld [vmem:[%s172] sm:$0xff]
      %v183 = vld [vmem:[%s172 + $0x8] sm:$0xff]
      %v184 = vld [vmem:[%s172 + $0x10] sm:$0x3]
      %v185 = vld [vmem:[%s172 + $0x18] sm:$0xff]
      %v186 = vld [vmem:[%s172 + $0x20] sm:$0xff]
      %v187 = vld [vmem:[%s172 + $0x28] sm:$0x3]
      %v188 = vld [vmem:[%s172 + $0x30] sm:$0xff]
      %v189 = vld [vmem:[%s172 + $0x38] sm:$0xff]
      %v190 = vld [vmem:[%s172 + $0x40] sm:$0x3]
      %v191 = vld [vmem:[%s172 + $0x48] sm:$0xff]
      %v192 = vld [vmem:[%s172 + $0x50] sm:$0xff]
      %v193 = vld [vmem:[%s172 + $0x58] sm:$0x3]
      %v194 = vld [vmem:[%s172 + $0x60] sm:$0xff]
      %v195 = vld [vmem:[%s172 + $0x68] sm:$0xff]
      %v196 = vld [vmem:[%s172 + $0x70] sm:$0x3]
      %v197 = vld [vmem:[%s172 + $0x78] sm:$0xff]
      %v198 = vld [vmem:[%s172 + $0x80] sm:$0xff]
      %v199 = vld [vmem:[%s172 + $0x88] sm:$0x3]
      %v200 = vld [vmem:[%s172 + $0x90] sm:$0xff]
      %v201 = vld [vmem:[%s172 + $0x98] sm:$0xff]
      %v202 = vld [vmem:[%s172 + $0xa0] sm:$0x3]
      %v203 = vld [vmem:[%s172 + $0xa8] sm:$0xff]
      %v204 = vld [vmem:[%s172 + $0xb0] sm:$0xff]
      %v205 = vld [vmem:[%s172 + $0xb8] sm:$0x3]
      %v206 = vld [vmem:[%s172 + $0xc0] sm:$0xff]
      %v207 = vld [vmem:[%s172 + $0xc8] sm:$0xff]
      %v208 = vld [vmem:[%s172 + $0xd0] sm:$0x3]
      %v209 = vld [vmem:[%s172 + $0xd8] sm:$0xff]
      %v210 = vld [vmem:[%s172 + $0xe0] sm:$0xff]
      %v211 = vld [vmem:[%s172 + $0xe8] sm:$0x3]
      %v212 = vld [vmem:[%s172 + $0xf0] sm:$0xff]
      %v213 = vld [vmem:[%s172 + $0xf8] sm:$0xff]
      %v214 = vld [vmem:[%s172 + $0x100] sm:$0x3]
      %v215 = vld [vmem:[%s172 + $0x108] sm:$0xff]
      %v216 = vld [vmem:[%s172 + $0x110] sm:$0xff]
      %v217 = vld [vmem:[%s172 + $0x118] sm:$0x3]
      %v218 = vld [vmem:[%s172 + $0x120] sm:$0xff]
      %v219 = vld [vmem:[%s172 + $0x128] sm:$0xff]
      %v220 = vld [vmem:[%s172 + $0x130] sm:$0x3]
      %v221 = vld [vmem:[%s172 + $0x138] sm:$0xff]
      %v222 = vld [vmem:[%s172 + $0x140] sm:$0xff]
      %v223 = vld [vmem:[%s172 + $0x148] sm:$0x3]
      %v224 = vld [vmem:[%s172 + $0x150] sm:$0xff]
      %v225 = vld [vmem:[%s172 + $0x158] sm:$0xff]
      %v226 = vld [vmem:[%s172 + $0x160] sm:$0x3]
      %v227 = vld [vmem:[%s172 + $0x168] sm:$0xff]
      %v228 = vld [vmem:[%s172 + $0x170] sm:$0xff]
      %v229 = vld [vmem:[%s172 + $0x178] sm:$0x3]
      %v230 = vld [vmem:[%s172 + $0x180] sm:$0xff]
      %v231 = vld [vmem:[%s172 + $0x188] sm:$0xff]
      %v232 = vld [vmem:[%s172 + $0x190] sm:$0x3]
      %v233 = vld [vmem:[%s172 + $0x198] sm:$0xff]
      %v234 = vld [vmem:[%s172 + $0x1a0] sm:$0xff]
      %v235 = vld [vmem:[%s172 + $0x1a8] sm:$0x3]
      %vm236 = vcmask 31744
      %237 = vst.msk [vmem:[#allocation2] sm:$0xff] %vm236, %v182
      %238 = vst.msk [vmem:[#allocation2 + $0x8] sm:$0xff] %vm236, %v183
      %239 = vst.msk [vmem:[#allocation2 + $0x10] sm:$0xff] %vm236, %v185
      %240 = vst.msk [vmem:[#allocation2 + $0x18] sm:$0xff] %vm236, %v186
      %241 = vst.msk [vmem:[#allocation2 + $0x20] sm:$0xff] %vm236, %v188
      %242 = vst.msk [vmem:[#allocation2 + $0x28] sm:$0xff] %vm236, %v189
      %243 = vst.msk [vmem:[#allocation2 + $0x30] sm:$0xff] %vm236, %v191
      %244 = vst.msk [vmem:[#allocation2 + $0x38] sm:$0xff] %vm236, %v192
      %245 = vst.msk [vmem:[#allocation2 + $0x40] sm:$0xff] %vm236, %v194
      %246 = vst.msk [vmem:[#allocation2 + $0x48] sm:$0xff] %vm236, %v195
      %247 = vst.msk [vmem:[#allocation2 + $0x50] sm:$0xff] %vm236, %v197
      %248 = vst.msk [vmem:[#allocation2 + $0x58] sm:$0xff] %vm236, %v198
      %249 = vst.msk [vmem:[#allocation2 + $0x60] sm:$0xff] %vm236, %v200
      %250 = vst.msk [vmem:[#allocation2 + $0x68] sm:$0xff] %vm236, %v201
      %251 = vst.msk [vmem:[#allocation2 + $0x70] sm:$0xff] %vm236, %v203
      %252 = vst.msk [vmem:[#allocation2 + $0x78] sm:$0xff] %vm236, %v204
      %253 = vst.msk [vmem:[#allocation2 + $0x80] sm:$0xff] %vm236, %v206
      %254 = vst.msk [vmem:[#allocation2 + $0x88] sm:$0xff] %vm236, %v207
      %255 = vst.msk [vmem:[#allocation2 + $0x90] sm:$0xff] %vm236, %v209
      %256 = vst.msk [vmem:[#allocation2 + $0x98] sm:$0xff] %vm236, %v210
      %257 = vst.msk [vmem:[#allocation2 + $0xa0] sm:$0xff] %vm236, %v212
      %258 = vst.msk [vmem:[#allocation2 + $0xa8] sm:$0xff] %vm236, %v213
      %259 = vst.msk [vmem:[#allocation2 + $0xb0] sm:$0xff] %vm236, %v215
      %260 = vst.msk [vmem:[#allocation2 + $0xb8] sm:$0xff] %vm236, %v216
      %261 = vst.msk [vmem:[#allocation2 + $0xc0] sm:$0xff] %vm236, %v218
      %262 = vst.msk [vmem:[#allocation2 + $0xc8] sm:$0xff] %vm236, %v219
      %263 = vst.msk [vmem:[#allocation2 + $0xd0] sm:$0xff] %vm236, %v221
      %264 = vst.msk [vmem:[#allocation2 + $0xd8] sm:$0xff] %vm236, %v222
      %265 = vst.msk [vmem:[#allocation2 + $0xe0] sm:$0xff] %vm236, %v224
      %266 = vst.msk [vmem:[#allocation2 + $0xe8] sm:$0xff] %vm236, %v225
      %267 = vst.msk [vmem:[#allocation2 + $0xf0] sm:$0xff] %vm236, %v227
      %268 = vst.msk [vmem:[#allocation2 + $0xf8] sm:$0xff] %vm236, %v228
      %vm317 = vcmask 1046528
      %v318 = vrot.slane %v182, 1
      %v319 = vrot.slane %v183, 1
      %v320 = vsel %vm317, %v318, %v319
      %v321 = vrot.slane %v184, 1
      %v322 = vsel %vm317, %v319, %v321
      %v323 = vrot.slane %v185, 1
      %v324 = vrot.slane %v186, 1
      %v325 = vsel %vm317, %v323, %v324
      %v326 = vrot.slane %v187, 1
      %v327 = vsel %vm317, %v324, %v326
      %v328 = vrot.slane %v188, 1
      %v329 = vrot.slane %v189, 1
      %v330 = vsel %vm317, %v328, %v329
      %v331 = vrot.slane %v190, 1
      %v332 = vsel %vm317, %v329, %v331
      %v333 = vrot.slane %v191, 1
      %v334 = vrot.slane %v192, 1
      %v335 = vsel %vm317, %v333, %v334
      %v336 = vrot.slane %v193, 1
      %v337 = vsel %vm317, %v334, %v336
      %v338 = vrot.slane %v194, 1
      %v339 = vrot.slane %v195, 1
      %v340 = vsel %vm317, %v338, %v339
      %v341 = vrot.slane %v196, 1
      %v342 = vsel %vm317, %v339, %v341
      %v343 = vrot.slane %v197, 1
      %v344 = vrot.slane %v198, 1
      %v345 = vsel %vm317, %v343, %v344
      %v346 = vrot.slane %v199, 1
      %v347 = vsel %vm317, %v344, %v346
      %v348 = vrot.slane %v200, 1
      %v349 = vrot.slane %v201, 1
      %v350 = vsel %vm317, %v348, %v349
      %v351 = vrot.slane %v202, 1
      %v352 = vsel %vm317, %v349, %v351
      %v353 = vrot.slane %v203, 1
      %v354 = vrot.slane %v204, 1
      %v355 = vsel %vm317, %v353, %v354
      %v356 = vrot.slane %v205, 1
      %v357 = vsel %vm317, %v354, %v356
      %v358 = vrot.slane %v206, 1
      %v359 = vrot.slane %v207, 1
      %v360 = vsel %vm317, %v358, %v359
      %v361 = vrot.slane %v208, 1
      %v362 = vsel %vm317, %v359, %v361
      %v363 = vrot.slane %v209, 1
      %v364 = vrot.slane %v210, 1
      %v365 = vsel %vm317, %v363, %v364
      %v366 = vrot.slane %v211, 1
      %v367 = vsel %vm317, %v364, %v366
      %v368 = vrot.slane %v212, 1
      %v369 = vrot.slane %v213, 1
      %v370 = vsel %vm317, %v368, %v369
      %v371 = vrot.slane %v214, 1
      %v372 = vsel %vm317, %v369, %v371
      %v373 = vrot.slane %v215, 1
      %v374 = vrot.slane %v216, 1
      %v375 = vsel %vm317, %v373, %v374
      %v376 = vrot.slane %v217, 1
      %v377 = vsel %vm317, %v374, %v376
      %v378 = vrot.slane %v218, 1
      %v379 = vrot.slane %v219, 1
      %v380 = vsel %vm317, %v378, %v379
      %v381 = vrot.slane %v220, 1
      %v382 = vsel %vm317, %v379, %v381
      %v383 = vrot.slane %v221, 1
      %v384 = vrot.slane %v222, 1
      %v385 = vsel %vm317, %v383, %v384
      %v386 = vrot.slane %v223, 1
      %v387 = vsel %vm317, %v384, %v386
      %v388 = vrot.slane %v224, 1
      %v389 = vrot.slane %v225, 1
      %v390 = vsel %vm317, %v388, %v389
      %v391 = vrot.slane %v226, 1
      %v392 = vsel %vm317, %v389, %v391
      %v393 = vrot.slane %v227, 1
      %v394 = vrot.slane %v228, 1
      %v395 = vsel %vm317, %v393, %v394
      %v396 = vrot.slane %v229, 1
      %v397 = vsel %vm317, %v394, %v396
      %430 = vrot.lane.b32.xlu0 %v320, 4
      %v431 = vpop.permute.xlu0 %430
      %432 = vrot.lane.b32.xlu0 %v322, 4
      %v433 = vpop.permute.xlu0 %432
      %434 = vrot.lane.b32.xlu0 %v325, 4
      %v435 = vpop.permute.xlu0 %434
      %436 = vrot.lane.b32.xlu0 %v327, 4
      %v437 = vpop.permute.xlu0 %436
      %438 = vrot.lane.b32.xlu0 %v330, 4
      %v439 = vpop.permute.xlu0 %438
      %440 = vrot.lane.b32.xlu0 %v332, 4
      %v441 = vpop.permute.xlu0 %440
      %442 = vrot.lane.b32.xlu0 %v335, 4
      %v443 = vpop.permute.xlu0 %442
      %444 = vrot.lane.b32.xlu0 %v337, 4
      %v445 = vpop.permute.xlu0 %444
      %446 = vrot.lane.b32.xlu0 %v340, 4
      %v447 = vpop.permute.xlu0 %446
      %448 = vrot.lane.b32.xlu0 %v342, 4
      %v449 = vpop.permute.xlu0 %448
      %450 = vrot.lane.b32.xlu0 %v345, 4
      %v451 = vpop.permute.xlu0 %450
      %452 = vrot.lane.b32.xlu0 %v347, 4
      %v453 = vpop.permute.xlu0 %452
      %454 = vrot.lane.b32.xlu0 %v350, 4
      %v455 = vpop.permute.xlu0 %454
      %456 = vrot.lane.b32.xlu0 %v352, 4
      %v457 = vpop.permute.xlu0 %456
      %458 = vrot.lane.b32.xlu0 %v355, 4
      %v459 = vpop.permute.xlu0 %458
      %460 = vrot.lane.b32.xlu0 %v357, 4
      %v461 = vpop.permute.xlu0 %460
      %462 = vrot.lane.b32.xlu0 %v360, 4
      %v463 = vpop.permute.xlu0 %462
      %464 = vrot.lane.b32.xlu0 %v362, 4
      %v465 = vpop.permute.xlu0 %464
      %466 = vrot.lane.b32.xlu0 %v365, 4
      %v467 = vpop.permute.xlu0 %466
      %468 = vrot.lane.b32.xlu0 %v367, 4
      %v469 = vpop.permute.xlu0 %468
      %470 = vrot.lane.b32.xlu0 %v370, 4
      %v471 = vpop.permute.xlu0 %470
      %472 = vrot.lane.b32.xlu0 %v372, 4
      %v473 = vpop.permute.xlu0 %472
      %474 = vrot.lane.b32.xlu0 %v375, 4
      %v475 = vpop.permute.xlu0 %474
      %476 = vrot.lane.b32.xlu0 %v377, 4
      %v477 = vpop.permute.xlu0 %476
      %478 = vrot.lane.b32.xlu0 %v380, 4
      %v479 = vpop.permute.xlu0 %478
      %480 = vrot.lane.b32.xlu0 %v382, 4
      %v481 = vpop.permute.xlu0 %480
      %482 = vrot.lane.b32.xlu0 %v385, 4
      %v483 = vpop.permute.xlu0 %482
      %484 = vrot.lane.b32.xlu0 %v387, 4
      %v485 = vpop.permute.xlu0 %484
      %486 = vrot.lane.b32.xlu0 %v390, 4
      %v487 = vpop.permute.xlu0 %486
      %488 = vrot.lane.b32.xlu0 %v392, 4
      %v489 = vpop.permute.xlu0 %488
      %490 = vrot.lane.b32.xlu0 %v395, 4
      %v491 = vpop.permute.xlu0 %490
      %492 = vrot.lane.b32.xlu0 %v397, 4
      %v493 = vpop.permute.xlu0 %492
      %vm526 = vcmask 64544
      %527 = vst.msk [vmem:[#allocation2] sm:$0xff] %vm526, %v431
      %528 = vst.msk [vmem:[#allocation2 + $0x8] sm:$0xff] %vm526, %v433
      %529 = vst.msk [vmem:[#allocation2 + $0x10] sm:$0xff] %vm526, %v435
      %530 = vst.msk [vmem:[#allocation2 + $0x18] sm:$0xff] %vm526, %v437
      %531 = vst.msk [vmem:[#allocation2 + $0x20] sm:$0xff] %vm526, %v439
      %532 = vst.msk [vmem:[#allocation2 + $0x28] sm:$0xff] %vm526, %v441
      %533 = vst.msk [vmem:[#allocation2 + $0x30] sm:$0xff] %vm526, %v443
      %534 = vst.msk [vmem:[#allocation2 + $0x38] sm:$0xff] %vm526, %v445
      %535 = vst.msk [vmem:[#allocation2 + $0x40] sm:$0xff] %vm526, %v447
      %536 = vst.msk [vmem:[#allocation2 + $0x48] sm:$0xff] %vm526, %v449
      %537 = vst.msk [vmem:[#allocation2 + $0x50] sm:$0xff] %vm526, %v451
      %538 = vst.msk [vmem:[#allocation2 + $0x58] sm:$0xff] %vm526, %v453
      %539 = vst.msk [vmem:[#allocation2 + $0x60] sm:$0xff] %vm526, %v455
      %540 = vst.msk [vmem:[#allocation2 + $0x68] sm:$0xff] %vm526, %v457
      %541 = vst.msk [vmem:[#allocation2 + $0x70] sm:$0xff] %vm526, %v459
      %542 = vst.msk [vmem:[#allocation2 + $0x78] sm:$0xff] %vm526, %v461
      %543 = vst.msk [vmem:[#allocation2 + $0x80] sm:$0xff] %vm526, %v463
      %544 = vst.msk [vmem:[#allocation2 + $0x88] sm:$0xff] %vm526, %v465
      %545 = vst.msk [vmem:[#allocation2 + $0x90] sm:$0xff] %vm526, %v467
      %546 = vst.msk [vmem:[#allocation2 + $0x98] sm:$0xff] %vm526, %v469
      %547 = vst.msk [vmem:[#allocation2 + $0xa0] sm:$0xff] %vm526, %v471
      %548 = vst.msk [vmem:[#allocation2 + $0xa8] sm:$0xff] %vm526, %v473
      %549 = vst.msk [vmem:[#allocation2 + $0xb0] sm:$0xff] %vm526, %v475
      %550 = vst.msk [vmem:[#allocation2 + $0xb8] sm:$0xff] %vm526, %v477
      %551 = vst.msk [vmem:[#allocation2 + $0xc0] sm:$0xff] %vm526, %v479
      %552 = vst.msk [vmem:[#allocation2 + $0xc8] sm:$0xff] %vm526, %v481
      %553 = vst.msk [vmem:[#allocation2 + $0xd0] sm:$0xff] %vm526, %v483
      %554 = vst.msk [vmem:[#allocation2 + $0xd8] sm:$0xff] %vm526, %v485
      %555 = vst.msk [vmem:[#allocation2 + $0xe0] sm:$0xff] %vm526, %v487
      %556 = vst.msk [vmem:[#allocation2 + $0xe8] sm:$0xff] %vm526, %v489
      %557 = vst.msk [vmem:[#allocation2 + $0xf0] sm:$0xff] %vm526, %v491
      %558 = vst.msk [vmem:[#allocation2 + $0xf8] sm:$0xff] %vm526, %v493
      %561 = vrot.lane.b32.xlu0 %v185, 8
      %v562 = vpop.permute.xlu0 %561
      %563 = vrot.lane.b32.xlu0 %v186, 8
      %v564 = vpop.permute.xlu0 %563
      %565 = vrot.lane.b32.xlu0 %v188, 8
      %v566 = vpop.permute.xlu0 %565
      %567 = vrot.lane.b32.xlu0 %v189, 8
      %v568 = vpop.permute.xlu0 %567
      %569 = vrot.lane.b32.xlu0 %v191, 8
      %v570 = vpop.permute.xlu0 %569
      %571 = vrot.lane.b32.xlu0 %v192, 8
      %v572 = vpop.permute.xlu0 %571
      %573 = vrot.lane.b32.xlu0 %v194, 8
      %v574 = vpop.permute.xlu0 %573
      %575 = vrot.lane.b32.xlu0 %v195, 8
      %v576 = vpop.permute.xlu0 %575
      %577 = vrot.lane.b32.xlu0 %v197, 8
      %v578 = vpop.permute.xlu0 %577
      %579 = vrot.lane.b32.xlu0 %v198, 8
      %v580 = vpop.permute.xlu0 %579
      %581 = vrot.lane.b32.xlu0 %v200, 8
      %v582 = vpop.permute.xlu0 %581
      %583 = vrot.lane.b32.xlu0 %v201, 8
      %v584 = vpop.permute.xlu0 %583
      %585 = vrot.lane.b32.xlu0 %v203, 8
      %v586 = vpop.permute.xlu0 %585
      %587 = vrot.lane.b32.xlu0 %v204, 8
      %v588 = vpop.permute.xlu0 %587
      %589 = vrot.lane.b32.xlu0 %v206, 8
      %v590 = vpop.permute.xlu0 %589
      %591 = vrot.lane.b32.xlu0 %v207, 8
      %v592 = vpop.permute.xlu0 %591
      %593 = vrot.lane.b32.xlu0 %v209, 8
      %v594 = vpop.permute.xlu0 %593
      %595 = vrot.lane.b32.xlu0 %v210, 8
      %v596 = vpop.permute.xlu0 %595
      %597 = vrot.lane.b32.xlu0 %v212, 8
      %v598 = vpop.permute.xlu0 %597
      %599 = vrot.lane.b32.xlu0 %v213, 8
      %v600 = vpop.permute.xlu0 %599
      %601 = vrot.lane.b32.xlu0 %v215, 8
      %v602 = vpop.permute.xlu0 %601
      %603 = vrot.lane.b32.xlu0 %v216, 8
      %v604 = vpop.permute.xlu0 %603
      %605 = vrot.lane.b32.xlu0 %v218, 8
      %v606 = vpop.permute.xlu0 %605
      %607 = vrot.lane.b32.xlu0 %v219, 8
      %v608 = vpop.permute.xlu0 %607
      %609 = vrot.lane.b32.xlu0 %v221, 8
      %v610 = vpop.permute.xlu0 %609
      %611 = vrot.lane.b32.xlu0 %v222, 8
      %v612 = vpop.permute.xlu0 %611
      %613 = vrot.lane.b32.xlu0 %v224, 8
      %v614 = vpop.permute.xlu0 %613
      %615 = vrot.lane.b32.xlu0 %v225, 8
      %v616 = vpop.permute.xlu0 %615
      %617 = vrot.lane.b32.xlu0 %v227, 8
      %v618 = vpop.permute.xlu0 %617
      %619 = vrot.lane.b32.xlu0 %v228, 8
      %v620 = vpop.permute.xlu0 %619
      %621 = vrot.lane.b32.xlu0 %v230, 8
      %v622 = vpop.permute.xlu0 %621
      %623 = vrot.lane.b32.xlu0 %v231, 8
      %v624 = vpop.permute.xlu0 %623
      %vm657 = vcmask 97344
      %658 = vst.msk [vmem:[#allocation2] sm:$0xff] %vm657, %v562
      %659 = vst.msk [vmem:[#allocation2 + $0x8] sm:$0xff] %vm657, %v564
      %660 = vst.msk [vmem:[#allocation2 + $0x10] sm:$0xff] %vm657, %v566
      %661 = vst.msk [vmem:[#allocation2 + $0x18] sm:$0xff] %vm657, %v568
      %662 = vst.msk [vmem:[#allocation2 + $0x20] sm:$0xff] %vm657, %v570
      %663 = vst.msk [vmem:[#allocation2 + $0x28] sm:$0xff] %vm657, %v572
      %664 = vst.msk [vmem:[#allocation2 + $0x30] sm:$0xff] %vm657, %v574
      %665 = vst.msk [vmem:[#allocation2 + $0x38] sm:$0xff] %vm657, %v576
      %666 = vst.msk [vmem:[#allocation2 + $0x40] sm:$0xff] %vm657, %v578
      %667 = vst.msk [vmem:[#allocation2 + $0x48] sm:$0xff] %vm657, %v580
      %668 = vst.msk [vmem:[#allocation2 + $0x50] sm:$0xff] %vm657, %v582
      %669 = vst.msk [vmem:[#allocation2 + $0x58] sm:$0xff] %vm657, %v584
      %670 = vst.msk [vmem:[#allocation2 + $0x60] sm:$0xff] %vm657, %v586
      %671 = vst.msk [vmem:[#allocation2 + $0x68] sm:$0xff] %vm657, %v588
      %672 = vst.msk [vmem:[#allocation2 + $0x70] sm:$0xff] %vm657, %v590
      %673 = vst.msk [vmem:[#allocation2 + $0x78] sm:$0xff] %vm657, %v592
      %674 = vst.msk [vmem:[#allocation2 + $0x80] sm:$0xff] %vm657, %v594
      %675 = vst.msk [vmem:[#allocation2 + $0x88] sm:$0xff] %vm657, %v596
      %676 = vst.msk [vmem:[#allocation2 + $0x90] sm:$0xff] %vm657, %v598
      %677 = vst.msk [vmem:[#allocation2 + $0x98] sm:$0xff] %vm657, %v600
      %678 = vst.msk [vmem:[#allocation2 + $0xa0] sm:$0xff] %vm657, %v602
      %679 = vst.msk [vmem:[#allocation2 + $0xa8] sm:$0xff] %vm657, %v604
      %680 = vst.msk [vmem:[#allocation2 + $0xb0] sm:$0xff] %vm657, %v606
      %681 = vst.msk [vmem:[#allocation2 + $0xb8] sm:$0xff] %vm657, %v608
      %682 = vst.msk [vmem:[#allocation2 + $0xc0] sm:$0xff] %vm657, %v610
      %683 = vst.msk [vmem:[#allocation2 + $0xc8] sm:$0xff] %vm657, %v612
      %684 = vst.msk [vmem:[#allocation2 + $0xd0] sm:$0xff] %vm657, %v614
      %685 = vst.msk [vmem:[#allocation2 + $0xd8] sm:$0xff] %vm657, %v616
      %686 = vst.msk [vmem:[#allocation2 + $0xe0] sm:$0xff] %vm657, %v618
      %687 = vst.msk [vmem:[#allocation2 + $0xe8] sm:$0xff] %vm657, %v620
      %688 = vst.msk [vmem:[#allocation2 + $0xf0] sm:$0xff] %vm657, %v622
      %689 = vst.msk [vmem:[#allocation2 + $0xf8] sm:$0xff] %vm657, %v624
      %v691 = vrot.slane %v230, 1
      %v692 = vrot.slane %v231, 1
      %v693 = vsel %vm317, %v691, %v692
      %v694 = vrot.slane %v232, 1
      %v695 = vsel %vm317, %v692, %v694
      %698 = vrot.lane.b32.xlu0 %v325, 12
      %v699 = vpop.permute.xlu0 %698
      %700 = vrot.lane.b32.xlu0 %v327, 12
      %v701 = vpop.permute.xlu0 %700
      %702 = vrot.lane.b32.xlu0 %v330, 12
      %v703 = vpop.permute.xlu0 %702
      %704 = vrot.lane.b32.xlu0 %v332, 12
      %v705 = vpop.permute.xlu0 %704
      %706 = vrot.lane.b32.xlu0 %v335, 12
      %v707 = vpop.permute.xlu0 %706
      %708 = vrot.lane.b32.xlu0 %v337, 12
      %v709 = vpop.permute.xlu0 %708
      %710 = vrot.lane.b32.xlu0 %v340, 12
      %v711 = vpop.permute.xlu0 %710
      %712 = vrot.lane.b32.xlu0 %v342, 12
      %v713 = vpop.permute.xlu0 %712
      %714 = vrot.lane.b32.xlu0 %v345, 12
      %v715 = vpop.permute.xlu0 %714
      %716 = vrot.lane.b32.xlu0 %v347, 12
      %v717 = vpop.permute.xlu0 %716
      %718 = vrot.lane.b32.xlu0 %v350, 12
      %v719 = vpop.permute.xlu0 %718
      %720 = vrot.lane.b32.xlu0 %v352, 12
      %v721 = vpop.permute.xlu0 %720
      %722 = vrot.lane.b32.xlu0 %v355, 12
      %v723 = vpop.permute.xlu0 %722
      %724 = vrot.lane.b32.xlu0 %v357, 12
      %v725 = vpop.permute.xlu0 %724
      %726 = vrot.lane.b32.xlu0 %v360, 12
      %v727 = vpop.permute.xlu0 %726
      %728 = vrot.lane.b32.xlu0 %v362, 12
      %v729 = vpop.permute.xlu0 %728
      %730 = vrot.lane.b32.xlu0 %v365, 12
      %v731 = vpop.permute.xlu0 %730
      %732 = vrot.lane.b32.xlu0 %v367, 12
      %v733 = vpop.permute.xlu0 %732
      %734 = vrot.lane.b32.xlu0 %v370, 12
      %v735 = vpop.permute.xlu0 %734
      %736 = vrot.lane.b32.xlu0 %v372, 12
      %v737 = vpop.permute.xlu0 %736
      %738 = vrot.lane.b32.xlu0 %v375, 12
      %v739 = vpop.permute.xlu0 %738
      %740 = vrot.lane.b32.xlu0 %v377, 12
      %v741 = vpop.permute.xlu0 %740
      %742 = vrot.lane.b32.xlu0 %v380, 12
      %v743 = vpop.permute.xlu0 %742
      %744 = vrot.lane.b32.xlu0 %v382, 12
      %v745 = vpop.permute.xlu0 %744
      %746 = vrot.lane.b32.xlu0 %v385, 12
      %v747 = vpop.permute.xlu0 %746
      %748 = vrot.lane.b32.xlu0 %v387, 12
      %v749 = vpop.permute.xlu0 %748
      %750 = vrot.lane.b32.xlu0 %v390, 12
      %v751 = vpop.permute.xlu0 %750
      %752 = vrot.lane.b32.xlu0 %v392, 12
      %v753 = vpop.permute.xlu0 %752
      %754 = vrot.lane.b32.xlu0 %v395, 12
      %v755 = vpop.permute.xlu0 %754
      %756 = vrot.lane.b32.xlu0 %v397, 12
      %v757 = vpop.permute.xlu0 %756
      %758 = vrot.lane.b32.xlu0 %v693, 12
      %v759 = vpop.permute.xlu0 %758
      %760 = vrot.lane.b32.xlu0 %v695, 12
      %v761 = vpop.permute.xlu0 %760
      %vm794 = vcmask 130144
      %795 = vst.msk [vmem:[#allocation2] sm:$0xff] %vm794, %v699
      %796 = vst.msk [vmem:[#allocation2 + $0x8] sm:$0xff] %vm794, %v701
      %797 = vst.msk [vmem:[#allocation2 + $0x10] sm:$0xff] %vm794, %v703
      %798 = vst.msk [vmem:[#allocation2 + $0x18] sm:$0xff] %vm794, %v705
      %799 = vst.msk [vmem:[#allocation2 + $0x20] sm:$0xff] %vm794, %v707
      %800 = vst.msk [vmem:[#allocation2 + $0x28] sm:$0xff] %vm794, %v709
      %801 = vst.msk [vmem:[#allocation2 + $0x30] sm:$0xff] %vm794, %v711
      %802 = vst.msk [vmem:[#allocation2 + $0x38] sm:$0xff] %vm794, %v713
      %803 = vst.msk [vmem:[#allocation2 + $0x40] sm:$0xff] %vm794, %v715
      %804 = vst.msk [vmem:[#allocation2 + $0x48] sm:$0xff] %vm794, %v717
      %805 = vst.msk [vmem:[#allocation2 + $0x50] sm:$0xff] %vm794, %v719
      %806 = vst.msk [vmem:[#allocation2 + $0x58] sm:$0xff] %vm794, %v721
      %807 = vst.msk [vmem:[#allocation2 + $0x60] sm:$0xff] %vm794, %v723
      %808 = vst.msk [vmem:[#allocation2 + $0x68] sm:$0xff] %vm794, %v725
      %809 = vst.msk [vmem:[#allocation2 + $0x70] sm:$0xff] %vm794, %v727
      %810 = vst.msk [vmem:[#allocation2 + $0x78] sm:$0xff] %vm794, %v729
      %811 = vst.msk [vmem:[#allocation2 + $0x80] sm:$0xff] %vm794, %v731
      %812 = vst.msk [vmem:[#allocation2 + $0x88] sm:$0xff] %vm794, %v733
      %813 = vst.msk [vmem:[#allocation2 + $0x90] sm:$0xff] %vm794, %v735
      %814 = vst.msk [vmem:[#allocation2 + $0x98] sm:$0xff] %vm794, %v737
      %815 = vst.msk [vmem:[#allocation2 + $0xa0] sm:$0xff] %vm794, %v739
      %816 = vst.msk [vmem:[#allocation2 + $0xa8] sm:$0xff] %vm794, %v741
      %817 = vst.msk [vmem:[#allocation2 + $0xb0] sm:$0xff] %vm794, %v743
      %818 = vst.msk [vmem:[#allocation2 + $0xb8] sm:$0xff] %vm794, %v745
      %819 = vst.msk [vmem:[#allocation2 + $0xc0] sm:$0xff] %vm794, %v747
      %820 = vst.msk [vmem:[#allocation2 + $0xc8] sm:$0xff] %vm794, %v749
      %821 = vst.msk [vmem:[#allocation2 + $0xd0] sm:$0xff] %vm794, %v751
      %822 = vst.msk [vmem:[#allocation2 + $0xd8] sm:$0xff] %vm794, %v753
      %823 = vst.msk [vmem:[#allocation2 + $0xe0] sm:$0xff] %vm794, %v755
      %824 = vst.msk [vmem:[#allocation2 + $0xe8] sm:$0xff] %vm794, %v757
      %825 = vst.msk [vmem:[#allocation2 + $0xf0] sm:$0xff] %vm794, %v759
      %826 = vst.msk [vmem:[#allocation2 + $0xf8] sm:$0xff] %vm794, %v761
      %v827 = vld [vmem:[#allocation2] sm:$0xff]
      %v828 = vld [vmem:[#allocation2 + $0x8] sm:$0xff]
      %v829 = vld [vmem:[#allocation2 + $0x10] sm:$0xff]
      %v830 = vld [vmem:[#allocation2 + $0x18] sm:$0xff]
      %v831 = vld [vmem:[#allocation2 + $0x20] sm:$0xff]
      %v832 = vld [vmem:[#allocation2 + $0x28] sm:$0xff]
      %v833 = vld [vmem:[#allocation2 + $0x30] sm:$0xff]
      %v834 = vld [vmem:[#allocation2 + $0x38] sm:$0xff]
      %v835 = vld [vmem:[#allocation2 + $0x40] sm:$0xff]
      %v836 = vld [vmem:[#allocation2 + $0x48] sm:$0xff]
      %v837 = vld [vmem:[#allocation2 + $0x50] sm:$0xff]
      %v838 = vld [vmem:[#allocation2 + $0x58] sm:$0xff]
      %v839 = vld [vmem:[#allocation2 + $0x60] sm:$0xff]
      %v840 = vld [vmem:[#allocation2 + $0x68] sm:$0xff]
      %v841 = vld [vmem:[#allocation2 + $0x70] sm:$0xff]
      %v842 = vld [vmem:[#allocation2 + $0x78] sm:$0xff]
      %v843 = vld [vmem:[#allocation2 + $0x80] sm:$0xff]
      %v844 = vld [vmem:[#allocation2 + $0x88] sm:$0xff]
      %v845 = vld [vmem:[#allocation2 + $0x90] sm:$0xff]
      %v846 = vld [vmem:[#allocation2 + $0x98] sm:$0xff]
      %v847 = vld [vmem:[#allocation2 + $0xa0] sm:$0xff]
      %v848 = vld [vmem:[#allocation2 + $0xa8] sm:$0xff]
      %v849 = vld [vmem:[#allocation2 + $0xb0] sm:$0xff]
      %v850 = vld [vmem:[#allocation2 + $0xb8] sm:$0xff]
      %v851 = vld [vmem:[#allocation2 + $0xc0] sm:$0xff]
      %v852 = vld [vmem:[#allocation2 + $0xc8] sm:$0xff]
      %v853 = vld [vmem:[#allocation2 + $0xd0] sm:$0xff]
      %v854 = vld [vmem:[#allocation2 + $0xd8] sm:$0xff]
      %v855 = vld [vmem:[#allocation2 + $0xe0] sm:$0xff]
      %v856 = vld [vmem:[#allocation2 + $0xe8] sm:$0xff]
      %v857 = vld [vmem:[#allocation2 + $0xf0] sm:$0xff]
      %v858 = vld [vmem:[#allocation2 + $0xf8] sm:$0xff]
      %v859 = vld [vmem:[%s1] sm:$0xff]
      %v860 = vld [vmem:[%s1 + $0x8] sm:$0xff]
      %vm861 = vcmask 130048
      %v863 = vsel %vm861, %v827, 0
      %v866 = vsel %vm861, %v828, 0
      %v869 = vsel %vm861, %v829, 0
      %v872 = vsel %vm861, %v830, 0
      %v875 = vsel %vm861, %v831, 0
      %v878 = vsel %vm861, %v832, 0
      %v881 = vsel %vm861, %v833, 0
      %v884 = vsel %vm861, %v834, 0
      %v887 = vsel %vm861, %v835, 0
      %v890 = vsel %vm861, %v836, 0
      %v893 = vsel %vm861, %v837, 0
      %v896 = vsel %vm861, %v838, 0
      %v899 = vsel %vm861, %v839, 0
      %v902 = vsel %vm861, %v840, 0
      %v905 = vsel %vm861, %v841, 0
      %v908 = vsel %vm861, %v842, 0
      %v911 = vsel %vm861, %v843, 0
      %v914 = vsel %vm861, %v844, 0
      %v917 = vsel %vm861, %v845, 0
      %v920 = vsel %vm861, %v846, 0
      %v923 = vsel %vm861, %v847, 0
      %v926 = vsel %vm861, %v848, 0
      %v929 = vsel %vm861, %v849, 0
      %v932 = vsel %vm861, %v850, 0
      %v935 = vsel %vm861, %v851, 0
      %v938 = vsel %vm861, %v852, 0
      %v941 = vsel %vm861, %v853, 0
      %v944 = vsel %vm861, %v854, 0
      %v947 = vsel %vm861, %v855, 0
      %v950 = vsel %vm861, %v856, 0
      %v953 = vsel %vm861, %v857, 0
      %v956 = vsel %vm861, %v858, 0
      %958 = vmatprep.subr.mxu0 0.0
      %959 = vmatpush1.msra.mxu0 %v859
      %960 = vmatprep.subr.mxu0 0.0
      %961 = vmatpush1.msra.mxu0 %v860
      %962 = vmatprep.subr.mxu0 0.0
      %963 = vmatpush1.msra.mxu0 0.0
      %964 = vmatprep.subr.mxu0 0.0
      %965 = vmatpush1.msra.mxu0 0.0
      %966 = vmatprep.subr.mxu0 0.0
      %967 = vmatpush1.msra.mxu0 0.0
      %968 = vmatprep.subr.mxu0 0.0
      %969 = vmatpush1.msra.mxu0 0.0
      %970 = vmatprep.subr.mxu0 0.0
      %971 = vmatpush1.msra.mxu0 0.0
      %972 = vmatprep.subr.mxu0 0.0
      %973 = vmatpush1.msra.mxu0 0.0
      %974 = vmatprep.subr.mxu0 0.0
      %975 = vmatpush1.msra.mxu0 0.0
      %976 = vmatprep.subr.mxu0 0.0
      %977 = vmatpush1.msra.mxu0 0.0
      %978 = vmatprep.subr.mxu0 0.0
      %979 = vmatpush1.msra.mxu0 0.0
      %980 = vmatprep.subr.mxu0 0.0
      %981 = vmatpush1.msra.mxu0 0.0
      %982 = vmatprep.subr.mxu0 0.0
      %983 = vmatpush1.msra.mxu0 0.0
      %984 = vmatprep.subr.mxu0 0.0
      %985 = vmatpush1.msra.mxu0 0.0
      %986 = vmatprep.subr.mxu0 0.0
      %987 = vmatpush1.msra.mxu0 0.0
      %988 = vmatprep.subr.mxu0 0.0
      %989 = vmatpush1.msra.mxu0 0.0
      %990 = vmatprep.subr.mxu0 0.0
      %991 = vmatpush1.msra.mxu0 0.0
      %992 = vmatprep.subr.mxu0 0.0
      %993 = vmatpush1.msra.mxu0 0.0
      %994 = vmatprep.subr.mxu0 0.0
      %995 = vmatpush1.msra.mxu0 0.0
      %996 = vmatprep.subr.mxu0 0.0
      %997 = vmatpush1.msra.mxu0 0.0
      %998 = vmatprep.subr.mxu0 0.0
      %999 = vmatpush1.msra.mxu0 0.0
      %1000 = vmatprep.subr.mxu0 0.0
      %1001 = vmatpush1.msra.mxu0 0.0
      %1002 = vmatprep.subr.mxu0 0.0
      %1003 = vmatpush1.msra.mxu0 0.0
      %1004 = vmatprep.subr.mxu0 0.0
      %1005 = vmatpush1.msra.mxu0 0.0
      %1006 = vmatprep.subr.mxu0 0.0
      %1007 = vmatpush1.msra.mxu0 0.0
      %1008 = vmatprep.subr.mxu0 0.0
      %1009 = vmatpush1.msra.mxu0 0.0
      %1010 = vmatprep.subr.mxu0 0.0
      %1011 = vmatpush1.msra.mxu0 0.0
      %1012 = vmatprep.subr.mxu0 0.0
      %1013 = vmatpush1.msra.mxu0 0.0
      %1014 = vmatprep.subr.mxu0 0.0
      %1015 = vmatpush1.msra.mxu0 0.0
      %1016 = vmatprep.subr.mxu0 0.0
      %1017 = vmatpush1.msra.mxu0 0.0
      %1018 = vmatprep.subr.mxu0 0.0
      %1019 = vmatpush1.msra.mxu0 0.0
      %1020 = vmatprep.subr.mxu0 0.0
      %1021 = vmatpush1.msra.mxu0 0.0
      %1022 = vmatprep.mubr.f32.mxu0 0.0
      %1023 = vmatmul.mubr.f32.gmra.mrb[0].mxu0 %v863
      %v1024 = vpop.f32.mrb[0].mxu0
      %v1025 = vadd.f32 0.0, %v1024
      %v1026 = vpop.f32.mrb[0].mxu0
      %1027 = vmatprep.mubr.f32.mxu0 0.0
      %1028 = vmatmul.mubr.f32.gmra.mrb[0].mxu0 %v866
      %v1029 = vpop.f32.mrb[0].mxu0
      %v1030 = vadd.f32 0.0, %v1029
      %v1031 = vpop.f32.mrb[0].mxu0
      %1032 = vmatprep.mubr.f32.mxu0 0.0
      %1033 = vmatmul.mubr.f32.gmra.mrb[0].mxu0 %v869
      %v1034 = vpop.f32.mrb[0].mxu0
      %v1035 = vadd.f32 0.0, %v1034
      %v1036 = vpop.f32.mrb[0].mxu0
      %1037 = vmatprep.mubr.f32.mxu0 0.0
      %1038 = vmatmul.mubr.f32.gmra.mrb[0].mxu0 %v872
      %v1039 = vpop.f32.mrb[0].mxu0
      %v1040 = vadd.f32 0.0, %v1039
      %v1041 = vpop.f32.mrb[0].mxu0
      %1042 = vmatprep.mubr.f32.mxu0 0.0
      %1043 = vmatmul.mubr.f32.gmra.mrb[0].mxu0 %v875
      %v1044 = vpop.f32.mrb[0].mxu0
      %v1045 = vadd.f32 0.0, %v1044
      %v1046 = vpop.f32.mrb[0].mxu0
      %1047 = vmatprep.mubr.f32.mxu0 0.0
      %1048 = vmatmul.mubr.f32.gmra.mrb[0].mxu0 %v878
      %v1049 = vpop.f32.mrb[0].mxu0
      %v1050 = vadd.f32 0.0, %v1049
      %v1051 = vpop.f32.mrb[0].mxu0
      %1052 = vmatprep.mubr.f32.mxu0 0.0
      %1053 = vmatmul.mubr.f32.gmra.mrb[0].mxu0 %v881
      %v1054 = vpop.f32.mrb[0].mxu0
      %v1055 = vadd.f32 0.0, %v1054
      %v1056 = vpop.f32.mrb[0].mxu0
      %1057 = vmatprep.mubr.f32.mxu0 0.0
      %1058 = vmatmul.mubr.f32.gmra.mrb[0].mxu0 %v884
      %v1059 = vpop.f32.mrb[0].mxu0
      %v1060 = vadd.f32 0.0, %v1059
      %v1061 = vpop.f32.mrb[0].mxu0
      %1062 = vmatprep.mubr.f32.mxu0 0.0
      %1063 = vmatmul.mubr.f32.gmra.mrb[0].mxu0 %v887
      %v1064 = vpop.f32.mrb[0].mxu0
      %v1065 = vadd.f32 0.0, %v1064
      %v1066 = vpop.f32.mrb[0].mxu0
      %1067 = vmatprep.mubr.f32.mxu0 0.0
      %1068 = vmatmul.mubr.f32.gmra.mrb[0].mxu0 %v890
      %v1069 = vpop.f32.mrb[0].mxu0
      %v1070 = vadd.f32 0.0, %v1069
      %v1071 = vpop.f32.mrb[0].mxu0
      %1072 = vmatprep.mubr.f32.mxu0 0.0
      %1073 = vmatmul.mubr.f32.gmra.mrb[0].mxu0 %v893
      %v1074 = vpop.f32.mrb[0].mxu0
      %v1075 = vadd.f32 0.0, %v1074
      %v1076 = vpop.f32.mrb[0].mxu0
      %1077 = vmatprep.mubr.f32.mxu0 0.0
      %1078 = vmatmul.mubr.f32.gmra.mrb[0].mxu0 %v896
      %v1079 = vpop.f32.mrb[0].mxu0
      %v1080 = vadd.f32 0.0, %v1079
      %v1081 = vpop.f32.mrb[0].mxu0
      %1082 = vmatprep.mubr.f32.mxu0 0.0
      %1083 = vmatmul.mubr.f32.gmra.mrb[0].mxu0 %v899
      %v1084 = vpop.f32.mrb[0].mxu0
      %v1085 = vadd.f32 0.0, %v1084
      %v1086 = vpop.f32.mrb[0].mxu0
      %1087 = vmatprep.mubr.f32.mxu0 0.0
      %1088 = vmatmul.mubr.f32.gmra.mrb[0].mxu0 %v902
      %v1089 = vpop.f32.mrb[0].mxu0
      %v1090 = vadd.f32 0.0, %v1089
      %v1091 = vpop.f32.mrb[0].mxu0
      %1092 = vmatprep.mubr.f32.mxu0 0.0
      %1093 = vmatmul.mubr.f32.gmra.mrb[0].mxu0 %v905
      %v1094 = vpop.f32.mrb[0].mxu0
      %v1095 = vadd.f32 0.0, %v1094
      %v1096 = vpop.f32.mrb[0].mxu0
      %1097 = vmatprep.mubr.f32.mxu0 0.0
      %1098 = vmatmul.mubr.f32.gmra.mrb[0].mxu0 %v908
      %v1099 = vpop.f32.mrb[0].mxu0
      %v1100 = vadd.f32 0.0, %v1099
      %v1101 = vpop.f32.mrb[0].mxu0
      %1102 = vmatprep.mubr.f32.mxu0 0.0
      %1103 = vmatmul.mubr.f32.gmra.mrb[0].mxu0 %v911
      %v1104 = vpop.f32.mrb[0].mxu0
      %v1105 = vadd.f32 0.0, %v1104
      %v1106 = vpop.f32.mrb[0].mxu0
      %1107 = vmatprep.mubr.f32.mxu0 0.0
      %1108 = vmatmul.mubr.f32.gmra.mrb[0].mxu0 %v914
      %v1109 = vpop.f32.mrb[0].mxu0
      %v1110 = vadd.f32 0.0, %v1109
      %v1111 = vpop.f32.mrb[0].mxu0
      %1112 = vmatprep.mubr.f32.mxu0 0.0
      %1113 = vmatmul.mubr.f32.gmra.mrb[0].mxu0 %v917
      %v1114 = vpop.f32.mrb[0].mxu0
      %v1115 = vadd.f32 0.0, %v1114
      %v1116 = vpop.f32.mrb[0].mxu0
      %1117 = vmatprep.mubr.f32.mxu0 0.0
      %1118 = vmatmul.mubr.f32.gmra.mrb[0].mxu0 %v920
      %v1119 = vpop.f32.mrb[0].mxu0
      %v1120 = vadd.f32 0.0, %v1119
      %v1121 = vpop.f32.mrb[0].mxu0
      %1122 = vmatprep.mubr.f32.mxu0 0.0
      %1123 = vmatmul.mubr.f32.gmra.mrb[0].mxu0 %v923
      %v1124 = vpop.f32.mrb[0].mxu0
      %v1125 = vadd.f32 0.0, %v1124
      %v1126 = vpop.f32.mrb[0].mxu0
      %1127 = vmatprep.mubr.f32.mxu0 0.0
      %1128 = vmatmul.mubr.f32.gmra.mrb[0].mxu0 %v926
      %v1129 = vpop.f32.mrb[0].mxu0
      %v1130 = vadd.f32 0.0, %v1129
      %v1131 = vpop.f32.mrb[0].mxu0
      %1132 = vmatprep.mubr.f32.mxu0 0.0
      %1133 = vmatmul.mubr.f32.gmra.mrb[0].mxu0 %v929
      %v1134 = vpop.f32.mrb[0].mxu0
      %v1135 = vadd.f32 0.0, %v1134
      %v1136 = vpop.f32.mrb[0].mxu0
      %1137 = vmatprep.mubr.f32.mxu0 0.0
      %1138 = vmatmul.mubr.f32.gmra.mrb[0].mxu0 %v932
      %v1139 = vpop.f32.mrb[0].mxu0
      %v1140 = vadd.f32 0.0, %v1139
      %v1141 = vpop.f32.mrb[0].mxu0
      %1142 = vmatprep.mubr.f32.mxu0 0.0
      %1143 = vmatmul.mubr.f32.gmra.mrb[0].mxu0 %v935
      %v1144 = vpop.f32.mrb[0].mxu0
      %v1145 = vadd.f32 0.0, %v1144
      %v1146 = vpop.f32.mrb[0].mxu0
      %1147 = vmatprep.mubr.f32.mxu0 0.0
      %1148 = vmatmul.mubr.f32.gmra.mrb[0].mxu0 %v938
      %v1149 = vpop.f32.mrb[0].mxu0
      %v1150 = vadd.f32 0.0, %v1149
      %v1151 = vpop.f32.mrb[0].mxu0
      %1152 = vmatprep.mubr.f32.mxu0 0.0
      %1153 = vmatmul.mubr.f32.gmra.mrb[0].mxu0 %v941
      %v1154 = vpop.f32.mrb[0].mxu0
      %v1155 = vadd.f32 0.0, %v1154
      %v1156 = vpop.f32.mrb[0].mxu0
      %1157 = vmatprep.mubr.f32.mxu0 0.0
      %1158 = vmatmul.mubr.f32.gmra.mrb[0].mxu0 %v944
      %v1159 = vpop.f32.mrb[0].mxu0
      %v1160 = vadd.f32 0.0, %v1159
      %v1161 = vpop.f32.mrb[0].mxu0
      %1162 = vmatprep.mubr.f32.mxu0 0.0
      %1163 = vmatmul.mubr.f32.gmra.mrb[0].mxu0 %v947
      %v1164 = vpop.f32.mrb[0].mxu0
      %v1165 = vadd.f32 0.0, %v1164
      %v1166 = vpop.f32.mrb[0].mxu0
      %1167 = vmatprep.mubr.f32.mxu0 0.0
      %1168 = vmatmul.mubr.f32.gmra.mrb[0].mxu0 %v950
      %v1169 = vpop.f32.mrb[0].mxu0
      %v1170 = vadd.f32 0.0, %v1169
      %v1171 = vpop.f32.mrb[0].mxu0
      %1172 = vmatprep.mubr.f32.mxu0 0.0
      %1173 = vmatmul.mubr.f32.gmra.mrb[0].mxu0 %v953
      %v1174 = vpop.f32.mrb[0].mxu0
      %v1175 = vadd.f32 0.0, %v1174
      %v1176 = vpop.f32.mrb[0].mxu0
      %1177 = vmatprep.mubr.f32.mxu0 0.0
      %1178 = vmatmul.mubr.f32.gmra.mrb[0].mxu0 %v956
      %v1179 = vpop.f32.mrb[0].mxu0
      %v1180 = vadd.f32 0.0, %v1179
      %v1181 = vpop.f32.mrb[0].mxu0
      %1182 = vdwg.mxu0
      %v1183 = vadd.f32 %v1025, %v1030
      %v1184 = vadd.f32 %v1183, %v1035
      %v1185 = vadd.f32 %v1184, %v1040
      %v1186 = vadd.f32 %v1185, %v1045
      %v1187 = vadd.f32 %v1186, %v1050
      %v1188 = vadd.f32 %v1187, %v1055
      %v1189 = vadd.f32 %v1188, %v1060
      %v1190 = vadd.f32 %v1189, %v1065
      %v1191 = vadd.f32 %v1190, %v1070
      %v1192 = vadd.f32 %v1191, %v1075
      %v1193 = vadd.f32 %v1192, %v1080
      %v1194 = vadd.f32 %v1193, %v1085
      %v1195 = vadd.f32 %v1194, %v1090
      %v1196 = vadd.f32 %v1195, %v1095
      %v1197 = vadd.f32 %v1196, %v1100
      %v1198 = vadd.f32 %v1197, %v1105
      %v1199 = vadd.f32 %v1198, %v1110
      %v1200 = vadd.f32 %v1199, %v1115
      %v1201 = vadd.f32 %v1200, %v1120
      %v1202 = vadd.f32 %v1201, %v1125
      %v1203 = vadd.f32 %v1202, %v1130
      %v1204 = vadd.f32 %v1203, %v1135
      %v1205 = vadd.f32 %v1204, %v1140
      %v1206 = vadd.f32 %v1205, %v1145
      %v1207 = vadd.f32 %v1206, %v1150
      %v1208 = vadd.f32 %v1207, %v1155
      %v1209 = vadd.f32 %v1208, %v1160
      %v1210 = vadd.f32 %v1209, %v1165
      %v1211 = vadd.f32 %v1210, %v1170
      %v1212 = vadd.f32 %v1211, %v1175
      %v1213 = vadd.f32 %v1212, %v1180
      %v1214 = vrot.slane %v1213, 4
      %v1215 = vadd.f32 %v1213, %v1214
      %v1216 = vrot.slane %v1215, 2
      %v1217 = vadd.f32 %v1215, %v1216
      %v1218 = vrot.slane %v1217, 1
      %v1219 = vadd.f32 %v1217, %v1218
      %v1220 = vadd.f32 %v1219, 0.0
      %v1221 = vmul.f32 %v1025, %v1025
      %v1222 = vmul.f32 %v1030, %v1030
      %v1223 = vmul.f32 %v1035, %v1035
      %v1224 = vmul.f32 %v1040, %v1040
      %v1225 = vmul.f32 %v1045, %v1045
      %v1226 = vmul.f32 %v1050, %v1050
      %v1227 = vmul.f32 %v1055, %v1055
      %v1228 = vmul.f32 %v1060, %v1060
      %v1229 = vmul.f32 %v1065, %v1065
      %v1230 = vmul.f32 %v1070, %v1070
      %v1231 = vmul.f32 %v1075, %v1075
      %v1232 = vmul.f32 %v1080, %v1080
      %v1233 = vmul.f32 %v1085, %v1085
      %v1234 = vmul.f32 %v1090, %v1090
      %v1235 = vmul.f32 %v1095, %v1095
      %v1236 = vmul.f32 %v1100, %v1100
      %v1237 = vmul.f32 %v1105, %v1105
      %v1238 = vmul.f32 %v1110, %v1110
      %v1239 = vmul.f32 %v1115, %v1115
      %v1240 = vmul.f32 %v1120, %v1120
      %v1241 = vmul.f32 %v1125, %v1125
      %v1242 = vmul.f32 %v1130, %v1130
      %v1243 = vmul.f32 %v1135, %v1135
      %v1244 = vmul.f32 %v1140, %v1140
      %v1245 = vmul.f32 %v1145, %v1145
      %v1246 = vmul.f32 %v1150, %v1150
      %v1247 = vmul.f32 %v1155, %v1155
      %v1248 = vmul.f32 %v1160, %v1160
      %v1249 = vmul.f32 %v1165, %v1165
      %v1250 = vmul.f32 %v1170, %v1170
      %v1251 = vmul.f32 %v1175, %v1175
      %v1252 = vmul.f32 %v1180, %v1180
      %v1253 = vadd.f32 %v1221, %v1222
      %v1254 = vadd.f32 %v1253, %v1223
      %v1255 = vadd.f32 %v1254, %v1224
      %v1256 = vadd.f32 %v1255, %v1225
      %v1257 = vadd.f32 %v1256, %v1226
      %v1258 = vadd.f32 %v1257, %v1227
      %v1259 = vadd.f32 %v1258, %v1228
      %v1260 = vadd.f32 %v1259, %v1229
      %v1261 = vadd.f32 %v1260, %v1230
      %v1262 = vadd.f32 %v1261, %v1231
      %v1263 = vadd.f32 %v1262, %v1232
      %v1264 = vadd.f32 %v1263, %v1233
      %v1265 = vadd.f32 %v1264, %v1234
      %v1266 = vadd.f32 %v1265, %v1235
      %v1267 = vadd.f32 %v1266, %v1236
      %v1268 = vadd.f32 %v1267, %v1237
      %v1269 = vadd.f32 %v1268, %v1238
      %v1270 = vadd.f32 %v1269, %v1239
      %v1271 = vadd.f32 %v1270, %v1240
      %v1272 = vadd.f32 %v1271, %v1241
      %v1273 = vadd.f32 %v1272, %v1242
      %v1274 = vadd.f32 %v1273, %v1243
      %v1275 = vadd.f32 %v1274, %v1244
      %v1276 = vadd.f32 %v1275, %v1245
      %v1277 = vadd.f32 %v1276, %v1246
      %v1278 = vadd.f32 %v1277, %v1247
      %v1279 = vadd.f32 %v1278, %v1248
      %v1280 = vadd.f32 %v1279, %v1249
      %v1281 = vadd.f32 %v1280, %v1250
      %v1282 = vadd.f32 %v1281, %v1251
      %v1283 = vadd.f32 %v1282, %v1252
      %v1284 = vrot.slane %v1283, 4
      %v1285 = vadd.f32 %v1283, %v1284
      %v1286 = vrot.slane %v1285, 2
      %v1287 = vadd.f32 %v1285, %v1286
      %v1288 = vrot.slane %v1287, 1
      %v1289 = vadd.f32 %v1287, %v1288
      %v1290 = vadd.f32 %v1289, 0.0
      %1291 = vst [vmem:[%s177] sm:$0xff] %v1025
      %1292 = vst [vmem:[%s177 + $0x8] sm:$0xff] %v1030
      %1293 = vst [vmem:[%s177 + $0x10] sm:$0xff] %v1035
      %1294 = vst [vmem:[%s177 + $0x18] sm:$0xff] %v1040
      %1295 = vst [vmem:[%s177 + $0x20] sm:$0xff] %v1045
      %1296 = vst [vmem:[%s177 + $0x28] sm:$0xff] %v1050
      %1297 = vst [vmem:[%s177 + $0x30] sm:$0xff] %v1055
      %1298 = vst [vmem:[%s177 + $0x38] sm:$0xff] %v1060
      %1299 = vst [vmem:[%s177 + $0x40] sm:$0xff] %v1065
      %1300 = vst [vmem:[%s177 + $0x48] sm:$0xff] %v1070
      %1301 = vst [vmem:[%s177 + $0x50] sm:$0xff] %v1075
      %1302 = vst [vmem:[%s177 + $0x58] sm:$0xff] %v1080
      %1303 = vst [vmem:[%s177 + $0x60] sm:$0xff] %v1085
      %1304 = vst [vmem:[%s177 + $0x68] sm:$0xff] %v1090
      %1305 = vst [vmem:[%s177 + $0x70] sm:$0xff] %v1095
      %1306 = vst [vmem:[%s177 + $0x78] sm:$0xff] %v1100
      %1307 = vst [vmem:[%s177 + $0x80] sm:$0xff] %v1105
      %1308 = vst [vmem:[%s177 + $0x88] sm:$0xff] %v1110
      %1309 = vst [vmem:[%s177 + $0x90] sm:$0xff] %v1115
      %1310 = vst [vmem:[%s177 + $0x98] sm:$0xff] %v1120
      %1311 = vst [vmem:[%s177 + $0xa0] sm:$0xff] %v1125
      %1312 = vst [vmem:[%s177 + $0xa8] sm:$0xff] %v1130
      %1313 = vst [vmem:[%s177 + $0xb0] sm:$0xff] %v1135
      %1314 = vst [vmem:[%s177 + $0xb8] sm:$0xff] %v1140
      %1315 = vst [vmem:[%s177 + $0xc0] sm:$0xff] %v1145
      %1316 = vst [vmem:[%s177 + $0xc8] sm:$0xff] %v1150
      %1317 = vst [vmem:[%s177 + $0xd0] sm:$0xff] %v1155
      %1318 = vst [vmem:[%s177 + $0xd8] sm:$0xff] %v1160
      %1319 = vst [vmem:[%s177 + $0xe0] sm:$0xff] %v1165
      %1320 = vst [vmem:[%s177 + $0xe8] sm:$0xff] %v1170
      %1321 = vst [vmem:[%s177 + $0xf0] sm:$0xff] %v1175
      %1322 = vst [vmem:[%s177 + $0xf8] sm:$0xff] %v1180
      %1323 = vst.msk [vmem:[#allocation2] sm:$0xff] %vm236, %v320
      %1324 = vst.msk [vmem:[#allocation2 + $0x8] sm:$0xff] %vm236, %v322
      %1325 = vst.msk [vmem:[#allocation2 + $0x10] sm:$0xff] %vm236, %v325
      %1326 = vst.msk [vmem:[#allocation2 + $0x18] sm:$0xff] %vm236, %v327
      %1327 = vst.msk [vmem:[#allocation2 + $0x20] sm:$0xff] %vm236, %v330
      %1328 = vst.msk [vmem:[#allocation2 + $0x28] sm:$0xff] %vm236, %v332
      %1329 = vst.msk [vmem:[#allocation2 + $0x30] sm:$0xff] %vm236, %v335
      %1330 = vst.msk [vmem:[#allocation2 + $0x38] sm:$0xff] %vm236, %v337
      %1331 = vst.msk [vmem:[#allocation2 + $0x40] sm:$0xff] %vm236, %v340
      %1332 = vst.msk [vmem:[#allocation2 + $0x48] sm:$0xff] %vm236, %v342
      %1333 = vst.msk [vmem:[#allocation2 + $0x50] sm:$0xff] %vm236, %v345
      %1334 = vst.msk [vmem:[#allocation2 + $0x58] sm:$0xff] %vm236, %v347
      %1335 = vst.msk [vmem:[#allocation2 + $0x60] sm:$0xff] %vm236, %v350
      %1336 = vst.msk [vmem:[#allocation2 + $0x68] sm:$0xff] %vm236, %v352
      %1337 = vst.msk [vmem:[#allocation2 + $0x70] sm:$0xff] %vm236, %v355
      %1338 = vst.msk [vmem:[#allocation2 + $0x78] sm:$0xff] %vm236, %v357
      %1339 = vst.msk [vmem:[#allocation2 + $0x80] sm:$0xff] %vm236, %v360
      %1340 = vst.msk [vmem:[#allocation2 + $0x88] sm:$0xff] %vm236, %v362
      %1341 = vst.msk [vmem:[#allocation2 + $0x90] sm:$0xff] %vm236, %v365
      %1342 = vst.msk [vmem:[#allocation2 + $0x98] sm:$0xff] %vm236, %v367
      %1343 = vst.msk [vmem:[#allocation2 + $0xa0] sm:$0xff] %vm236, %v370
      %1344 = vst.msk [vmem:[#allocation2 + $0xa8] sm:$0xff] %vm236, %v372
      %1345 = vst.msk [vmem:[#allocation2 + $0xb0] sm:$0xff] %vm236, %v375
      %1346 = vst.msk [vmem:[#allocation2 + $0xb8] sm:$0xff] %vm236, %v377
      %1347 = vst.msk [vmem:[#allocation2 + $0xc0] sm:$0xff] %vm236, %v380
      %1348 = vst.msk [vmem:[#allocation2 + $0xc8] sm:$0xff] %vm236, %v382
      %1349 = vst.msk [vmem:[#allocation2 + $0xd0] sm:$0xff] %vm236, %v385
      %1350 = vst.msk [vmem:[#allocation2 + $0xd8] sm:$0xff] %vm236, %v387
      %1351 = vst.msk [vmem:[#allocation2 + $0xe0] sm:$0xff] %vm236, %v390
      %1352 = vst.msk [vmem:[#allocation2 + $0xe8] sm:$0xff] %vm236, %v392
      %1353 = vst.msk [vmem:[#allocation2 + $0xf0] sm:$0xff] %vm236, %v395
      %1354 = vst.msk [vmem:[#allocation2 + $0xf8] sm:$0xff] %vm236, %v397
      %vm1355 = vcmask 1045504
      %v1356 = vrot.slane %v182, 2
      %v1357 = vrot.slane %v183, 2
      %v1358 = vsel %vm1355, %v1356, %v1357
      %v1359 = vrot.slane %v184, 2
      %v1360 = vsel %vm1355, %v1357, %v1359
      %v1361 = vrot.slane %v185, 2
      %v1362 = vrot.slane %v186, 2
      %v1363 = vsel %vm1355, %v1361, %v1362
      %v1364 = vrot.slane %v187, 2
      %v1365 = vsel %vm1355, %v1362, %v1364
      %v1366 = vrot.slane %v188, 2
      %v1367 = vrot.slane %v189, 2
      %v1368 = vsel %vm1355, %v1366, %v1367
      %v1369 = vrot.slane %v190, 2
      %v1370 = vsel %vm1355, %v1367, %v1369
      %v1371 = vrot.slane %v191, 2
      %v1372 = vrot.slane %v192, 2
      %v1373 = vsel %vm1355, %v1371, %v1372
      %v1374 = vrot.slane %v193, 2
      %v1375 = vsel %vm1355, %v1372, %v1374
      %v1376 = vrot.slane %v194, 2
      %v1377 = vrot.slane %v195, 2
      %v1378 = vsel %vm1355, %v1376, %v1377
      %v1379 = vrot.slane %v196, 2
      %v1380 = vsel %vm1355, %v1377, %v1379
      %v1381 = vrot.slane %v197, 2
      %v1382 = vrot.slane %v198, 2
      %v1383 = vsel %vm1355, %v1381, %v1382
      %v1384 = vrot.slane %v199, 2
      %v1385 = vsel %vm1355, %v1382, %v1384
      %v1386 = vrot.slane %v200, 2
      %v1387 = vrot.slane %v201, 2
      %v1388 = vsel %vm1355, %v1386, %v1387
      %v1389 = vrot.slane %v202, 2
      %v1390 = vsel %vm1355, %v1387, %v1389
      %v1391 = vrot.slane %v203, 2
      %v1392 = vrot.slane %v204, 2
      %v1393 = vsel %vm1355, %v1391, %v1392
      %v1394 = vrot.slane %v205, 2
      %v1395 = vsel %vm1355, %v1392, %v1394
      %v1396 = vrot.slane %v206, 2
      %v1397 = vrot.slane %v207, 2
      %v1398 = vsel %vm1355, %v1396, %v1397
      %v1399 = vrot.slane %v208, 2
      %v1400 = vsel %vm1355, %v1397, %v1399
      %v1401 = vrot.slane %v209, 2
      %v1402 = vrot.slane %v210, 2
      %v1403 = vsel %vm1355, %v1401, %v1402
      %v1404 = vrot.slane %v211, 2
      %v1405 = vsel %vm1355, %v1402, %v1404
      %v1406 = vrot.slane %v212, 2
      %v1407 = vrot.slane %v213, 2
      %v1408 = vsel %vm1355, %v1406, %v1407
      %v1409 = vrot.slane %v214, 2
      %v1410 = vsel %vm1355, %v1407, %v1409
      %v1411 = vrot.slane %v215, 2
      %v1412 = vrot.slane %v216, 2
      %v1413 = vsel %vm1355, %v1411, %v1412
      %v1414 = vrot.slane %v217, 2
      %v1415 = vsel %vm1355, %v1412, %v1414
      %v1416 = vrot.slane %v218, 2
      %v1417 = vrot.slane %v219, 2
      %v1418 = vsel %vm1355, %v1416, %v1417
      %v1419 = vrot.slane %v220, 2
      %v1420 = vsel %vm1355, %v1417, %v1419
      %v1421 = vrot.slane %v221, 2
      %v1422 = vrot.slane %v222, 2
      %v1423 = vsel %vm1355, %v1421, %v1422
      %v1424 = vrot.slane %v223, 2
      %v1425 = vsel %vm1355, %v1422, %v1424
      %v1426 = vrot.slane %v224, 2
      %v1427 = vrot.slane %v225, 2
      %v1428 = vsel %vm1355, %v1426, %v1427
      %v1429 = vrot.slane %v226, 2
      %v1430 = vsel %vm1355, %v1427, %v1429
      %v1431 = vrot.slane %v227, 2
      %v1432 = vrot.slane %v228, 2
      %v1433 = vsel %vm1355, %v1431, %v1432
      %v1434 = vrot.slane %v229, 2
      %v1435 = vsel %vm1355, %v1432, %v1434
      %1436 = vrot.lane.b32.xlu0 %v1358, 4
      %v1437 = vpop.permute.xlu0 %1436
      %1438 = vrot.lane.b32.xlu0 %v1360, 4
      %v1439 = vpop.permute.xlu0 %1438
      %1440 = vrot.lane.b32.xlu0 %v1363, 4
      %v1441 = vpop.permute.xlu0 %1440
      %1442 = vrot.lane.b32.xlu0 %v1365, 4
      %v1443 = vpop.permute.xlu0 %1442
      %1444 = vrot.lane.b32.xlu0 %v1368, 4
      %v1445 = vpop.permute.xlu0 %1444
      %1446 = vrot.lane.b32.xlu0 %v1370, 4
      %v1447 = vpop.permute.xlu0 %1446
      %1448 = vrot.lane.b32.xlu0 %v1373, 4
      %v1449 = vpop.permute.xlu0 %1448
      %1450 = vrot.lane.b32.xlu0 %v1375, 4
      %v1451 = vpop.permute.xlu0 %1450
      %1452 = vrot.lane.b32.xlu0 %v1378, 4
      %v1453 = vpop.permute.xlu0 %1452
      %1454 = vrot.lane.b32.xlu0 %v1380, 4
      %v1455 = vpop.permute.xlu0 %1454
      %1456 = vrot.lane.b32.xlu0 %v1383, 4
      %v1457 = vpop.permute.xlu0 %1456
      %1458 = vrot.lane.b32.xlu0 %v1385, 4
      %v1459 = vpop.permute.xlu0 %1458
      %1460 = vrot.lane.b32.xlu0 %v1388, 4
      %v1461 = vpop.permute.xlu0 %1460
      %1462 = vrot.lane.b32.xlu0 %v1390, 4
      %v1463 = vpop.permute.xlu0 %1462
      %1464 = vrot.lane.b32.xlu0 %v1393, 4
      %v1465 = vpop.permute.xlu0 %1464
      %1466 = vrot.lane.b32.xlu0 %v1395, 4
      %v1467 = vpop.permute.xlu0 %1466
      %1468 = vrot.lane.b32.xlu0 %v1398, 4
      %v1469 = vpop.permute.xlu0 %1468
      %1470 = vrot.lane.b32.xlu0 %v1400, 4
      %v1471 = vpop.permute.xlu0 %1470
      %1472 = vrot.lane.b32.xlu0 %v1403, 4
      %v1473 = vpop.permute.xlu0 %1472
      %1474 = vrot.lane.b32.xlu0 %v1405, 4
      %v1475 = vpop.permute.xlu0 %1474
      %1476 = vrot.lane.b32.xlu0 %v1408, 4
      %v1477 = vpop.permute.xlu0 %1476
      %1478 = vrot.lane.b32.xlu0 %v1410, 4
      %v1479 = vpop.permute.xlu0 %1478
      %1480 = vrot.lane.b32.xlu0 %v1413, 4
      %v1481 = vpop.permute.xlu0 %1480
      %1482 = vrot.lane.b32.xlu0 %v1415, 4
      %v1483 = vpop.permute.xlu0 %1482
      %1484 = vrot.lane.b32.xlu0 %v1418, 4
      %v1485 = vpop.permute.xlu0 %1484
      %1486 = vrot.lane.b32.xlu0 %v1420, 4
      %v1487 = vpop.permute.xlu0 %1486
      %1488 = vrot.lane.b32.xlu0 %v1423, 4
      %v1489 = vpop.permute.xlu0 %1488
      %1490 = vrot.lane.b32.xlu0 %v1425, 4
      %v1491 = vpop.permute.xlu0 %1490
      %1492 = vrot.lane.b32.xlu0 %v1428, 4
      %v1493 = vpop.permute.xlu0 %1492
      %1494 = vrot.lane.b32.xlu0 %v1430, 4
      %v1495 = vpop.permute.xlu0 %1494
      %1496 = vrot.lane.b32.xlu0 %v1433, 4
      %v1497 = vpop.permute.xlu0 %1496
      %1498 = vrot.lane.b32.xlu0 %v1435, 4
      %v1499 = vpop.permute.xlu0 %1498
      %1532 = vst.msk [vmem:[#allocation2] sm:$0xff] %vm526, %v1437
      %1533 = vst.msk [vmem:[#allocation2 + $0x8] sm:$0xff] %vm526, %v1439
      %1534 = vst.msk [vmem:[#allocation2 + $0x10] sm:$0xff] %vm526, %v1441
      %1535 = vst.msk [vmem:[#allocation2 + $0x18] sm:$0xff] %vm526, %v1443
      %1536 = vst.msk [vmem:[#allocation2 + $0x20] sm:$0xff] %vm526, %v1445
      %1537 = vst.msk [vmem:[#allocation2 + $0x28] sm:$0xff] %vm526, %v1447
      %1538 = vst.msk [vmem:[#allocation2 + $0x30] sm:$0xff] %vm526, %v1449
      %1539 = vst.msk [vmem:[#allocation2 + $0x38] sm:$0xff] %vm526, %v1451
      %1540 = vst.msk [vmem:[#allocation2 + $0x40] sm:$0xff] %vm526, %v1453
      %1541 = vst.msk [vmem:[#allocation2 + $0x48] sm:$0xff] %vm526, %v1455
      %1542 = vst.msk [vmem:[#allocation2 + $0x50] sm:$0xff] %vm526, %v1457
      %1543 = vst.msk [vmem:[#allocation2 + $0x58] sm:$0xff] %vm526, %v1459
      %1544 = vst.msk [vmem:[#allocation2 + $0x60] sm:$0xff] %vm526, %v1461
      %1545 = vst.msk [vmem:[#allocation2 + $0x68] sm:$0xff] %vm526, %v1463
      %1546 = vst.msk [vmem:[#allocation2 + $0x70] sm:$0xff] %vm526, %v1465
      %1547 = vst.msk [vmem:[#allocation2 + $0x78] sm:$0xff] %vm526, %v1467
      %1548 = vst.msk [vmem:[#allocation2 + $0x80] sm:$0xff] %vm526, %v1469
      %1549 = vst.msk [vmem:[#allocation2 + $0x88] sm:$0xff] %vm526, %v1471
      %1550 = vst.msk [vmem:[#allocation2 + $0x90] sm:$0xff] %vm526, %v1473
      %1551 = vst.msk [vmem:[#allocation2 + $0x98] sm:$0xff] %vm526, %v1475
      %1552 = vst.msk [vmem:[#allocation2 + $0xa0] sm:$0xff] %vm526, %v1477
      %1553 = vst.msk [vmem:[#allocation2 + $0xa8] sm:$0xff] %vm526, %v1479
      %1554 = vst.msk [vmem:[#allocation2 + $0xb0] sm:$0xff] %vm526, %v1481
      %1555 = vst.msk [vmem:[#allocation2 + $0xb8] sm:$0xff] %vm526, %v1483
      %1556 = vst.msk [vmem:[#allocation2 + $0xc0] sm:$0xff] %vm526, %v1485
      %1557 = vst.msk [vmem:[#allocation2 + $0xc8] sm:$0xff] %vm526, %v1487
      %1558 = vst.msk [vmem:[#allocation2 + $0xd0] sm:$0xff] %vm526, %v1489
      %1559 = vst.msk [vmem:[#allocation2 + $0xd8] sm:$0xff] %vm526, %v1491
      %1560 = vst.msk [vmem:[#allocation2 + $0xe0] sm:$0xff] %vm526, %v1493
      %1561 = vst.msk [vmem:[#allocation2 + $0xe8] sm:$0xff] %vm526, %v1495
      %1562 = vst.msk [vmem:[#allocation2 + $0xf0] sm:$0xff] %vm526, %v1497
      %1563 = vst.msk [vmem:[#allocation2 + $0xf8] sm:$0xff] %vm526, %v1499
      %1564 = vrot.lane.b32.xlu0 %v325, 8
      %v1565 = vpop.permute.xlu0 %1564
      %1566 = vrot.lane.b32.xlu0 %v327, 8
      %v1567 = vpop.permute.xlu0 %1566
      %1568 = vrot.lane.b32.xlu0 %v330, 8
      %v1569 = vpop.permute.xlu0 %1568
      %1570 = vrot.lane.b32.xlu0 %v332, 8
      %v1571 = vpop.permute.xlu0 %1570
      %1572 = vrot.lane.b32.xlu0 %v335, 8
      %v1573 = vpop.permute.xlu0 %1572
      %1574 = vrot.lane.b32.xlu0 %v337, 8
      %v1575 = vpop.permute.xlu0 %1574
      %1576 = vrot.lane.b32.xlu0 %v340, 8
      %v1577 = vpop.permute.xlu0 %1576
      %1578 = vrot.lane.b32.xlu0 %v342, 8
      %v1579 = vpop.permute.xlu0 %1578
      %1580 = vrot.lane.b32.xlu0 %v345, 8
      %v1581 = vpop.permute.xlu0 %1580
      %1582 = vrot.lane.b32.xlu0 %v347, 8
      %v1583 = vpop.permute.xlu0 %1582
      %1584 = vrot.lane.b32.xlu0 %v350, 8
      %v1585 = vpop.permute.xlu0 %1584
      %1586 = vrot.lane.b32.xlu0 %v352, 8
      %v1587 = vpop.permute.xlu0 %1586
      %1588 = vrot.lane.b32.xlu0 %v355, 8
      %v1589 = vpop.permute.xlu0 %1588
      %1590 = vrot.lane.b32.xlu0 %v357, 8
      %v1591 = vpop.permute.xlu0 %1590
      %1592 = vrot.lane.b32.xlu0 %v360, 8
      %v1593 = vpop.permute.xlu0 %1592
      %1594 = vrot.lane.b32.xlu0 %v362, 8
      %v1595 = vpop.permute.xlu0 %1594
      %1596 = vrot.lane.b32.xlu0 %v365, 8
      %v1597 = vpop.permute.xlu0 %1596
      %1598 = vrot.lane.b32.xlu0 %v367, 8
      %v1599 = vpop.permute.xlu0 %1598
      %1600 = vrot.lane.b32.xlu0 %v370, 8
      %v1601 = vpop.permute.xlu0 %1600
      %1602 = vrot.lane.b32.xlu0 %v372, 8
      %v1603 = vpop.permute.xlu0 %1602
      %1604 = vrot.lane.b32.xlu0 %v375, 8
      %v1605 = vpop.permute.xlu0 %1604
      %1606 = vrot.lane.b32.xlu0 %v377, 8
      %v1607 = vpop.permute.xlu0 %1606
      %1608 = vrot.lane.b32.xlu0 %v380, 8
      %v1609 = vpop.permute.xlu0 %1608
      %1610 = vrot.lane.b32.xlu0 %v382, 8
      %v1611 = vpop.permute.xlu0 %1610
      %1612 = vrot.lane.b32.xlu0 %v385, 8
      %v1613 = vpop.permute.xlu0 %1612
      %1614 = vrot.lane.b32.xlu0 %v387, 8
      %v1615 = vpop.permute.xlu0 %1614
      %1616 = vrot.lane.b32.xlu0 %v390, 8
      %v1617 = vpop.permute.xlu0 %1616
      %1618 = vrot.lane.b32.xlu0 %v392, 8
      %v1619 = vpop.permute.xlu0 %1618
      %1620 = vrot.lane.b32.xlu0 %v395, 8
      %v1621 = vpop.permute.xlu0 %1620
      %1622 = vrot.lane.b32.xlu0 %v397, 8
      %v1623 = vpop.permute.xlu0 %1622
      %1624 = vrot.lane.b32.xlu0 %v693, 8
      %v1625 = vpop.permute.xlu0 %1624
      %1626 = vrot.lane.b32.xlu0 %v695, 8
      %v1627 = vpop.permute.xlu0 %1626
      %1660 = vst.msk [vmem:[#allocation2] sm:$0xff] %vm657, %v1565
      %1661 = vst.msk [vmem:[#allocation2 + $0x8] sm:$0xff] %vm657, %v1567
      %1662 = vst.msk [vmem:[#allocation2 + $0x10] sm:$0xff] %vm657, %v1569
      %1663 = vst.msk [vmem:[#allocation2 + $0x18] sm:$0xff] %vm657, %v1571
      %1664 = vst.msk [vmem:[#allocation2 + $0x20] sm:$0xff] %vm657, %v1573
      %1665 = vst.msk [vmem:[#allocation2 + $0x28] sm:$0xff] %vm657, %v1575
      %1666 = vst.msk [vmem:[#allocation2 + $0x30] sm:$0xff] %vm657, %v1577
      %1667 = vst.msk [vmem:[#allocation2 + $0x38] sm:$0xff] %vm657, %v1579
      %1668 = vst.msk [vmem:[#allocation2 + $0x40] sm:$0xff] %vm657, %v1581
      %1669 = vst.msk [vmem:[#allocation2 + $0x48] sm:$0xff] %vm657, %v1583
      %1670 = vst.msk [vmem:[#allocation2 + $0x50] sm:$0xff] %vm657, %v1585
      %1671 = vst.msk [vmem:[#allocation2 + $0x58] sm:$0xff] %vm657, %v1587
      %1672 = vst.msk [vmem:[#allocation2 + $0x60] sm:$0xff] %vm657, %v1589
      %1673 = vst.msk [vmem:[#allocation2 + $0x68] sm:$0xff] %vm657, %v1591
      %1674 = vst.msk [vmem:[#allocation2 + $0x70] sm:$0xff] %vm657, %v1593
      %1675 = vst.msk [vmem:[#allocation2 + $0x78] sm:$0xff] %vm657, %v1595
      %1676 = vst.msk [vmem:[#allocation2 + $0x80] sm:$0xff] %vm657, %v1597
      %1677 = vst.msk [vmem:[#allocation2 + $0x88] sm:$0xff] %vm657, %v1599
      %1678 = vst.msk [vmem:[#allocation2 + $0x90] sm:$0xff] %vm657, %v1601
      %1679 = vst.msk [vmem:[#allocation2 + $0x98] sm:$0xff] %vm657, %v1603
      %1680 = vst.msk [vmem:[#allocation2 + $0xa0] sm:$0xff] %vm657, %v1605
      %1681 = vst.msk [vmem:[#allocation2 + $0xa8] sm:$0xff] %vm657, %v1607
      %1682 = vst.msk [vmem:[#allocation2 + $0xb0] sm:$0xff] %vm657, %v1609
      %1683 = vst.msk [vmem:[#allocation2 + $0xb8] sm:$0xff] %vm657, %v1611
      %1684 = vst.msk [vmem:[#allocation2 + $0xc0] sm:$0xff] %vm657, %v1613
      %1685 = vst.msk [vmem:[#allocation2 + $0xc8] sm:$0xff] %vm657, %v1615
      %1686 = vst.msk [vmem:[#allocation2 + $0xd0] sm:$0xff] %vm657, %v1617
      %1687 = vst.msk [vmem:[#allocation2 + $0xd8] sm:$0xff] %vm657, %v1619
      %1688 = vst.msk [vmem:[#allocation2 + $0xe0] sm:$0xff] %vm657, %v1621
      %1689 = vst.msk [vmem:[#allocation2 + $0xe8] sm:$0xff] %vm657, %v1623
      %1690 = vst.msk [vmem:[#allocation2 + $0xf0] sm:$0xff] %vm657, %v1625
      %1691 = vst.msk [vmem:[#allocation2 + $0xf8] sm:$0xff] %vm657, %v1627
      %v1692 = vrot.slane %v230, 2
      %v1693 = vrot.slane %v231, 2
      %v1694 = vsel %vm1355, %v1692, %v1693
      %v1695 = vrot.slane %v232, 2
      %v1696 = vsel %vm1355, %v1693, %v1695
      %1697 = vrot.lane.b32.xlu0 %v1363, 12
      %v1698 = vpop.permute.xlu0 %1697
      %1699 = vrot.lane.b32.xlu0 %v1365, 12
      %v1700 = vpop.permute.xlu0 %1699
      %1701 = vrot.lane.b32.xlu0 %v1368, 12
      %v1702 = vpop.permute.xlu0 %1701
      %1703 = vrot.lane.b32.xlu0 %v1370, 12
      %v1704 = vpop.permute.xlu0 %1703
      %1705 = vrot.lane.b32.xlu0 %v1373, 12
      %v1706 = vpop.permute.xlu0 %1705
      %1707 = vrot.lane.b32.xlu0 %v1375, 12
      %v1708 = vpop.permute.xlu0 %1707
      %1709 = vrot.lane.b32.xlu0 %v1378, 12
      %v1710 = vpop.permute.xlu0 %1709
      %1711 = vrot.lane.b32.xlu0 %v1380, 12
      %v1712 = vpop.permute.xlu0 %1711
      %1713 = vrot.lane.b32.xlu0 %v1383, 12
      %v1714 = vpop.permute.xlu0 %1713
      %1715 = vrot.lane.b32.xlu0 %v1385, 12
      %v1716 = vpop.permute.xlu0 %1715
      %1717 = vrot.lane.b32.xlu0 %v1388, 12
      %v1718 = vpop.permute.xlu0 %1717
      %1719 = vrot.lane.b32.xlu0 %v1390, 12
      %v1720 = vpop.permute.xlu0 %1719
      %1721 = vrot.lane.b32.xlu0 %v1393, 12
      %v1722 = vpop.permute.xlu0 %1721
      %1723 = vrot.lane.b32.xlu0 %v1395, 12
      %v1724 = vpop.permute.xlu0 %1723
      %1725 = vrot.lane.b32.xlu0 %v1398, 12
      %v1726 = vpop.permute.xlu0 %1725
      %1727 = vrot.lane.b32.xlu0 %v1400, 12
      %v1728 = vpop.permute.xlu0 %1727
      %1729 = vrot.lane.b32.xlu0 %v1403, 12
      %v1730 = vpop.permute.xlu0 %1729
      %1731 = vrot.lane.b32.xlu0 %v1405, 12
      %v1732 = vpop.permute.xlu0 %1731
      %1733 = vrot.lane.b32.xlu0 %v1408, 12
      %v1734 = vpop.permute.xlu0 %1733
      %1735 = vrot.lane.b32.xlu0 %v1410, 12
      %v1736 = vpop.permute.xlu0 %1735
      %1737 = vrot.lane.b32.xlu0 %v1413, 12
      %v1738 = vpop.permute.xlu0 %1737
      %1739 = vrot.lane.b32.xlu0 %v1415, 12
      %v1740 = vpop.permute.xlu0 %1739
      %1741 = vrot.lane.b32.xlu0 %v1418, 12
      %v1742 = vpop.permute.xlu0 %1741
      %1743 = vrot.lane.b32.xlu0 %v1420, 12
      %v1744 = vpop.permute.xlu0 %1743
      %1745 = vrot.lane.b32.xlu0 %v1423, 12
      %v1746 = vpop.permute.xlu0 %1745
      %1747 = vrot.lane.b32.xlu0 %v1425, 12
      %v1748 = vpop.permute.xlu0 %1747
      %1749 = vrot.lane.b32.xlu0 %v1428, 12
      %v1750 = vpop.permute.xlu0 %1749
      %1751 = vrot.lane.b32.xlu0 %v1430, 12
      %v1752 = vpop.permute.xlu0 %1751
      %1753 = vrot.lane.b32.xlu0 %v1433, 12
      %v1754 = vpop.permute.xlu0 %1753
      %1755 = vrot.lane.b32.xlu0 %v1435, 12
      %v1756 = vpop.permute.xlu0 %1755
      %1757 = vrot.lane.b32.xlu0 %v1694, 12
      %v1758 = vpop.permute.xlu0 %1757
      %1759 = vrot.lane.b32.xlu0 %v1696, 12
      %v1760 = vpop.permute.xlu0 %1759
      %1793 = vst.msk [vmem:[#allocation2] sm:$0xff] %vm794, %v1698
      %1794 = vst.msk [vmem:[#allocation2 + $0x8] sm:$0xff] %vm794, %v1700
      %1795 = vst.msk [vmem:[#allocation2 + $0x10] sm:$0xff] %vm794, %v1702
      %1796 = vst.msk [vmem:[#allocation2 + $0x18] sm:$0xff] %vm794, %v1704
      %1797 = vst.msk [vmem:[#allocation2 + $0x20] sm:$0xff] %vm794, %v1706
      %1798 = vst.msk [vmem:[#allocation2 + $0x28] sm:$0xff] %vm794, %v1708
      %1799 = vst.msk [vmem:[#allocation2 + $0x30] sm:$0xff] %vm794, %v1710
      %1800 = vst.msk [vmem:[#allocation2 + $0x38] sm:$0xff] %vm794, %v1712
      %1801 = vst.msk [vmem:[#allocation2 + $0x40] sm:$0xff] %vm794, %v1714
      %1802 = vst.msk [vmem:[#allocation2 + $0x48] sm:$0xff] %vm794, %v1716
      %1803 = vst.msk [vmem:[#allocation2 + $0x50] sm:$0xff] %vm794, %v1718
      %1804 = vst.msk [vmem:[#allocation2 + $0x58] sm:$0xff] %vm794, %v1720
      %1805 = vst.msk [vmem:[#allocation2 + $0x60] sm:$0xff] %vm794, %v1722
      %1806 = vst.msk [vmem:[#allocation2 + $0x68] sm:$0xff] %vm794, %v1724
      %1807 = vst.msk [vmem:[#allocation2 + $0x70] sm:$0xff] %vm794, %v1726
      %1808 = vst.msk [vmem:[#allocation2 + $0x78] sm:$0xff] %vm794, %v1728
      %1809 = vst.msk [vmem:[#allocation2 + $0x80] sm:$0xff] %vm794, %v1730
      %1810 = vst.msk [vmem:[#allocation2 + $0x88] sm:$0xff] %vm794, %v1732
      %1811 = vst.msk [vmem:[#allocation2 + $0x90] sm:$0xff] %vm794, %v1734
      %1812 = vst.msk [vmem:[#allocation2 + $0x98] sm:$0xff] %vm794, %v1736
      %1813 = vst.msk [vmem:[#allocation2 + $0xa0] sm:$0xff] %vm794, %v1738
      %1814 = vst.msk [vmem:[#allocation2 + $0xa8] sm:$0xff] %vm794, %v1740
      %1815 = vst.msk [vmem:[#allocation2 + $0xb0] sm:$0xff] %vm794, %v1742
      %1816 = vst.msk [vmem:[#allocation2 + $0xb8] sm:$0xff] %vm794, %v1744
      %1817 = vst.msk [vmem:[#allocation2 + $0xc0] sm:$0xff] %vm794, %v1746
      %1818 = vst.msk [vmem:[#allocation2 + $0xc8] sm:$0xff] %vm794, %v1748
      %1819 = vst.msk [vmem:[#allocation2 + $0xd0] sm:$0xff] %vm794, %v1750
      %1820 = vst.msk [vmem:[#allocation2 + $0xd8] sm:$0xff] %vm794, %v1752
      %1821 = vst.msk [vmem:[#allocation2 + $0xe0] sm:$0xff] %vm794, %v1754
      %1822 = vst.msk [vmem:[#allocation2 + $0xe8] sm:$0xff] %vm794, %v1756
      %1823 = vst.msk [vmem:[#allocation2 + $0xf0] sm:$0xff] %vm794, %v1758
      %1824 = vst.msk [vmem:[#allocation2 + $0xf8] sm:$0xff] %vm794, %v1760
      %v1825 = vld [vmem:[#allocation2] sm:$0xff]
      %v1826 = vld [vmem:[#allocation2 + $0x8] sm:$0xff]
      %v1827 = vld [vmem:[#allocation2 + $0x10] sm:$0xff]
      %v1828 = vld [vmem:[#allocation2 + $0x18] sm:$0xff]
      %v1829 = vld [vmem:[#allocation2 + $0x20] sm:$0xff]
      %v1830 = vld [vmem:[#allocation2 + $0x28] sm:$0xff]
      %v1831 = vld [vmem:[#allocation2 + $0x30] sm:$0xff]
      %v1832 = vld [vmem:[#allocation2 + $0x38] sm:$0xff]
      %v1833 = vld [vmem:[#allocation2 + $0x40] sm:$0xff]
      %v1834 = vld [vmem:[#allocation2 + $0x48] sm:$0xff]
      %v1835 = vld [vmem:[#allocation2 + $0x50] sm:$0xff]
      %v1836 = vld [vmem:[#allocation2 + $0x58] sm:$0xff]
      %v1837 = vld [vmem:[#allocation2 + $0x60] sm:$0xff]
      %v1838 = vld [vmem:[#allocation2 + $0x68] sm:$0xff]
      %v1839 = vld [vmem:[#allocation2 + $0x70] sm:$0xff]
      %v1840 = vld [vmem:[#allocation2 + $0x78] sm:$0xff]
      %v1841 = vld [vmem:[#allocation2 + $0x80] sm:$0xff]
      %v1842 = vld [vmem:[#allocation2 + $0x88] sm:$0xff]
      %v1843 = vld [vmem:[#allocation2 + $0x90] sm:$0xff]
      %v1844 = vld [vmem:[#allocation2 + $0x98] sm:$0xff]
      %v1845 = vld [vmem:[#allocation2 + $0xa0] sm:$0xff]
      %v1846 = vld [vmem:[#allocation2 + $0xa8] sm:$0xff]
      %v1847 = vld [vmem:[#allocation2 + $0xb0] sm:$0xff]
      %v1848 = vld [vmem:[#allocation2 + $0xb8] sm:$0xff]
      %v1849 = vld [vmem:[#allocation2 + $0xc0] sm:$0xff]
      %v1850 = vld [vmem:[#allocation2 + $0xc8] sm:$0xff]
      %v1851 = vld [vmem:[#allocation2 + $0xd0] sm:$0xff]
      %v1852 = vld [vmem:[#allocation2 + $0xd8] sm:$0xff]
      %v1853 = vld [vmem:[#allocation2 + $0xe0] sm:$0xff]
      %v1854 = vld [vmem:[#allocation2 + $0xe8] sm:$0xff]
      %v1855 = vld [vmem:[#allocation2 + $0xf0] sm:$0xff]
      %v1856 = vld [vmem:[#allocation2 + $0xf8] sm:$0xff]
      %s1857 = scalar_lea.vmem %s1, 16
      %v1858 = vld [vmem:[%s1857] sm:$0xff]
      %v1859 = vld [vmem:[%s1857 + $0x8] sm:$0xff]
      %v1861 = vsel %vm861, %v1825, 0
      %v1864 = vsel %vm861, %v1826, 0
      %v1867 = vsel %vm861, %v1827, 0
      %v1870 = vsel %vm861, %v1828, 0
      %v1873 = vsel %vm861, %v1829, 0
      %v1876 = vsel %vm861, %v1830, 0
      %v1879 = vsel %vm861, %v1831, 0
      %v1882 = vsel %vm861, %v1832, 0
      %v1885 = vsel %vm861, %v1833, 0
      %v1888 = vsel %vm861, %v1834, 0
      %v1891 = vsel %vm861, %v1835, 0
      %v1894 = vsel %vm861, %v1836, 0
      %v1897 = vsel %vm861, %v1837, 0
      %v1900 = vsel %vm861, %v1838, 0
      %v1903 = vsel %vm861, %v1839, 0
      %v1906 = vsel %vm861, %v1840, 0
      %v1909 = vsel %vm861, %v1841, 0
      %v1912 = vsel %vm861, %v1842, 0
      %v1915 = vsel %vm861, %v1843, 0
      %v1918 = vsel %vm861, %v1844, 0
      %v1921 = vsel %vm861, %v1845, 0
      %v1924 = vsel %vm861, %v1846, 0
      %v1927 = vsel %vm861, %v1847, 0
      %v1930 = vsel %vm861, %v1848, 0
      %v1933 = vsel %vm861, %v1849, 0
      %v1936 = vsel %vm861, %v1850, 0
      %v1939 = vsel %vm861, %v1851, 0
      %v1942 = vsel %vm861, %v1852, 0
      %v1945 = vsel %vm861, %v1853, 0
      %v1948 = vsel %vm861, %v1854, 0
      %v1951 = vsel %vm861, %v1855, 0
      %v1954 = vsel %vm861, %v1856, 0
      %1956 = vmatprep.subr.mxu0 0.0
      %1957 = vmatpush1.msra.mxu0 %v1858
      %1958 = vmatprep.subr.mxu0 0.0
      %1959 = vmatpush1.msra.mxu0 %v1859
      %1960 = vmatprep.subr.mxu0 0.0
      %1961 = vmatpush1.msra.mxu0 0.0
      %1962 = vmatprep.subr.mxu0 0.0
      %1963 = vmatpush1.msra.mxu0 0.0
      %1964 = vmatprep.subr.mxu0 0.0
      %1965 = vmatpush1.msra.mxu0 0.0
      %1966 = vmatprep.subr.mxu0 0.0
      %1967 = vmatpush1.msra.mxu0 0.0
      %1968 = vmatprep.subr.mxu0 0.0
      %1969 = vmatpush1.msra.mxu0 0.0
      %1970 = vmatprep.subr.mxu0 0.0
      %1971 = vmatpush1.msra.mxu0 0.0
      %1972 = vmatprep.subr.mxu0 0.0
      %1973 = vmatpush1.msra.mxu0 0.0
      %1974 = vmatprep.subr.mxu0 0.0
      %1975 = vmatpush1.msra.mxu0 0.0
      %1976 = vmatprep.subr.mxu0 0.0
      %1977 = vmatpush1.msra.mxu0 0.0
      %1978 = vmatprep.subr.mxu0 0.0
      %1979 = vmatpush1.msra.mxu0 0.0
      %1980 = vmatprep.subr.mxu0 0.0
      %1981 = vmatpush1.msra.mxu0 0.0
      %1982 = vmatprep.subr.mxu0 0.0
      %1983 = vmatpush1.msra.mxu0 0.0
      %1984 = vmatprep.subr.mxu0 0.0
      %1985 = vmatpush1.msra.mxu0 0.0
      %1986 = vmatprep.subr.mxu0 0.0
      %1987 = vmatpush1.msra.mxu0 0.0
      %1988 = vmatprep.subr.mxu0 0.0
      %1989 = vmatpush1.msra.mxu0 0.0
      %1990 = vmatprep.subr.mxu0 0.0
      %1991 = vmatpush1.msra.mxu0 0.0
      %1992 = vmatprep.subr.mxu0 0.0
      %1993 = vmatpush1.msra.mxu0 0.0
      %1994 = vmatprep.subr.mxu0 0.0
      %1995 = vmatpush1.msra.mxu0 0.0
      %1996 = vmatprep.subr.mxu0 0.0
      %1997 = vmatpush1.msra.mxu0 0.0
      %1998 = vmatprep.subr.mxu0 0.0
      %1999 = vmatpush1.msra.mxu0 0.0
      %2000 = vmatprep.subr.mxu0 0.0
      %2001 = vmatpush1.msra.mxu0 0.0
      %2002 = vmatprep.subr.mxu0 0.0
      %2003 = vmatpush1.msra.mxu0 0.0
      %2004 = vmatprep.subr.mxu0 0.0
      %2005 = vmatpush1.msra.mxu0 0.0
      %2006 = vmatprep.subr.mxu0 0.0
      %2007 = vmatpush1.msra.mxu0 0.0
      %2008 = vmatprep.subr.mxu0 0.0
      %2009 = vmatpush1.msra.mxu0 0.0
      %2010 = vmatprep.subr.mxu0 0.0
      %2011 = vmatpush1.msra.mxu0 0.0
      %2012 = vmatprep.subr.mxu0 0.0
      %2013 = vmatpush1.msra.mxu0 0.0
      %2014 = vmatprep.subr.mxu0 0.0
      %2015 = vmatpush1.msra.mxu0 0.0
      %2016 = vmatprep.subr.mxu0 0.0
      %2017 = vmatpush1.msra.mxu0 0.0
      %2018 = vmatprep.subr.mxu0 0.0
      %2019 = vmatpush1.msra.mxu0 0.0
      %2020 = vmatprep.mubr.f32.mxu0 0.0
      %2021 = vmatmul.mubr.f32.gmra.mrb[0].mxu0 %v1861
      %v2022 = vpop.f32.mrb[0].mxu0
      %v2023 = vadd.f32 0.0, %v2022
      %v2024 = vpop.f32.mrb[0].mxu0
      %2025 = vmatprep.mubr.f32.mxu0 0.0
      %2026 = vmatmul.mubr.f32.gmra.mrb[0].mxu0 %v1864
      %v2027 = vpop.f32.mrb[0].mxu0
      %v2028 = vadd.f32 0.0, %v2027
      %v2029 = vpop.f32.mrb[0].mxu0
      %2030 = vmatprep.mubr.f32.mxu0 0.0
      %2031 = vmatmul.mubr.f32.gmra.mrb[0].mxu0 %v1867
      %v2032 = vpop.f32.mrb[0].mxu0
      %v2033 = vadd.f32 0.0, %v2032
      %v2034 = vpop.f32.mrb[0].mxu0
      %2035 = vmatprep.mubr.f32.mxu0 0.0
      %2036 = vmatmul.mubr.f32.gmra.mrb[0].mxu0 %v1870
      %v2037 = vpop.f32.mrb[0].mxu0
      %v2038 = vadd.f32 0.0, %v2037
      %v2039 = vpop.f32.mrb[0].mxu0
      %2040 = vmatprep.mubr.f32.mxu0 0.0
      %2041 = vmatmul.mubr.f32.gmra.mrb[0].mxu0 %v1873
      %v2042 = vpop.f32.mrb[0].mxu0
      %v2043 = vadd.f32 0.0, %v2042
      %v2044 = vpop.f32.mrb[0].mxu0
      %2045 = vmatprep.mubr.f32.mxu0 0.0
      %2046 = vmatmul.mubr.f32.gmra.mrb[0].mxu0 %v1876
      %v2047 = vpop.f32.mrb[0].mxu0
      %v2048 = vadd.f32 0.0, %v2047
      %v2049 = vpop.f32.mrb[0].mxu0
      %2050 = vmatprep.mubr.f32.mxu0 0.0
      %2051 = vmatmul.mubr.f32.gmra.mrb[0].mxu0 %v1879
      %v2052 = vpop.f32.mrb[0].mxu0
      %v2053 = vadd.f32 0.0, %v2052
      %v2054 = vpop.f32.mrb[0].mxu0
      %2055 = vmatprep.mubr.f32.mxu0 0.0
      %2056 = vmatmul.mubr.f32.gmra.mrb[0].mxu0 %v1882
      %v2057 = vpop.f32.mrb[0].mxu0
      %v2058 = vadd.f32 0.0, %v2057
      %v2059 = vpop.f32.mrb[0].mxu0
      %2060 = vmatprep.mubr.f32.mxu0 0.0
      %2061 = vmatmul.mubr.f32.gmra.mrb[0].mxu0 %v1885
      %v2062 = vpop.f32.mrb[0].mxu0
      %v2063 = vadd.f32 0.0, %v2062
      %v2064 = vpop.f32.mrb[0].mxu0
      %2065 = vmatprep.mubr.f32.mxu0 0.0
      %2066 = vmatmul.mubr.f32.gmra.mrb[0].mxu0 %v1888
      %v2067 = vpop.f32.mrb[0].mxu0
      %v2068 = vadd.f32 0.0, %v2067
      %v2069 = vpop.f32.mrb[0].mxu0
      %2070 = vmatprep.mubr.f32.mxu0 0.0
      %2071 = vmatmul.mubr.f32.gmra.mrb[0].mxu0 %v1891
      %v2072 = vpop.f32.mrb[0].mxu0
      %v2073 = vadd.f32 0.0, %v2072
      %v2074 = vpop.f32.mrb[0].mxu0
      %2075 = vmatprep.mubr.f32.mxu0 0.0
      %2076 = vmatmul.mubr.f32.gmra.mrb[0].mxu0 %v1894
      %v2077 = vpop.f32.mrb[0].mxu0
      %v2078 = vadd.f32 0.0, %v2077
      %v2079 = vpop.f32.mrb[0].mxu0
      %2080 = vmatprep.mubr.f32.mxu0 0.0
      %2081 = vmatmul.mubr.f32.gmra.mrb[0].mxu0 %v1897
      %v2082 = vpop.f32.mrb[0].mxu0
      %v2083 = vadd.f32 0.0, %v2082
      %v2084 = vpop.f32.mrb[0].mxu0
      %2085 = vmatprep.mubr.f32.mxu0 0.0
      %2086 = vmatmul.mubr.f32.gmra.mrb[0].mxu0 %v1900
      %v2087 = vpop.f32.mrb[0].mxu0
      %v2088 = vadd.f32 0.0, %v2087
      %v2089 = vpop.f32.mrb[0].mxu0
      %2090 = vmatprep.mubr.f32.mxu0 0.0
      %2091 = vmatmul.mubr.f32.gmra.mrb[0].mxu0 %v1903
      %v2092 = vpop.f32.mrb[0].mxu0
      %v2093 = vadd.f32 0.0, %v2092
      %v2094 = vpop.f32.mrb[0].mxu0
      %2095 = vmatprep.mubr.f32.mxu0 0.0
      %2096 = vmatmul.mubr.f32.gmra.mrb[0].mxu0 %v1906
      %v2097 = vpop.f32.mrb[0].mxu0
      %v2098 = vadd.f32 0.0, %v2097
      %v2099 = vpop.f32.mrb[0].mxu0
      %2100 = vmatprep.mubr.f32.mxu0 0.0
      %2101 = vmatmul.mubr.f32.gmra.mrb[0].mxu0 %v1909
      %v2102 = vpop.f32.mrb[0].mxu0
      %v2103 = vadd.f32 0.0, %v2102
      %v2104 = vpop.f32.mrb[0].mxu0
      %2105 = vmatprep.mubr.f32.mxu0 0.0
      %2106 = vmatmul.mubr.f32.gmra.mrb[0].mxu0 %v1912
      %v2107 = vpop.f32.mrb[0].mxu0
      %v2108 = vadd.f32 0.0, %v2107
      %v2109 = vpop.f32.mrb[0].mxu0
      %2110 = vmatprep.mubr.f32.mxu0 0.0
      %2111 = vmatmul.mubr.f32.gmra.mrb[0].mxu0 %v1915
      %v2112 = vpop.f32.mrb[0].mxu0
      %v2113 = vadd.f32 0.0, %v2112
      %v2114 = vpop.f32.mrb[0].mxu0
      %2115 = vmatprep.mubr.f32.mxu0 0.0
      %2116 = vmatmul.mubr.f32.gmra.mrb[0].mxu0 %v1918
      %v2117 = vpop.f32.mrb[0].mxu0
      %v2118 = vadd.f32 0.0, %v2117
      %v2119 = vpop.f32.mrb[0].mxu0
      %2120 = vmatprep.mubr.f32.mxu0 0.0
      %2121 = vmatmul.mubr.f32.gmra.mrb[0].mxu0 %v1921
      %v2122 = vpop.f32.mrb[0].mxu0
      %v2123 = vadd.f32 0.0, %v2122
      %v2124 = vpop.f32.mrb[0].mxu0
      %2125 = vmatprep.mubr.f32.mxu0 0.0
      %2126 = vmatmul.mubr.f32.gmra.mrb[0].mxu0 %v1924
      %v2127 = vpop.f32.mrb[0].mxu0
      %v2128 = vadd.f32 0.0, %v2127
      %v2129 = vpop.f32.mrb[0].mxu0
      %2130 = vmatprep.mubr.f32.mxu0 0.0
      %2131 = vmatmul.mubr.f32.gmra.mrb[0].mxu0 %v1927
      %v2132 = vpop.f32.mrb[0].mxu0
      %v2133 = vadd.f32 0.0, %v2132
      %v2134 = vpop.f32.mrb[0].mxu0
      %2135 = vmatprep.mubr.f32.mxu0 0.0
      %2136 = vmatmul.mubr.f32.gmra.mrb[0].mxu0 %v1930
      %v2137 = vpop.f32.mrb[0].mxu0
      %v2138 = vadd.f32 0.0, %v2137
      %v2139 = vpop.f32.mrb[0].mxu0
      %2140 = vmatprep.mubr.f32.mxu0 0.0
      %2141 = vmatmul.mubr.f32.gmra.mrb[0].mxu0 %v1933
      %v2142 = vpop.f32.mrb[0].mxu0
      %v2143 = vadd.f32 0.0, %v2142
      %v2144 = vpop.f32.mrb[0].mxu0
      %2145 = vmatprep.mubr.f32.mxu0 0.0
      %2146 = vmatmul.mubr.f32.gmra.mrb[0].mxu0 %v1936
      %v2147 = vpop.f32.mrb[0].mxu0
      %v2148 = vadd.f32 0.0, %v2147
      %v2149 = vpop.f32.mrb[0].mxu0
      %2150 = vmatprep.mubr.f32.mxu0 0.0
      %2151 = vmatmul.mubr.f32.gmra.mrb[0].mxu0 %v1939
      %v2152 = vpop.f32.mrb[0].mxu0
      %v2153 = vadd.f32 0.0, %v2152
      %v2154 = vpop.f32.mrb[0].mxu0
      %2155 = vmatprep.mubr.f32.mxu0 0.0
      %2156 = vmatmul.mubr.f32.gmra.mrb[0].mxu0 %v1942
      %v2157 = vpop.f32.mrb[0].mxu0
      %v2158 = vadd.f32 0.0, %v2157
      %v2159 = vpop.f32.mrb[0].mxu0
      %2160 = vmatprep.mubr.f32.mxu0 0.0
      %2161 = vmatmul.mubr.f32.gmra.mrb[0].mxu0 %v1945
      %v2162 = vpop.f32.mrb[0].mxu0
      %v2163 = vadd.f32 0.0, %v2162
      %v2164 = vpop.f32.mrb[0].mxu0
      %2165 = vmatprep.mubr.f32.mxu0 0.0
      %2166 = vmatmul.mubr.f32.gmra.mrb[0].mxu0 %v1948
      %v2167 = vpop.f32.mrb[0].mxu0
      %v2168 = vadd.f32 0.0, %v2167
      %v2169 = vpop.f32.mrb[0].mxu0
      %2170 = vmatprep.mubr.f32.mxu0 0.0
      %2171 = vmatmul.mubr.f32.gmra.mrb[0].mxu0 %v1951
      %v2172 = vpop.f32.mrb[0].mxu0
      %v2173 = vadd.f32 0.0, %v2172
      %v2174 = vpop.f32.mrb[0].mxu0
      %2175 = vmatprep.mubr.f32.mxu0 0.0
      %2176 = vmatmul.mubr.f32.gmra.mrb[0].mxu0 %v1954
      %v2177 = vpop.f32.mrb[0].mxu0
      %v2178 = vadd.f32 0.0, %v2177
      %v2179 = vpop.f32.mrb[0].mxu0
      %2180 = vdwg.mxu0
      %v2181 = vadd.f32 %v2023, %v2028
      %v2182 = vadd.f32 %v2181, %v2033
      %v2183 = vadd.f32 %v2182, %v2038
      %v2184 = vadd.f32 %v2183, %v2043
      %v2185 = vadd.f32 %v2184, %v2048
      %v2186 = vadd.f32 %v2185, %v2053
      %v2187 = vadd.f32 %v2186, %v2058
      %v2188 = vadd.f32 %v2187, %v2063
      %v2189 = vadd.f32 %v2188, %v2068
      %v2190 = vadd.f32 %v2189, %v2073
      %v2191 = vadd.f32 %v2190, %v2078
      %v2192 = vadd.f32 %v2191, %v2083
      %v2193 = vadd.f32 %v2192, %v2088
      %v2194 = vadd.f32 %v2193, %v2093
      %v2195 = vadd.f32 %v2194, %v2098
      %v2196 = vadd.f32 %v2195, %v2103
      %v2197 = vadd.f32 %v2196, %v2108
      %v2198 = vadd.f32 %v2197, %v2113
      %v2199 = vadd.f32 %v2198, %v2118
      %v2200 = vadd.f32 %v2199, %v2123
      %v2201 = vadd.f32 %v2200, %v2128
      %v2202 = vadd.f32 %v2201, %v2133
      %v2203 = vadd.f32 %v2202, %v2138
      %v2204 = vadd.f32 %v2203, %v2143
      %v2205 = vadd.f32 %v2204, %v2148
      %v2206 = vadd.f32 %v2205, %v2153
      %v2207 = vadd.f32 %v2206, %v2158
      %v2208 = vadd.f32 %v2207, %v2163
      %v2209 = vadd.f32 %v2208, %v2168
      %v2210 = vadd.f32 %v2209, %v2173
      %v2211 = vadd.f32 %v2210, %v2178
      %v2212 = vrot.slane %v2211, 4
      %v2213 = vadd.f32 %v2211, %v2212
      %v2214 = vrot.slane %v2213, 2
      %v2215 = vadd.f32 %v2213, %v2214
      %v2216 = vrot.slane %v2215, 1
      %v2217 = vadd.f32 %v2215, %v2216
      %v2218 = vadd.f32 %v1220, %v2217
      %v2219 = vmul.f32 %v2023, %v2023
      %v2220 = vmul.f32 %v2028, %v2028
      %v2221 = vmul.f32 %v2033, %v2033
      %v2222 = vmul.f32 %v2038, %v2038
      %v2223 = vmul.f32 %v2043, %v2043
      %v2224 = vmul.f32 %v2048, %v2048
      %v2225 = vmul.f32 %v2053, %v2053
      %v2226 = vmul.f32 %v2058, %v2058
      %v2227 = vmul.f32 %v2063, %v2063
      %v2228 = vmul.f32 %v2068, %v2068
      %v2229 = vmul.f32 %v2073, %v2073
      %v2230 = vmul.f32 %v2078, %v2078
      %v2231 = vmul.f32 %v2083, %v2083
      %v2232 = vmul.f32 %v2088, %v2088
      %v2233 = vmul.f32 %v2093, %v2093
      %v2234 = vmul.f32 %v2098, %v2098
      %v2235 = vmul.f32 %v2103, %v2103
      %v2236 = vmul.f32 %v2108, %v2108
      %v2237 = vmul.f32 %v2113, %v2113
      %v2238 = vmul.f32 %v2118, %v2118
      %v2239 = vmul.f32 %v2123, %v2123
      %v2240 = vmul.f32 %v2128, %v2128
      %v2241 = vmul.f32 %v2133, %v2133
      %v2242 = vmul.f32 %v2138, %v2138
      %v2243 = vmul.f32 %v2143, %v2143
      %v2244 = vmul.f32 %v2148, %v2148
      %v2245 = vmul.f32 %v2153, %v2153
      %v2246 = vmul.f32 %v2158, %v2158
      %v2247 = vmul.f32 %v2163, %v2163
      %v2248 = vmul.f32 %v2168, %v2168
      %v2249 = vmul.f32 %v2173, %v2173
      %v2250 = vmul.f32 %v2178, %v2178
      %v2251 = vadd.f32 %v2219, %v2220
      %v2252 = vadd.f32 %v2251, %v2221
      %v2253 = vadd.f32 %v2252, %v2222
      %v2254 = vadd.f32 %v2253, %v2223
      %v2255 = vadd.f32 %v2254, %v2224
      %v2256 = vadd.f32 %v2255, %v2225
      %v2257 = vadd.f32 %v2256, %v2226
      %v2258 = vadd.f32 %v2257, %v2227
      %v2259 = vadd.f32 %v2258, %v2228
      %v2260 = vadd.f32 %v2259, %v2229
      %v2261 = vadd.f32 %v2260, %v2230
      %v2262 = vadd.f32 %v2261, %v2231
      %v2263 = vadd.f32 %v2262, %v2232
      %v2264 = vadd.f32 %v2263, %v2233
      %v2265 = vadd.f32 %v2264, %v2234
      %v2266 = vadd.f32 %v2265, %v2235
      %v2267 = vadd.f32 %v2266, %v2236
      %v2268 = vadd.f32 %v2267, %v2237
      %v2269 = vadd.f32 %v2268, %v2238
      %v2270 = vadd.f32 %v2269, %v2239
      %v2271 = vadd.f32 %v2270, %v2240
      %v2272 = vadd.f32 %v2271, %v2241
      %v2273 = vadd.f32 %v2272, %v2242
      %v2274 = vadd.f32 %v2273, %v2243
      %v2275 = vadd.f32 %v2274, %v2244
      %v2276 = vadd.f32 %v2275, %v2245
      %v2277 = vadd.f32 %v2276, %v2246
      %v2278 = vadd.f32 %v2277, %v2247
      %v2279 = vadd.f32 %v2278, %v2248
      %v2280 = vadd.f32 %v2279, %v2249
      %v2281 = vadd.f32 %v2280, %v2250
      %v2282 = vrot.slane %v2281, 4
      %v2283 = vadd.f32 %v2281, %v2282
      %v2284 = vrot.slane %v2283, 2
      %v2285 = vadd.f32 %v2283, %v2284
      %v2286 = vrot.slane %v2285, 1
      %v2287 = vadd.f32 %v2285, %v2286
      %v2288 = vadd.f32 %v1290, %v2287
      %s2289 = scalar_lea.vmem %s177, 256
      %2290 = vst [vmem:[%s2289] sm:$0xff] %v2023
      %2291 = vst [vmem:[%s2289 + $0x8] sm:$0xff] %v2028
      %2292 = vst [vmem:[%s2289 + $0x10] sm:$0xff] %v2033
      %2293 = vst [vmem:[%s2289 + $0x18] sm:$0xff] %v2038
      %2294 = vst [vmem:[%s2289 + $0x20] sm:$0xff] %v2043
      %2295 = vst [vmem:[%s2289 + $0x28] sm:$0xff] %v2048
      %2296 = vst [vmem:[%s2289 + $0x30] sm:$0xff] %v2053
      %2297 = vst [vmem:[%s2289 + $0x38] sm:$0xff] %v2058
      %2298 = vst [vmem:[%s2289 + $0x40] sm:$0xff] %v2063
      %2299 = vst [vmem:[%s2289 + $0x48] sm:$0xff] %v2068
      %2300 = vst [vmem:[%s2289 + $0x50] sm:$0xff] %v2073
      %2301 = vst [vmem:[%s2289 + $0x58] sm:$0xff] %v2078
      %2302 = vst [vmem:[%s2289 + $0x60] sm:$0xff] %v2083
      %2303 = vst [vmem:[%s2289 + $0x68] sm:$0xff] %v2088
      %2304 = vst [vmem:[%s2289 + $0x70] sm:$0xff] %v2093
      %2305 = vst [vmem:[%s2289 + $0x78] sm:$0xff] %v2098
      %2306 = vst [vmem:[%s2289 + $0x80] sm:$0xff] %v2103
      %2307 = vst [vmem:[%s2289 + $0x88] sm:$0xff] %v2108
      %2308 = vst [vmem:[%s2289 + $0x90] sm:$0xff] %v2113
      %2309 = vst [vmem:[%s2289 + $0x98] sm:$0xff] %v2118
      %2310 = vst [vmem:[%s2289 + $0xa0] sm:$0xff] %v2123
      %2311 = vst [vmem:[%s2289 + $0xa8] sm:$0xff] %v2128
      %2312 = vst [vmem:[%s2289 + $0xb0] sm:$0xff] %v2133
      %2313 = vst [vmem:[%s2289 + $0xb8] sm:$0xff] %v2138
      %2314 = vst [vmem:[%s2289 + $0xc0] sm:$0xff] %v2143
      %2315 = vst [vmem:[%s2289 + $0xc8] sm:$0xff] %v2148
      %2316 = vst [vmem:[%s2289 + $0xd0] sm:$0xff] %v2153
      %2317 = vst [vmem:[%s2289 + $0xd8] sm:$0xff] %v2158
      %2318 = vst [vmem:[%s2289 + $0xe0] sm:$0xff] %v2163
      %2319 = vst [vmem:[%s2289 + $0xe8] sm:$0xff] %v2168
      %2320 = vst [vmem:[%s2289 + $0xf0] sm:$0xff] %v2173
      %2321 = vst [vmem:[%s2289 + $0xf8] sm:$0xff] %v2178
      %2322 = vst.msk [vmem:[#allocation2] sm:$0xff] %vm236, %v185
      %2323 = vst.msk [vmem:[#allocation2 + $0x8] sm:$0xff] %vm236, %v186
      %2324 = vst.msk [vmem:[#allocation2 + $0x10] sm:$0xff] %vm236, %v188
      %2325 = vst.msk [vmem:[#allocation2 + $0x18] sm:$0xff] %vm236, %v189
      %2326 = vst.msk [vmem:[#allocation2 + $0x20] sm:$0xff] %vm236, %v191
      %2327 = vst.msk [vmem:[#allocation2 + $0x28] sm:$0xff] %vm236, %v192
      %2328 = vst.msk [vmem:[#allocation2 + $0x30] sm:$0xff] %vm236, %v194
      %2329 = vst.msk [vmem:[#allocation2 + $0x38] sm:$0xff] %vm236, %v195
      %2330 = vst.msk [vmem:[#allocation2 + $0x40] sm:$0xff] %vm236, %v197
      %2331 = vst.msk [vmem:[#allocation2 + $0x48] sm:$0xff] %vm236, %v198
      %2332 = vst.msk [vmem:[#allocation2 + $0x50] sm:$0xff] %vm236, %v200
      %2333 = vst.msk [vmem:[#allocation2 + $0x58] sm:$0xff] %vm236, %v201
      %2334 = vst.msk [vmem:[#allocation2 + $0x60] sm:$0xff] %vm236, %v203
      %2335 = vst.msk [vmem:[#allocation2 + $0x68] sm:$0xff] %vm236, %v204
      %2336 = vst.msk [vmem:[#allocation2 + $0x70] sm:$0xff] %vm236, %v206
      %2337 = vst.msk [vmem:[#allocation2 + $0x78] sm:$0xff] %vm236, %v207
      %2338 = vst.msk [vmem:[#allocation2 + $0x80] sm:$0xff] %vm236, %v209
      %2339 = vst.msk [vmem:[#allocation2 + $0x88] sm:$0xff] %vm236, %v210
      %2340 = vst.msk [vmem:[#allocation2 + $0x90] sm:$0xff] %vm236, %v212
      %2341 = vst.msk [vmem:[#allocation2 + $0x98] sm:$0xff] %vm236, %v213
      %2342 = vst.msk [vmem:[#allocation2 + $0xa0] sm:$0xff] %vm236, %v215
      %2343 = vst.msk [vmem:[#allocation2 + $0xa8] sm:$0xff] %vm236, %v216
      %2344 = vst.msk [vmem:[#allocation2 + $0xb0] sm:$0xff] %vm236, %v218
      %2345 = vst.msk [vmem:[#allocation2 + $0xb8] sm:$0xff] %vm236, %v219
      %2346 = vst.msk [vmem:[#allocation2 + $0xc0] sm:$0xff] %vm236, %v221
      %2347 = vst.msk [vmem:[#allocation2 + $0xc8] sm:$0xff] %vm236, %v222
      %2348 = vst.msk [vmem:[#allocation2 + $0xd0] sm:$0xff] %vm236, %v224
      %2349 = vst.msk [vmem:[#allocation2 + $0xd8] sm:$0xff] %vm236, %v225
      %2350 = vst.msk [vmem:[#allocation2 + $0xe0] sm:$0xff] %vm236, %v227
      %2351 = vst.msk [vmem:[#allocation2 + $0xe8] sm:$0xff] %vm236, %v228
      %2352 = vst.msk [vmem:[#allocation2 + $0xf0] sm:$0xff] %vm236, %v230
      %2353 = vst.msk [vmem:[#allocation2 + $0xf8] sm:$0xff] %vm236, %v231
      %2354 = vrot.lane.b32.xlu0 %v693, 4
      %v2355 = vpop.permute.xlu0 %2354
      %2356 = vrot.lane.b32.xlu0 %v695, 4
      %v2357 = vpop.permute.xlu0 %2356
      %2360 = vst.msk [vmem:[#allocation2] sm:$0xff] %vm526, %v435
      %2361 = vst.msk [vmem:[#allocation2 + $0x8] sm:$0xff] %vm526, %v437
      %2362 = vst.msk [vmem:[#allocation2 + $0x10] sm:$0xff] %vm526, %v439
      %2363 = vst.msk [vmem:[#allocation2 + $0x18] sm:$0xff] %vm526, %v441
      %2364 = vst.msk [vmem:[#allocation2 + $0x20] sm:$0xff] %vm526, %v443
      %2365 = vst.msk [vmem:[#allocation2 + $0x28] sm:$0xff] %vm526, %v445
      %2366 = vst.msk [vmem:[#allocation2 + $0x30] sm:$0xff] %vm526, %v447
      %2367 = vst.msk [vmem:[#allocation2 + $0x38] sm:$0xff] %vm526, %v449
      %2368 = vst.msk [vmem:[#allocation2 + $0x40] sm:$0xff] %vm526, %v451
      %2369 = vst.msk [vmem:[#allocation2 + $0x48] sm:$0xff] %vm526, %v453
      %2370 = vst.msk [vmem:[#allocation2 + $0x50] sm:$0xff] %vm526, %v455
      %2371 = vst.msk [vmem:[#allocation2 + $0x58] sm:$0xff] %vm526, %v457
      %2372 = vst.msk [vmem:[#allocation2 + $0x60] sm:$0xff] %vm526, %v459
      %2373 = vst.msk [vmem:[#allocation2 + $0x68] sm:$0xff] %vm526, %v461
      %2374 = vst.msk [vmem:[#allocation2 + $0x70] sm:$0xff] %vm526, %v463
      %2375 = vst.msk [vmem:[#allocation2 + $0x78] sm:$0xff] %vm526, %v465
      %2376 = vst.msk [vmem:[#allocation2 + $0x80] sm:$0xff] %vm526, %v467
      %2377 = vst.msk [vmem:[#allocation2 + $0x88] sm:$0xff] %vm526, %v469
      %2378 = vst.msk [vmem:[#allocation2 + $0x90] sm:$0xff] %vm526, %v471
      %2379 = vst.msk [vmem:[#allocation2 + $0x98] sm:$0xff] %vm526, %v473
      %2380 = vst.msk [vmem:[#allocation2 + $0xa0] sm:$0xff] %vm526, %v475
      %2381 = vst.msk [vmem:[#allocation2 + $0xa8] sm:$0xff] %vm526, %v477
      %2382 = vst.msk [vmem:[#allocation2 + $0xb0] sm:$0xff] %vm526, %v479
      %2383 = vst.msk [vmem:[#allocation2 + $0xb8] sm:$0xff] %vm526, %v481
      %2384 = vst.msk [vmem:[#allocation2 + $0xc0] sm:$0xff] %vm526, %v483
      %2385 = vst.msk [vmem:[#allocation2 + $0xc8] sm:$0xff] %vm526, %v485
      %2386 = vst.msk [vmem:[#allocation2 + $0xd0] sm:$0xff] %vm526, %v487
      %2387 = vst.msk [vmem:[#allocation2 + $0xd8] sm:$0xff] %vm526, %v489
      %2388 = vst.msk [vmem:[#allocation2 + $0xe0] sm:$0xff] %vm526, %v491
      %2389 = vst.msk [vmem:[#allocation2 + $0xe8] sm:$0xff] %vm526, %v493
      %2390 = vst.msk [vmem:[#allocation2 + $0xf0] sm:$0xff] %vm526, %v2355
      %2391 = vst.msk [vmem:[#allocation2 + $0xf8] sm:$0xff] %vm526, %v2357
      %2394 = vrot.lane.b32.xlu0 %v233, 8
      %v2395 = vpop.permute.xlu0 %2394
      %2396 = vrot.lane.b32.xlu0 %v234, 8
      %v2397 = vpop.permute.xlu0 %2396
      %2400 = vst.msk [vmem:[#allocation2] sm:$0xff] %vm657, %v566
      %2401 = vst.msk [vmem:[#allocation2 + $0x8] sm:$0xff] %vm657, %v568
      %2402 = vst.msk [vmem:[#allocation2 + $0x10] sm:$0xff] %vm657, %v570
      %2403 = vst.msk [vmem:[#allocation2 + $0x18] sm:$0xff] %vm657, %v572
      %2404 = vst.msk [vmem:[#allocation2 + $0x20] sm:$0xff] %vm657, %v574
      %2405 = vst.msk [vmem:[#allocation2 + $0x28] sm:$0xff] %vm657, %v576
      %2406 = vst.msk [vmem:[#allocation2 + $0x30] sm:$0xff] %vm657, %v578
      %2407 = vst.msk [vmem:[#allocation2 + $0x38] sm:$0xff] %vm657, %v580
      %2408 = vst.msk [vmem:[#allocation2 + $0x40] sm:$0xff] %vm657, %v582
      %2409 = vst.msk [vmem:[#allocation2 + $0x48] sm:$0xff] %vm657, %v584
      %2410 = vst.msk [vmem:[#allocation2 + $0x50] sm:$0xff] %vm657, %v586
      %2411 = vst.msk [vmem:[#allocation2 + $0x58] sm:$0xff] %vm657, %v588
      %2412 = vst.msk [vmem:[#allocation2 + $0x60] sm:$0xff] %vm657, %v590
      %2413 = vst.msk [vmem:[#allocation2 + $0x68] sm:$0xff] %vm657, %v592
      %2414 = vst.msk [vmem:[#allocation2 + $0x70] sm:$0xff] %vm657, %v594
      %2415 = vst.msk [vmem:[#allocation2 + $0x78] sm:$0xff] %vm657, %v596
      %2416 = vst.msk [vmem:[#allocation2 + $0x80] sm:$0xff] %vm657, %v598
      %2417 = vst.msk [vmem:[#allocation2 + $0x88] sm:$0xff] %vm657, %v600
      %2418 = vst.msk [vmem:[#allocation2 + $0x90] sm:$0xff] %vm657, %v602
      %2419 = vst.msk [vmem:[#allocation2 + $0x98] sm:$0xff] %vm657, %v604
      %2420 = vst.msk [vmem:[#allocation2 + $0xa0] sm:$0xff] %vm657, %v606
      %2421 = vst.msk [vmem:[#allocation2 + $0xa8] sm:$0xff] %vm657, %v608
      %2422 = vst.msk [vmem:[#allocation2 + $0xb0] sm:$0xff] %vm657, %v610
      %2423 = vst.msk [vmem:[#allocation2 + $0xb8] sm:$0xff] %vm657, %v612
      %2424 = vst.msk [vmem:[#allocation2 + $0xc0] sm:$0xff] %vm657, %v614
      %2425 = vst.msk [vmem:[#allocation2 + $0xc8] sm:$0xff] %vm657, %v616
      %2426 = vst.msk [vmem:[#allocation2 + $0xd0] sm:$0xff] %vm657, %v618
      %2427 = vst.msk [vmem:[#allocation2 + $0xd8] sm:$0xff] %vm657, %v620
      %2428 = vst.msk [vmem:[#allocation2 + $0xe0] sm:$0xff] %vm657, %v622
      %2429 = vst.msk [vmem:[#allocation2 + $0xe8] sm:$0xff] %vm657, %v624
      %2430 = vst.msk [vmem:[#allocation2 + $0xf0] sm:$0xff] %vm657, %v2395
      %2431 = vst.msk [vmem:[#allocation2 + $0xf8] sm:$0xff] %vm657, %v2397
      %v2433 = vrot.slane %v233, 1
      %v2434 = vrot.slane %v234, 1
      %v2435 = vsel %vm317, %v2433, %v2434
      %v2436 = vrot.slane %v235, 1
      %v2437 = vsel %vm317, %v2434, %v2436
      %2438 = vrot.lane.b32.xlu0 %v2435, 12
      %v2439 = vpop.permute.xlu0 %2438
      %2440 = vrot.lane.b32.xlu0 %v2437, 12
      %v2441 = vpop.permute.xlu0 %2440
      %2444 = vst.msk [vmem:[#allocation2] sm:$0xff] %vm794, %v703
      %2445 = vst.msk [vmem:[#allocation2 + $0x8] sm:$0xff] %vm794, %v705
      %2446 = vst.msk [vmem:[#allocation2 + $0x10] sm:$0xff] %vm794, %v707
      %2447 = vst.msk [vmem:[#allocation2 + $0x18] sm:$0xff] %vm794, %v709
      %2448 = vst.msk [vmem:[#allocation2 + $0x20] sm:$0xff] %vm794, %v711
      %2449 = vst.msk [vmem:[#allocation2 + $0x28] sm:$0xff] %vm794, %v713
      %2450 = vst.msk [vmem:[#allocation2 + $0x30] sm:$0xff] %vm794, %v715
      %2451 = vst.msk [vmem:[#allocation2 + $0x38] sm:$0xff] %vm794, %v717
      %2452 = vst.msk [vmem:[#allocation2 + $0x40] sm:$0xff] %vm794, %v719
      %2453 = vst.msk [vmem:[#allocation2 + $0x48] sm:$0xff] %vm794, %v721
      %2454 = vst.msk [vmem:[#allocation2 + $0x50] sm:$0xff] %vm794, %v723
      %2455 = vst.msk [vmem:[#allocation2 + $0x58] sm:$0xff] %vm794, %v725
      %2456 = vst.msk [vmem:[#allocation2 + $0x60] sm:$0xff] %vm794, %v727
      %2457 = vst.msk [vmem:[#allocation2 + $0x68] sm:$0xff] %vm794, %v729
      %2458 = vst.msk [vmem:[#allocation2 + $0x70] sm:$0xff] %vm794, %v731
      %2459 = vst.msk [vmem:[#allocation2 + $0x78] sm:$0xff] %vm794, %v733
      %2460 = vst.msk [vmem:[#allocation2 + $0x80] sm:$0xff] %vm794, %v735
      %2461 = vst.msk [vmem:[#allocation2 + $0x88] sm:$0xff] %vm794, %v737
      %2462 = vst.msk [vmem:[#allocation2 + $0x90] sm:$0xff] %vm794, %v739
      %2463 = vst.msk [vmem:[#allocation2 + $0x98] sm:$0xff] %vm794, %v741
      %2464 = vst.msk [vmem:[#allocation2 + $0xa0] sm:$0xff] %vm794, %v743
      %2465 = vst.msk [vmem:[#allocation2 + $0xa8] sm:$0xff] %vm794, %v745
      %2466 = vst.msk [vmem:[#allocation2 + $0xb0] sm:$0xff] %vm794, %v747
      %2467 = vst.msk [vmem:[#allocation2 + $0xb8] sm:$0xff] %vm794, %v749
      %2468 = vst.msk [vmem:[#allocation2 + $0xc0] sm:$0xff] %vm794, %v751
      %2469 = vst.msk [vmem:[#allocation2 + $0xc8] sm:$0xff] %vm794, %v753
      %2470 = vst.msk [vmem:[#allocation2 + $0xd0] sm:$0xff] %vm794, %v755
      %2471 = vst.msk [vmem:[#allocation2 + $0xd8] sm:$0xff] %vm794, %v757
      %2472 = vst.msk [vmem:[#allocation2 + $0xe0] sm:$0xff] %vm794, %v759
      %2473 = vst.msk [vmem:[#allocation2 + $0xe8] sm:$0xff] %vm794, %v761
      %2474 = vst.msk [vmem:[#allocation2 + $0xf0] sm:$0xff] %vm794, %v2439
      %2475 = vst.msk [vmem:[#allocation2 + $0xf8] sm:$0xff] %vm794, %v2441
      %v2476 = vld [vmem:[#allocation2] sm:$0xff]
      %v2477 = vld [vmem:[#allocation2 + $0x8] sm:$0xff]
      %v2478 = vld [vmem:[#allocation2 + $0x10] sm:$0xff]
      %v2479 = vld [vmem:[#allocation2 + $0x18] sm:$0xff]
      %v2480 = vld [vmem:[#allocation2 + $0x20] sm:$0xff]
      %v2481 = vld [vmem:[#allocation2 + $0x28] sm:$0xff]
      %v2482 = vld [vmem:[#allocation2 + $0x30] sm:$0xff]
      %v2483 = vld [vmem:[#allocation2 + $0x38] sm:$0xff]
      %v2484 = vld [vmem:[#allocation2 + $0x40] sm:$0xff]
      %v2485 = vld [vmem:[#allocation2 + $0x48] sm:$0xff]
      %v2486 = vld [vmem:[#allocation2 + $0x50] sm:$0xff]
      %v2487 = vld [vmem:[#allocation2 + $0x58] sm:$0xff]
      %v2488 = vld [vmem:[#allocation2 + $0x60] sm:$0xff]
      %v2489 = vld [vmem:[#allocation2 + $0x68] sm:$0xff]
      %v2490 = vld [vmem:[#allocation2 + $0x70] sm:$0xff]
      %v2491 = vld [vmem:[#allocation2 + $0x78] sm:$0xff]
      %v2492 = vld [vmem:[#allocation2 + $0x80] sm:$0xff]
      %v2493 = vld [vmem:[#allocation2 + $0x88] sm:$0xff]
      %v2494 = vld [vmem:[#allocation2 + $0x90] sm:$0xff]
      %v2495 = vld [vmem:[#allocation2 + $0x98] sm:$0xff]
      %v2496 = vld [vmem:[#allocation2 + $0xa0] sm:$0xff]
      %v2497 = vld [vmem:[#allocation2 + $0xa8] sm:$0xff]
      %v2498 = vld [vmem:[#allocation2 + $0xb0] sm:$0xff]
      %v2499 = vld [vmem:[#allocation2 + $0xb8] sm:$0xff]
      %v2500 = vld [vmem:[#allocation2 + $0xc0] sm:$0xff]
      %v2501 = vld [vmem:[#allocation2 + $0xc8] sm:$0xff]
      %v2502 = vld [vmem:[#allocation2 + $0xd0] sm:$0xff]
      %v2503 = vld [vmem:[#allocation2 + $0xd8] sm:$0xff]
      %v2504 = vld [vmem:[#allocation2 + $0xe0] sm:$0xff]
      %v2505 = vld [vmem:[#allocation2 + $0xe8] sm:$0xff]
      %v2506 = vld [vmem:[#allocation2 + $0xf0] sm:$0xff]
      %v2507 = vld [vmem:[#allocation2 + $0xf8] sm:$0xff]
      %s2508 = scalar_lea.vmem %s1, 32
      %v2509 = vld [vmem:[%s2508] sm:$0xff]
      %v2510 = vld [vmem:[%s2508 + $0x8] sm:$0xff]
      %v2512 = vsel %vm861, %v2476, 0
      %v2515 = vsel %vm861, %v2477, 0
      %v2518 = vsel %vm861, %v2478, 0
      %v2521 = vsel %vm861, %v2479, 0
      %v2524 = vsel %vm861, %v2480, 0
      %v2527 = vsel %vm861, %v2481, 0
      %v2530 = vsel %vm861, %v2482, 0
      %v2533 = vsel %vm861, %v2483, 0
      %v2536 = vsel %vm861, %v2484, 0
      %v2539 = vsel %vm861, %v2485, 0
      %v2542 = vsel %vm861, %v2486, 0
      %v2545 = vsel %vm861, %v2487, 0
      %v2548 = vsel %vm861, %v2488, 0
      %v2551 = vsel %vm861, %v2489, 0
      %v2554 = vsel %vm861, %v2490, 0
      %v2557 = vsel %vm861, %v2491, 0
      %v2560 = vsel %vm861, %v2492, 0
      %v2563 = vsel %vm861, %v2493, 0
      %v2566 = vsel %vm861, %v2494, 0
      %v2569 = vsel %vm861, %v2495, 0
      %v2572 = vsel %vm861, %v2496, 0
      %v2575 = vsel %vm861, %v2497, 0
      %v2578 = vsel %vm861, %v2498, 0
      %v2581 = vsel %vm861, %v2499, 0
      %v2584 = vsel %vm861, %v2500, 0
      %v2587 = vsel %vm861, %v2501, 0
      %v2590 = vsel %vm861, %v2502, 0
      %v2593 = vsel %vm861, %v2503, 0
      %v2596 = vsel %vm861, %v2504, 0
      %v2599 = vsel %vm861, %v2505, 0
      %v2602 = vsel %vm861, %v2506, 0
      %v2605 = vsel %vm861, %v2507, 0
      %2607 = vmatprep.subr.mxu0 0.0
      %2608 = vmatpush1.msra.mxu0 %v2509
      %2609 = vmatprep.subr.mxu0 0.0
      %2610 = vmatpush1.msra.mxu0 %v2510
      %2611 = vmatprep.subr.mxu0 0.0
      %2612 = vmatpush1.msra.mxu0 0.0
      %2613 = vmatprep.subr.mxu0 0.0
      %2614 = vmatpush1.msra.mxu0 0.0
      %2615 = vmatprep.subr.mxu0 0.0
      %2616 = vmatpush1.msra.mxu0 0.0
      %2617 = vmatprep.subr.mxu0 0.0
      %2618 = vmatpush1.msra.mxu0 0.0
      %2619 = vmatprep.subr.mxu0 0.0
      %2620 = vmatpush1.msra.mxu0 0.0
      %2621 = vmatprep.subr.mxu0 0.0
      %2622 = vmatpush1.msra.mxu0 0.0
      %2623 = vmatprep.subr.mxu0 0.0
      %2624 = vmatpush1.msra.mxu0 0.0
      %2625 = vmatprep.subr.mxu0 0.0
      %2626 = vmatpush1.msra.mxu0 0.0
      %2627 = vmatprep.subr.mxu0 0.0
      %2628 = vmatpush1.msra.mxu0 0.0
      %2629 = vmatprep.subr.mxu0 0.0
      %2630 = vmatpush1.msra.mxu0 0.0
      %2631 = vmatprep.subr.mxu0 0.0
      %2632 = vmatpush1.msra.mxu0 0.0
      %2633 = vmatprep.subr.mxu0 0.0
      %2634 = vmatpush1.msra.mxu0 0.0
      %2635 = vmatprep.subr.mxu0 0.0
      %2636 = vmatpush1.msra.mxu0 0.0
      %2637 = vmatprep.subr.mxu0 0.0
      %2638 = vmatpush1.msra.mxu0 0.0
      %2639 = vmatprep.subr.mxu0 0.0
      %2640 = vmatpush1.msra.mxu0 0.0
      %2641 = vmatprep.subr.mxu0 0.0
      %2642 = vmatpush1.msra.mxu0 0.0
      %2643 = vmatprep.subr.mxu0 0.0
      %2644 = vmatpush1.msra.mxu0 0.0
      %2645 = vmatprep.subr.mxu0 0.0
      %2646 = vmatpush1.msra.mxu0 0.0
      %2647 = vmatprep.subr.mxu0 0.0
      %2648 = vmatpush1.msra.mxu0 0.0
      %2649 = vmatprep.subr.mxu0 0.0
      %2650 = vmatpush1.msra.mxu0 0.0
      %2651 = vmatprep.subr.mxu0 0.0
      %2652 = vmatpush1.msra.mxu0 0.0
      %2653 = vmatprep.subr.mxu0 0.0
      %2654 = vmatpush1.msra.mxu0 0.0
      %2655 = vmatprep.subr.mxu0 0.0
      %2656 = vmatpush1.msra.mxu0 0.0
      %2657 = vmatprep.subr.mxu0 0.0
      %2658 = vmatpush1.msra.mxu0 0.0
      %2659 = vmatprep.subr.mxu0 0.0
      %2660 = vmatpush1.msra.mxu0 0.0
      %2661 = vmatprep.subr.mxu0 0.0
      %2662 = vmatpush1.msra.mxu0 0.0
      %2663 = vmatprep.subr.mxu0 0.0
      %2664 = vmatpush1.msra.mxu0 0.0
      %2665 = vmatprep.subr.mxu0 0.0
      %2666 = vmatpush1.msra.mxu0 0.0
      %2667 = vmatprep.subr.mxu0 0.0
      %2668 = vmatpush1.msra.mxu0 0.0
      %2669 = vmatprep.subr.mxu0 0.0
      %2670 = vmatpush1.msra.mxu0 0.0
      %2671 = vmatprep.mubr.f32.mxu0 0.0
      %2672 = vmatmul.mubr.f32.gmra.mrb[0].mxu0 %v2512
      %v2673 = vpop.f32.mrb[0].mxu0
      %v2674 = vadd.f32 0.0, %v2673
      %v2675 = vpop.f32.mrb[0].mxu0
      %2676 = vmatprep.mubr.f32.mxu0 0.0
      %2677 = vmatmul.mubr.f32.gmra.mrb[0].mxu0 %v2515
      %v2678 = vpop.f32.mrb[0].mxu0
      %v2679 = vadd.f32 0.0, %v2678
      %v2680 = vpop.f32.mrb[0].mxu0
      %2681 = vmatprep.mubr.f32.mxu0 0.0
      %2682 = vmatmul.mubr.f32.gmra.mrb[0].mxu0 %v2518
      %v2683 = vpop.f32.mrb[0].mxu0
      %v2684 = vadd.f32 0.0, %v2683
      %v2685 = vpop.f32.mrb[0].mxu0
      %2686 = vmatprep.mubr.f32.mxu0 0.0
      %2687 = vmatmul.mubr.f32.gmra.mrb[0].mxu0 %v2521
      %v2688 = vpop.f32.mrb[0].mxu0
      %v2689 = vadd.f32 0.0, %v2688
      %v2690 = vpop.f32.mrb[0].mxu0
      %2691 = vmatprep.mubr.f32.mxu0 0.0
      %2692 = vmatmul.mubr.f32.gmra.mrb[0].mxu0 %v2524
      %v2693 = vpop.f32.mrb[0].mxu0
      %v2694 = vadd.f32 0.0, %v2693
      %v2695 = vpop.f32.mrb[0].mxu0
      %2696 = vmatprep.mubr.f32.mxu0 0.0
      %2697 = vmatmul.mubr.f32.gmra.mrb[0].mxu0 %v2527
      %v2698 = vpop.f32.mrb[0].mxu0
      %v2699 = vadd.f32 0.0, %v2698
      %v2700 = vpop.f32.mrb[0].mxu0
      %2701 = vmatprep.mubr.f32.mxu0 0.0
      %2702 = vmatmul.mubr.f32.gmra.mrb[0].mxu0 %v2530
      %v2703 = vpop.f32.mrb[0].mxu0
      %v2704 = vadd.f32 0.0, %v2703
      %v2705 = vpop.f32.mrb[0].mxu0
      %2706 = vmatprep.mubr.f32.mxu0 0.0
      %2707 = vmatmul.mubr.f32.gmra.mrb[0].mxu0 %v2533
      %v2708 = vpop.f32.mrb[0].mxu0
      %v2709 = vadd.f32 0.0, %v2708
      %v2710 = vpop.f32.mrb[0].mxu0
      %2711 = vmatprep.mubr.f32.mxu0 0.0
      %2712 = vmatmul.mubr.f32.gmra.mrb[0].mxu0 %v2536
      %v2713 = vpop.f32.mrb[0].mxu0
      %v2714 = vadd.f32 0.0, %v2713
      %v2715 = vpop.f32.mrb[0].mxu0
      %2716 = vmatprep.mubr.f32.mxu0 0.0
      %2717 = vmatmul.mubr.f32.gmra.mrb[0].mxu0 %v2539
      %v2718 = vpop.f32.mrb[0].mxu0
      %v2719 = vadd.f32 0.0, %v2718
      %v2720 = vpop.f32.mrb[0].mxu0
      %2721 = vmatprep.mubr.f32.mxu0 0.0
      %2722 = vmatmul.mubr.f32.gmra.mrb[0].mxu0 %v2542
      %v2723 = vpop.f32.mrb[0].mxu0
      %v2724 = vadd.f32 0.0, %v2723
      %v2725 = vpop.f32.mrb[0].mxu0
      %2726 = vmatprep.mubr.f32.mxu0 0.0
      %2727 = vmatmul.mubr.f32.gmra.mrb[0].mxu0 %v2545
      %v2728 = vpop.f32.mrb[0].mxu0
      %v2729 = vadd.f32 0.0, %v2728
      %v2730 = vpop.f32.mrb[0].mxu0
      %2731 = vmatprep.mubr.f32.mxu0 0.0
      %2732 = vmatmul.mubr.f32.gmra.mrb[0].mxu0 %v2548
      %v2733 = vpop.f32.mrb[0].mxu0
      %v2734 = vadd.f32 0.0, %v2733
      %v2735 = vpop.f32.mrb[0].mxu0
      %2736 = vmatprep.mubr.f32.mxu0 0.0
      %2737 = vmatmul.mubr.f32.gmra.mrb[0].mxu0 %v2551
      %v2738 = vpop.f32.mrb[0].mxu0
      %v2739 = vadd.f32 0.0, %v2738
      %v2740 = vpop.f32.mrb[0].mxu0
      %2741 = vmatprep.mubr.f32.mxu0 0.0
      %2742 = vmatmul.mubr.f32.gmra.mrb[0].mxu0 %v2554
      %v2743 = vpop.f32.mrb[0].mxu0
      %v2744 = vadd.f32 0.0, %v2743
      %v2745 = vpop.f32.mrb[0].mxu0
      %2746 = vmatprep.mubr.f32.mxu0 0.0
      %2747 = vmatmul.mubr.f32.gmra.mrb[0].mxu0 %v2557
      %v2748 = vpop.f32.mrb[0].mxu0
      %v2749 = vadd.f32 0.0, %v2748
      %v2750 = vpop.f32.mrb[0].mxu0
      %2751 = vmatprep.mubr.f32.mxu0 0.0
      %2752 = vmatmul.mubr.f32.gmra.mrb[0].mxu0 %v2560
      %v2753 = vpop.f32.mrb[0].mxu0
      %v2754 = vadd.f32 0.0, %v2753
      %v2755 = vpop.f32.mrb[0].mxu0
      %2756 = vmatprep.mubr.f32.mxu0 0.0
      %2757 = vmatmul.mubr.f32.gmra.mrb[0].mxu0 %v2563
      %v2758 = vpop.f32.mrb[0].mxu0
      %v2759 = vadd.f32 0.0, %v2758
      %v2760 = vpop.f32.mrb[0].mxu0
      %2761 = vmatprep.mubr.f32.mxu0 0.0
      %2762 = vmatmul.mubr.f32.gmra.mrb[0].mxu0 %v2566
      %v2763 = vpop.f32.mrb[0].mxu0
      %v2764 = vadd.f32 0.0, %v2763
      %v2765 = vpop.f32.mrb[0].mxu0
      %2766 = vmatprep.mubr.f32.mxu0 0.0
      %2767 = vmatmul.mubr.f32.gmra.mrb[0].mxu0 %v2569
      %v2768 = vpop.f32.mrb[0].mxu0
      %v2769 = vadd.f32 0.0, %v2768
      %v2770 = vpop.f32.mrb[0].mxu0
      %2771 = vmatprep.mubr.f32.mxu0 0.0
      %2772 = vmatmul.mubr.f32.gmra.mrb[0].mxu0 %v2572
      %v2773 = vpop.f32.mrb[0].mxu0
      %v2774 = vadd.f32 0.0, %v2773
      %v2775 = vpop.f32.mrb[0].mxu0
      %2776 = vmatprep.mubr.f32.mxu0 0.0
      %2777 = vmatmul.mubr.f32.gmra.mrb[0].mxu0 %v2575
      %v2778 = vpop.f32.mrb[0].mxu0
      %v2779 = vadd.f32 0.0, %v2778
      %v2780 = vpop.f32.mrb[0].mxu0
      %2781 = vmatprep.mubr.f32.mxu0 0.0
      %2782 = vmatmul.mubr.f32.gmra.mrb[0].mxu0 %v2578
      %v2783 = vpop.f32.mrb[0].mxu0
      %v2784 = vadd.f32 0.0, %v2783
      %v2785 = vpop.f32.mrb[0].mxu0
      %2786 = vmatprep.mubr.f32.mxu0 0.0
      %2787 = vmatmul.mubr.f32.gmra.mrb[0].mxu0 %v2581
      %v2788 = vpop.f32.mrb[0].mxu0
      %v2789 = vadd.f32 0.0, %v2788
      %v2790 = vpop.f32.mrb[0].mxu0
      %2791 = vmatprep.mubr.f32.mxu0 0.0
      %2792 = vmatmul.mubr.f32.gmra.mrb[0].mxu0 %v2584
      %v2793 = vpop.f32.mrb[0].mxu0
      %v2794 = vadd.f32 0.0, %v2793
      %v2795 = vpop.f32.mrb[0].mxu0
      %2796 = vmatprep.mubr.f32.mxu0 0.0
      %2797 = vmatmul.mubr.f32.gmra.mrb[0].mxu0 %v2587
      %v2798 = vpop.f32.mrb[0].mxu0
      %v2799 = vadd.f32 0.0, %v2798
      %v2800 = vpop.f32.mrb[0].mxu0
      %2801 = vmatprep.mubr.f32.mxu0 0.0
      %2802 = vmatmul.mubr.f32.gmra.mrb[0].mxu0 %v2590
      %v2803 = vpop.f32.mrb[0].mxu0
      %v2804 = vadd.f32 0.0, %v2803
      %v2805 = vpop.f32.mrb[0].mxu0
      %2806 = vmatprep.mubr.f32.mxu0 0.0
      %2807 = vmatmul.mubr.f32.gmra.mrb[0].mxu0 %v2593
      %v2808 = vpop.f32.mrb[0].mxu0
      %v2809 = vadd.f32 0.0, %v2808
      %v2810 = vpop.f32.mrb[0].mxu0
      %2811 = vmatprep.mubr.f32.mxu0 0.0
      %2812 = vmatmul.mubr.f32.gmra.mrb[0].mxu0 %v2596
      %v2813 = vpop.f32.mrb[0].mxu0
      %v2814 = vadd.f32 0.0, %v2813
      %v2815 = vpop.f32.mrb[0].mxu0
      %2816 = vmatprep.mubr.f32.mxu0 0.0
      %2817 = vmatmul.mubr.f32.gmra.mrb[0].mxu0 %v2599
      %v2818 = vpop.f32.mrb[0].mxu0
      %v2819 = vadd.f32 0.0, %v2818
      %v2820 = vpop.f32.mrb[0].mxu0
      %2821 = vmatprep.mubr.f32.mxu0 0.0
      %2822 = vmatmul.mubr.f32.gmra.mrb[0].mxu0 %v2602
      %v2823 = vpop.f32.mrb[0].mxu0
      %v2824 = vadd.f32 0.0, %v2823
      %v2825 = vpop.f32.mrb[0].mxu0
      %2826 = vmatprep.mubr.f32.mxu0 0.0
      %2827 = vmatmul.mubr.f32.gmra.mrb[0].mxu0 %v2605
      %v2828 = vpop.f32.mrb[0].mxu0
      %v2829 = vadd.f32 0.0, %v2828
      %v2830 = vpop.f32.mrb[0].mxu0
      %2831 = vdwg.mxu0
      %v2832 = vadd.f32 %v2674, %v2679
      %v2833 = vadd.f32 %v2832, %v2684
      %v2834 = vadd.f32 %v2833, %v2689
      %v2835 = vadd.f32 %v2834, %v2694
      %v2836 = vadd.f32 %v2835, %v2699
      %v2837 = vadd.f32 %v2836, %v2704
      %v2838 = vadd.f32 %v2837, %v2709
      %v2839 = vadd.f32 %v2838, %v2714
      %v2840 = vadd.f32 %v2839, %v2719
      %v2841 = vadd.f32 %v2840, %v2724
      %v2842 = vadd.f32 %v2841, %v2729
      %v2843 = vadd.f32 %v2842, %v2734
      %v2844 = vadd.f32 %v2843, %v2739
      %v2845 = vadd.f32 %v2844, %v2744
      %v2846 = vadd.f32 %v2845, %v2749
      %v2847 = vadd.f32 %v2846, %v2754
      %v2848 = vadd.f32 %v2847, %v2759
      %v2849 = vadd.f32 %v2848, %v2764
      %v2850 = vadd.f32 %v2849, %v2769
      %v2851 = vadd.f32 %v2850, %v2774
      %v2852 = vadd.f32 %v2851, %v2779
      %v2853 = vadd.f32 %v2852, %v2784
      %v2854 = vadd.f32 %v2853, %v2789
      %v2855 = vadd.f32 %v2854, %v2794
      %v2856 = vadd.f32 %v2855, %v2799
      %v2857 = vadd.f32 %v2856, %v2804
      %v2858 = vadd.f32 %v2857, %v2809
      %v2859 = vadd.f32 %v2858, %v2814
      %v2860 = vadd.f32 %v2859, %v2819
      %v2861 = vadd.f32 %v2860, %v2824
      %v2862 = vadd.f32 %v2861, %v2829
      %v2863 = vrot.slane %v2862, 4
      %v2864 = vadd.f32 %v2862, %v2863
      %v2865 = vrot.slane %v2864, 2
      %v2866 = vadd.f32 %v2864, %v2865
      %v2867 = vrot.slane %v2866, 1
      %v2868 = vadd.f32 %v2866, %v2867
      %v2869 = vadd.f32 %v2218, %v2868
      %v2870 = vmul.f32 %v2674, %v2674
      %v2871 = vmul.f32 %v2679, %v2679
      %v2872 = vmul.f32 %v2684, %v2684
      %v2873 = vmul.f32 %v2689, %v2689
      %v2874 = vmul.f32 %v2694, %v2694
      %v2875 = vmul.f32 %v2699, %v2699
      %v2876 = vmul.f32 %v2704, %v2704
      %v2877 = vmul.f32 %v2709, %v2709
      %v2878 = vmul.f32 %v2714, %v2714
      %v2879 = vmul.f32 %v2719, %v2719
      %v2880 = vmul.f32 %v2724, %v2724
      %v2881 = vmul.f32 %v2729, %v2729
      %v2882 = vmul.f32 %v2734, %v2734
      %v2883 = vmul.f32 %v2739, %v2739
      %v2884 = vmul.f32 %v2744, %v2744
      %v2885 = vmul.f32 %v2749, %v2749
      %v2886 = vmul.f32 %v2754, %v2754
      %v2887 = vmul.f32 %v2759, %v2759
      %v2888 = vmul.f32 %v2764, %v2764
      %v2889 = vmul.f32 %v2769, %v2769
      %v2890 = vmul.f32 %v2774, %v2774
      %v2891 = vmul.f32 %v2779, %v2779
      %v2892 = vmul.f32 %v2784, %v2784
      %v2893 = vmul.f32 %v2789, %v2789
      %v2894 = vmul.f32 %v2794, %v2794
      %v2895 = vmul.f32 %v2799, %v2799
      %v2896 = vmul.f32 %v2804, %v2804
      %v2897 = vmul.f32 %v2809, %v2809
      %v2898 = vmul.f32 %v2814, %v2814
      %v2899 = vmul.f32 %v2819, %v2819
      %v2900 = vmul.f32 %v2824, %v2824
      %v2901 = vmul.f32 %v2829, %v2829
      %v2902 = vadd.f32 %v2870, %v2871
      %v2903 = vadd.f32 %v2902, %v2872
      %v2904 = vadd.f32 %v2903, %v2873
      %v2905 = vadd.f32 %v2904, %v2874
      %v2906 = vadd.f32 %v2905, %v2875
      %v2907 = vadd.f32 %v2906, %v2876
      %v2908 = vadd.f32 %v2907, %v2877
      %v2909 = vadd.f32 %v2908, %v2878
      %v2910 = vadd.f32 %v2909, %v2879
      %v2911 = vadd.f32 %v2910, %v2880
      %v2912 = vadd.f32 %v2911, %v2881
      %v2913 = vadd.f32 %v2912, %v2882
      %v2914 = vadd.f32 %v2913, %v2883
      %v2915 = vadd.f32 %v2914, %v2884
      %v2916 = vadd.f32 %v2915, %v2885
      %v2917 = vadd.f32 %v2916, %v2886
      %v2918 = vadd.f32 %v2917, %v2887
      %v2919 = vadd.f32 %v2918, %v2888
      %v2920 = vadd.f32 %v2919, %v2889
      %v2921 = vadd.f32 %v2920, %v2890
      %v2922 = vadd.f32 %v2921, %v2891
      %v2923 = vadd.f32 %v2922, %v2892
      %v2924 = vadd.f32 %v2923, %v2893
      %v2925 = vadd.f32 %v2924, %v2894
      %v2926 = vadd.f32 %v2925, %v2895
      %v2927 = vadd.f32 %v2926, %v2896
      %v2928 = vadd.f32 %v2927, %v2897
      %v2929 = vadd.f32 %v2928, %v2898
      %v2930 = vadd.f32 %v2929, %v2899
      %v2931 = vadd.f32 %v2930, %v2900
      %v2932 = vadd.f32 %v2931, %v2901
      %v2933 = vrot.slane %v2932, 4
      %v2934 = vadd.f32 %v2932, %v2933
      %v2935 = vrot.slane %v2934, 2
      %v2936 = vadd.f32 %v2934, %v2935
      %v2937 = vrot.slane %v2936, 1
      %v2938 = vadd.f32 %v2936, %v2937
      %v2939 = vadd.f32 %v2288, %v2938
      %s2940 = scalar_lea.vmem %s177, 512
      %2941 = vst [vmem:[%s2940] sm:$0xff] %v2674
      %2942 = vst [vmem:[%s2940 + $0x8] sm:$0xff] %v2679
      %2943 = vst [vmem:[%s2940 + $0x10] sm:$0xff] %v2684
      %2944 = vst [vmem:[%s2940 + $0x18] sm:$0xff] %v2689
      %2945 = vst [vmem:[%s2940 + $0x20] sm:$0xff] %v2694
      %2946 = vst [vmem:[%s2940 + $0x28] sm:$0xff] %v2699
      %2947 = vst [vmem:[%s2940 + $0x30] sm:$0xff] %v2704
      %2948 = vst [vmem:[%s2940 + $0x38] sm:$0xff] %v2709
      %2949 = vst [vmem:[%s2940 + $0x40] sm:$0xff] %v2714
      %2950 = vst [vmem:[%s2940 + $0x48] sm:$0xff] %v2719
      %2951 = vst [vmem:[%s2940 + $0x50] sm:$0xff] %v2724
      %2952 = vst [vmem:[%s2940 + $0x58] sm:$0xff] %v2729
      %2953 = vst [vmem:[%s2940 + $0x60] sm:$0xff] %v2734
      %2954 = vst [vmem:[%s2940 + $0x68] sm:$0xff] %v2739
      %2955 = vst [vmem:[%s2940 + $0x70] sm:$0xff] %v2744
      %2956 = vst [vmem:[%s2940 + $0x78] sm:$0xff] %v2749
      %2957 = vst [vmem:[%s2940 + $0x80] sm:$0xff] %v2754
      %2958 = vst [vmem:[%s2940 + $0x88] sm:$0xff] %v2759
      %2959 = vst [vmem:[%s2940 + $0x90] sm:$0xff] %v2764
      %2960 = vst [vmem:[%s2940 + $0x98] sm:$0xff] %v2769
      %2961 = vst [vmem:[%s2940 + $0xa0] sm:$0xff] %v2774
      %2962 = vst [vmem:[%s2940 + $0xa8] sm:$0xff] %v2779
      %2963 = vst [vmem:[%s2940 + $0xb0] sm:$0xff] %v2784
      %2964 = vst [vmem:[%s2940 + $0xb8] sm:$0xff] %v2789
      %2965 = vst [vmem:[%s2940 + $0xc0] sm:$0xff] %v2794
      %2966 = vst [vmem:[%s2940 + $0xc8] sm:$0xff] %v2799
      %2967 = vst [vmem:[%s2940 + $0xd0] sm:$0xff] %v2804
      %2968 = vst [vmem:[%s2940 + $0xd8] sm:$0xff] %v2809
      %2969 = vst [vmem:[%s2940 + $0xe0] sm:$0xff] %v2814
      %2970 = vst [vmem:[%s2940 + $0xe8] sm:$0xff] %v2819
      %2971 = vst [vmem:[%s2940 + $0xf0] sm:$0xff] %v2824
      %2972 = vst [vmem:[%s2940 + $0xf8] sm:$0xff] %v2829
      %2973 = vst.msk [vmem:[#allocation2] sm:$0xff] %vm236, %v325
      %2974 = vst.msk [vmem:[#allocation2 + $0x8] sm:$0xff] %vm236, %v327
      %2975 = vst.msk [vmem:[#allocation2 + $0x10] sm:$0xff] %vm236, %v330
      %2976 = vst.msk [vmem:[#allocation2 + $0x18] sm:$0xff] %vm236, %v332
      %2977 = vst.msk [vmem:[#allocation2 + $0x20] sm:$0xff] %vm236, %v335
      %2978 = vst.msk [vmem:[#allocation2 + $0x28] sm:$0xff] %vm236, %v337
      %2979 = vst.msk [vmem:[#allocation2 + $0x30] sm:$0xff] %vm236, %v340
      %2980 = vst.msk [vmem:[#allocation2 + $0x38] sm:$0xff] %vm236, %v342
      %2981 = vst.msk [vmem:[#allocation2 + $0x40] sm:$0xff] %vm236, %v345
      %2982 = vst.msk [vmem:[#allocation2 + $0x48] sm:$0xff] %vm236, %v347
      %2983 = vst.msk [vmem:[#allocation2 + $0x50] sm:$0xff] %vm236, %v350
      %2984 = vst.msk [vmem:[#allocation2 + $0x58] sm:$0xff] %vm236, %v352
      %2985 = vst.msk [vmem:[#allocation2 + $0x60] sm:$0xff] %vm236, %v355
      %2986 = vst.msk [vmem:[#allocation2 + $0x68] sm:$0xff] %vm236, %v357
      %2987 = vst.msk [vmem:[#allocation2 + $0x70] sm:$0xff] %vm236, %v360
      %2988 = vst.msk [vmem:[#allocation2 + $0x78] sm:$0xff] %vm236, %v362
      %2989 = vst.msk [vmem:[#allocation2 + $0x80] sm:$0xff] %vm236, %v365
      %2990 = vst.msk [vmem:[#allocation2 + $0x88] sm:$0xff] %vm236, %v367
      %2991 = vst.msk [vmem:[#allocation2 + $0x90] sm:$0xff] %vm236, %v370
      %2992 = vst.msk [vmem:[#allocation2 + $0x98] sm:$0xff] %vm236, %v372
      %2993 = vst.msk [vmem:[#allocation2 + $0xa0] sm:$0xff] %vm236, %v375
      %2994 = vst.msk [vmem:[#allocation2 + $0xa8] sm:$0xff] %vm236, %v377
      %2995 = vst.msk [vmem:[#allocation2 + $0xb0] sm:$0xff] %vm236, %v380
      %2996 = vst.msk [vmem:[#allocation2 + $0xb8] sm:$0xff] %vm236, %v382
      %2997 = vst.msk [vmem:[#allocation2 + $0xc0] sm:$0xff] %vm236, %v385
      %2998 = vst.msk [vmem:[#allocation2 + $0xc8] sm:$0xff] %vm236, %v387
      %2999 = vst.msk [vmem:[#allocation2 + $0xd0] sm:$0xff] %vm236, %v390
      %3000 = vst.msk [vmem:[#allocation2 + $0xd8] sm:$0xff] %vm236, %v392
      %3001 = vst.msk [vmem:[#allocation2 + $0xe0] sm:$0xff] %vm236, %v395
      %3002 = vst.msk [vmem:[#allocation2 + $0xe8] sm:$0xff] %vm236, %v397
      %3003 = vst.msk [vmem:[#allocation2 + $0xf0] sm:$0xff] %vm236, %v693
      %3004 = vst.msk [vmem:[#allocation2 + $0xf8] sm:$0xff] %vm236, %v695
      %3005 = vrot.lane.b32.xlu0 %v1694, 4
      %v3006 = vpop.permute.xlu0 %3005
      %3007 = vrot.lane.b32.xlu0 %v1696, 4
      %v3008 = vpop.permute.xlu0 %3007
      %3011 = vst.msk [vmem:[#allocation2] sm:$0xff] %vm526, %v1441
      %3012 = vst.msk [vmem:[#allocation2 + $0x8] sm:$0xff] %vm526, %v1443
      %3013 = vst.msk [vmem:[#allocation2 + $0x10] sm:$0xff] %vm526, %v1445
      %3014 = vst.msk [vmem:[#allocation2 + $0x18] sm:$0xff] %vm526, %v1447
      %3015 = vst.msk [vmem:[#allocation2 + $0x20] sm:$0xff] %vm526, %v1449
      %3016 = vst.msk [vmem:[#allocation2 + $0x28] sm:$0xff] %vm526, %v1451
      %3017 = vst.msk [vmem:[#allocation2 + $0x30] sm:$0xff] %vm526, %v1453
      %3018 = vst.msk [vmem:[#allocation2 + $0x38] sm:$0xff] %vm526, %v1455
      %3019 = vst.msk [vmem:[#allocation2 + $0x40] sm:$0xff] %vm526, %v1457
      %3020 = vst.msk [vmem:[#allocation2 + $0x48] sm:$0xff] %vm526, %v1459
      %3021 = vst.msk [vmem:[#allocation2 + $0x50] sm:$0xff] %vm526, %v1461
      %3022 = vst.msk [vmem:[#allocation2 + $0x58] sm:$0xff] %vm526, %v1463
      %3023 = vst.msk [vmem:[#allocation2 + $0x60] sm:$0xff] %vm526, %v1465
      %3024 = vst.msk [vmem:[#allocation2 + $0x68] sm:$0xff] %vm526, %v1467
      %3025 = vst.msk [vmem:[#allocation2 + $0x70] sm:$0xff] %vm526, %v1469
      %3026 = vst.msk [vmem:[#allocation2 + $0x78] sm:$0xff] %vm526, %v1471
      %3027 = vst.msk [vmem:[#allocation2 + $0x80] sm:$0xff] %vm526, %v1473
      %3028 = vst.msk [vmem:[#allocation2 + $0x88] sm:$0xff] %vm526, %v1475
      %3029 = vst.msk [vmem:[#allocation2 + $0x90] sm:$0xff] %vm526, %v1477
      %3030 = vst.msk [vmem:[#allocation2 + $0x98] sm:$0xff] %vm526, %v1479
      %3031 = vst.msk [vmem:[#allocation2 + $0xa0] sm:$0xff] %vm526, %v1481
      %3032 = vst.msk [vmem:[#allocation2 + $0xa8] sm:$0xff] %vm526, %v1483
      %3033 = vst.msk [vmem:[#allocation2 + $0xb0] sm:$0xff] %vm526, %v1485
      %3034 = vst.msk [vmem:[#allocation2 + $0xb8] sm:$0xff] %vm526, %v1487
      %3035 = vst.msk [vmem:[#allocation2 + $0xc0] sm:$0xff] %vm526, %v1489
      %3036 = vst.msk [vmem:[#allocation2 + $0xc8] sm:$0xff] %vm526, %v1491
      %3037 = vst.msk [vmem:[#allocation2 + $0xd0] sm:$0xff] %vm526, %v1493
      %3038 = vst.msk [vmem:[#allocation2 + $0xd8] sm:$0xff] %vm526, %v1495
      %3039 = vst.msk [vmem:[#allocation2 + $0xe0] sm:$0xff] %vm526, %v1497
      %3040 = vst.msk [vmem:[#allocation2 + $0xe8] sm:$0xff] %vm526, %v1499
      %3041 = vst.msk [vmem:[#allocation2 + $0xf0] sm:$0xff] %vm526, %v3006
      %3042 = vst.msk [vmem:[#allocation2 + $0xf8] sm:$0xff] %vm526, %v3008
      %3043 = vrot.lane.b32.xlu0 %v2435, 8
      %v3044 = vpop.permute.xlu0 %3043
      %3045 = vrot.lane.b32.xlu0 %v2437, 8
      %v3046 = vpop.permute.xlu0 %3045
      %3049 = vst.msk [vmem:[#allocation2] sm:$0xff] %vm657, %v1569
      %3050 = vst.msk [vmem:[#allocation2 + $0x8] sm:$0xff] %vm657, %v1571
      %3051 = vst.msk [vmem:[#allocation2 + $0x10] sm:$0xff] %vm657, %v1573
      %3052 = vst.msk [vmem:[#allocation2 + $0x18] sm:$0xff] %vm657, %v1575
      %3053 = vst.msk [vmem:[#allocation2 + $0x20] sm:$0xff] %vm657, %v1577
      %3054 = vst.msk [vmem:[#allocation2 + $0x28] sm:$0xff] %vm657, %v1579
      %3055 = vst.msk [vmem:[#allocation2 + $0x30] sm:$0xff] %vm657, %v1581
      %3056 = vst.msk [vmem:[#allocation2 + $0x38] sm:$0xff] %vm657, %v1583
      %3057 = vst.msk [vmem:[#allocation2 + $0x40] sm:$0xff] %vm657, %v1585
      %3058 = vst.msk [vmem:[#allocation2 + $0x48] sm:$0xff] %vm657, %v1587
      %3059 = vst.msk [vmem:[#allocation2 + $0x50] sm:$0xff] %vm657, %v1589
      %3060 = vst.msk [vmem:[#allocation2 + $0x58] sm:$0xff] %vm657, %v1591
      %3061 = vst.msk [vmem:[#allocation2 + $0x60] sm:$0xff] %vm657, %v1593
      %3062 = vst.msk [vmem:[#allocation2 + $0x68] sm:$0xff] %vm657, %v1595
      %3063 = vst.msk [vmem:[#allocation2 + $0x70] sm:$0xff] %vm657, %v1597
      %3064 = vst.msk [vmem:[#allocation2 + $0x78] sm:$0xff] %vm657, %v1599
      %3065 = vst.msk [vmem:[#allocation2 + $0x80] sm:$0xff] %vm657, %v1601
      %3066 = vst.msk [vmem:[#allocation2 + $0x88] sm:$0xff] %vm657, %v1603
      %3067 = vst.msk [vmem:[#allocation2 + $0x90] sm:$0xff] %vm657, %v1605
      %3068 = vst.msk [vmem:[#allocation2 + $0x98] sm:$0xff] %vm657, %v1607
      %3069 = vst.msk [vmem:[#allocation2 + $0xa0] sm:$0xff] %vm657, %v1609
      %3070 = vst.msk [vmem:[#allocation2 + $0xa8] sm:$0xff] %vm657, %v1611
      %3071 = vst.msk [vmem:[#allocation2 + $0xb0] sm:$0xff] %vm657, %v1613
      %3072 = vst.msk [vmem:[#allocation2 + $0xb8] sm:$0xff] %vm657, %v1615
      %3073 = vst.msk [vmem:[#allocation2 + $0xc0] sm:$0xff] %vm657, %v1617
      %3074 = vst.msk [vmem:[#allocation2 + $0xc8] sm:$0xff] %vm657, %v1619
      %3075 = vst.msk [vmem:[#allocation2 + $0xd0] sm:$0xff] %vm657, %v1621
      %3076 = vst.msk [vmem:[#allocation2 + $0xd8] sm:$0xff] %vm657, %v1623
      %3077 = vst.msk [vmem:[#allocation2 + $0xe0] sm:$0xff] %vm657, %v1625
      %3078 = vst.msk [vmem:[#allocation2 + $0xe8] sm:$0xff] %vm657, %v1627
      %3079 = vst.msk [vmem:[#allocation2 + $0xf0] sm:$0xff] %vm657, %v3044
      %3080 = vst.msk [vmem:[#allocation2 + $0xf8] sm:$0xff] %vm657, %v3046
      %v3081 = vrot.slane %v233, 2
      %v3082 = vrot.slane %v234, 2
      %v3083 = vsel %vm1355, %v3081, %v3082
      %v3084 = vrot.slane %v235, 2
      %v3085 = vsel %vm1355, %v3082, %v3084
      %3086 = vrot.lane.b32.xlu0 %v3083, 12
      %v3087 = vpop.permute.xlu0 %3086
      %3088 = vrot.lane.b32.xlu0 %v3085, 12
      %v3089 = vpop.permute.xlu0 %3088
      %3092 = vst.msk [vmem:[#allocation2] sm:$0xff] %vm794, %v1702
      %3093 = vst.msk [vmem:[#allocation2 + $0x8] sm:$0xff] %vm794, %v1704
      %3094 = vst.msk [vmem:[#allocation2 + $0x10] sm:$0xff] %vm794, %v1706
      %3095 = vst.msk [vmem:[#allocation2 + $0x18] sm:$0xff] %vm794, %v1708
      %3096 = vst.msk [vmem:[#allocation2 + $0x20] sm:$0xff] %vm794, %v1710
      %3097 = vst.msk [vmem:[#allocation2 + $0x28] sm:$0xff] %vm794, %v1712
      %3098 = vst.msk [vmem:[#allocation2 + $0x30] sm:$0xff] %vm794, %v1714
      %3099 = vst.msk [vmem:[#allocation2 + $0x38] sm:$0xff] %vm794, %v1716
      %3100 = vst.msk [vmem:[#allocation2 + $0x40] sm:$0xff] %vm794, %v1718
      %3101 = vst.msk [vmem:[#allocation2 + $0x48] sm:$0xff] %vm794, %v1720
      %3102 = vst.msk [vmem:[#allocation2 + $0x50] sm:$0xff] %vm794, %v1722
      %3103 = vst.msk [vmem:[#allocation2 + $0x58] sm:$0xff] %vm794, %v1724
      %3104 = vst.msk [vmem:[#allocation2 + $0x60] sm:$0xff] %vm794, %v1726
      %3105 = vst.msk [vmem:[#allocation2 + $0x68] sm:$0xff] %vm794, %v1728
      %3106 = vst.msk [vmem:[#allocation2 + $0x70] sm:$0xff] %vm794, %v1730
      %3107 = vst.msk [vmem:[#allocation2 + $0x78] sm:$0xff] %vm794, %v1732
      %3108 = vst.msk [vmem:[#allocation2 + $0x80] sm:$0xff] %vm794, %v1734
      %3109 = vst.msk [vmem:[#allocation2 + $0x88] sm:$0xff] %vm794, %v1736
      %3110 = vst.msk [vmem:[#allocation2 + $0x90] sm:$0xff] %vm794, %v1738
      %3111 = vst.msk [vmem:[#allocation2 + $0x98] sm:$0xff] %vm794, %v1740
      %3112 = vst.msk [vmem:[#allocation2 + $0xa0] sm:$0xff] %vm794, %v1742
      %3113 = vst.msk [vmem:[#allocation2 + $0xa8] sm:$0xff] %vm794, %v1744
      %3114 = vst.msk [vmem:[#allocation2 + $0xb0] sm:$0xff] %vm794, %v1746
      %3115 = vst.msk [vmem:[#allocation2 + $0xb8] sm:$0xff] %vm794, %v1748
      %3116 = vst.msk [vmem:[#allocation2 + $0xc0] sm:$0xff] %vm794, %v1750
      %3117 = vst.msk [vmem:[#allocation2 + $0xc8] sm:$0xff] %vm794, %v1752
      %3118 = vst.msk [vmem:[#allocation2 + $0xd0] sm:$0xff] %vm794, %v1754
      %3119 = vst.msk [vmem:[#allocation2 + $0xd8] sm:$0xff] %vm794, %v1756
      %3120 = vst.msk [vmem:[#allocation2 + $0xe0] sm:$0xff] %vm794, %v1758
      %3121 = vst.msk [vmem:[#allocation2 + $0xe8] sm:$0xff] %vm794, %v1760
      %3122 = vst.msk [vmem:[#allocation2 + $0xf0] sm:$0xff] %vm794, %v3087
      %3123 = vst.msk [vmem:[#allocation2 + $0xf8] sm:$0xff] %vm794, %v3089
      %v3124 = vld [vmem:[#allocation2] sm:$0xff]
      %v3125 = vld [vmem:[#allocation2 + $0x8] sm:$0xff]
      %v3126 = vld [vmem:[#allocation2 + $0x10] sm:$0xff]
      %v3127 = vld [vmem:[#allocation2 + $0x18] sm:$0xff]
      %v3128 = vld [vmem:[#allocation2 + $0x20] sm:$0xff]
      %v3129 = vld [vmem:[#allocation2 + $0x28] sm:$0xff]
      %v3130 = vld [vmem:[#allocation2 + $0x30] sm:$0xff]
      %v3131 = vld [vmem:[#allocation2 + $0x38] sm:$0xff]
      %v3132 = vld [vmem:[#allocation2 + $0x40] sm:$0xff]
      %v3133 = vld [vmem:[#allocation2 + $0x48] sm:$0xff]
      %v3134 = vld [vmem:[#allocation2 + $0x50] sm:$0xff]
      %v3135 = vld [vmem:[#allocation2 + $0x58] sm:$0xff]
      %v3136 = vld [vmem:[#allocation2 + $0x60] sm:$0xff]
      %v3137 = vld [vmem:[#allocation2 + $0x68] sm:$0xff]
      %v3138 = vld [vmem:[#allocation2 + $0x70] sm:$0xff]
      %v3139 = vld [vmem:[#allocation2 + $0x78] sm:$0xff]
      %v3140 = vld [vmem:[#allocation2 + $0x80] sm:$0xff]
      %v3141 = vld [vmem:[#allocation2 + $0x88] sm:$0xff]
      %v3142 = vld [vmem:[#allocation2 + $0x90] sm:$0xff]
      %v3143 = vld [vmem:[#allocation2 + $0x98] sm:$0xff]
      %v3144 = vld [vmem:[#allocation2 + $0xa0] sm:$0xff]
      %v3145 = vld [vmem:[#allocation2 + $0xa8] sm:$0xff]
      %v3146 = vld [vmem:[#allocation2 + $0xb0] sm:$0xff]
      %v3147 = vld [vmem:[#allocation2 + $0xb8] sm:$0xff]
      %v3148 = vld [vmem:[#allocation2 + $0xc0] sm:$0xff]
      %v3149 = vld [vmem:[#allocation2 + $0xc8] sm:$0xff]
      %v3150 = vld [vmem:[#allocation2 + $0xd0] sm:$0xff]
      %v3151 = vld [vmem:[#allocation2 + $0xd8] sm:$0xff]
      %v3152 = vld [vmem:[#allocation2 + $0xe0] sm:$0xff]
      %v3153 = vld [vmem:[#allocation2 + $0xe8] sm:$0xff]
      %v3154 = vld [vmem:[#allocation2 + $0xf0] sm:$0xff]
      %v3155 = vld [vmem:[#allocation2 + $0xf8] sm:$0xff]
      %s3156 = scalar_lea.vmem %s1, 48
      %v3157 = vld [vmem:[%s3156] sm:$0xff]
      %v3158 = vld [vmem:[%s3156 + $0x8] sm:$0xff]
      %v3160 = vsel %vm861, %v3124, 0
      %v3163 = vsel %vm861, %v3125, 0
      %v3166 = vsel %vm861, %v3126, 0
      %v3169 = vsel %vm861, %v3127, 0
      %v3172 = vsel %vm861, %v3128, 0
      %v3175 = vsel %vm861, %v3129, 0
      %v3178 = vsel %vm861, %v3130, 0
      %v3181 = vsel %vm861, %v3131, 0
      %v3184 = vsel %vm861, %v3132, 0
      %v3187 = vsel %vm861, %v3133, 0
      %v3190 = vsel %vm861, %v3134, 0
      %v3193 = vsel %vm861, %v3135, 0
      %v3196 = vsel %vm861, %v3136, 0
      %v3199 = vsel %vm861, %v3137, 0
      %v3202 = vsel %vm861, %v3138, 0
      %v3205 = vsel %vm861, %v3139, 0
      %v3208 = vsel %vm861, %v3140, 0
      %v3211 = vsel %vm861, %v3141, 0
      %v3214 = vsel %vm861, %v3142, 0
      %v3217 = vsel %vm861, %v3143, 0
      %v3220 = vsel %vm861, %v3144, 0
      %v3223 = vsel %vm861, %v3145, 0
      %v3226 = vsel %vm861, %v3146, 0
      %v3229 = vsel %vm861, %v3147, 0
      %v3232 = vsel %vm861, %v3148, 0
      %v3235 = vsel %vm861, %v3149, 0
      %v3238 = vsel %vm861, %v3150, 0
      %v3241 = vsel %vm861, %v3151, 0
      %v3244 = vsel %vm861, %v3152, 0
      %v3247 = vsel %vm861, %v3153, 0
      %v3250 = vsel %vm861, %v3154, 0
      %v3253 = vsel %vm861, %v3155, 0
      %3255 = vmatprep.subr.mxu0 0.0
      %3256 = vmatpush1.msra.mxu0 %v3157
      %3257 = vmatprep.subr.mxu0 0.0
      %3258 = vmatpush1.msra.mxu0 %v3158
      %3259 = vmatprep.subr.mxu0 0.0
      %3260 = vmatpush1.msra.mxu0 0.0
      %3261 = vmatprep.subr.mxu0 0.0
      %3262 = vmatpush1.msra.mxu0 0.0
      %3263 = vmatprep.subr.mxu0 0.0
      %3264 = vmatpush1.msra.mxu0 0.0
      %3265 = vmatprep.subr.mxu0 0.0
      %3266 = vmatpush1.msra.mxu0 0.0
      %3267 = vmatprep.subr.mxu0 0.0
      %3268 = vmatpush1.msra.mxu0 0.0
      %3269 = vmatprep.subr.mxu0 0.0
      %3270 = vmatpush1.msra.mxu0 0.0
      %3271 = vmatprep.subr.mxu0 0.0
      %3272 = vmatpush1.msra.mxu0 0.0
      %3273 = vmatprep.subr.mxu0 0.0
      %3274 = vmatpush1.msra.mxu0 0.0
      %3275 = vmatprep.subr.mxu0 0.0
      %3276 = vmatpush1.msra.mxu0 0.0
      %3277 = vmatprep.subr.mxu0 0.0
      %3278 = vmatpush1.msra.mxu0 0.0
      %3279 = vmatprep.subr.mxu0 0.0
      %3280 = vmatpush1.msra.mxu0 0.0
      %3281 = vmatprep.subr.mxu0 0.0
      %3282 = vmatpush1.msra.mxu0 0.0
      %3283 = vmatprep.subr.mxu0 0.0
      %3284 = vmatpush1.msra.mxu0 0.0
      %3285 = vmatprep.subr.mxu0 0.0
      %3286 = vmatpush1.msra.mxu0 0.0
      %3287 = vmatprep.subr.mxu0 0.0
      %3288 = vmatpush1.msra.mxu0 0.0
      %3289 = vmatprep.subr.mxu0 0.0
      %3290 = vmatpush1.msra.mxu0 0.0
      %3291 = vmatprep.subr.mxu0 0.0
      %3292 = vmatpush1.msra.mxu0 0.0
      %3293 = vmatprep.subr.mxu0 0.0
      %3294 = vmatpush1.msra.mxu0 0.0
      %3295 = vmatprep.subr.mxu0 0.0
      %3296 = vmatpush1.msra.mxu0 0.0
      %3297 = vmatprep.subr.mxu0 0.0
      %3298 = vmatpush1.msra.mxu0 0.0
      %3299 = vmatprep.subr.mxu0 0.0
      %3300 = vmatpush1.msra.mxu0 0.0
      %3301 = vmatprep.subr.mxu0 0.0
      %3302 = vmatpush1.msra.mxu0 0.0
      %3303 = vmatprep.subr.mxu0 0.0
      %3304 = vmatpush1.msra.mxu0 0.0
      %3305 = vmatprep.subr.mxu0 0.0
      %3306 = vmatpush1.msra.mxu0 0.0
      %3307 = vmatprep.subr.mxu0 0.0
      %3308 = vmatpush1.msra.mxu0 0.0
      %3309 = vmatprep.subr.mxu0 0.0
      %3310 = vmatpush1.msra.mxu0 0.0
      %3311 = vmatprep.subr.mxu0 0.0
      %3312 = vmatpush1.msra.mxu0 0.0
      %3313 = vmatprep.subr.mxu0 0.0
      %3314 = vmatpush1.msra.mxu0 0.0
      %3315 = vmatprep.subr.mxu0 0.0
      %3316 = vmatpush1.msra.mxu0 0.0
      %3317 = vmatprep.subr.mxu0 0.0
      %3318 = vmatpush1.msra.mxu0 0.0
      %3319 = vmatprep.mubr.f32.mxu0 0.0
      %3320 = vmatmul.mubr.f32.gmra.mrb[0].mxu0 %v3160
      %v3321 = vpop.f32.mrb[0].mxu0
      %v3322 = vadd.f32 0.0, %v3321
      %v3323 = vpop.f32.mrb[0].mxu0
      %3324 = vmatprep.mubr.f32.mxu0 0.0
      %3325 = vmatmul.mubr.f32.gmra.mrb[0].mxu0 %v3163
      %v3326 = vpop.f32.mrb[0].mxu0
      %v3327 = vadd.f32 0.0, %v3326
      %v3328 = vpop.f32.mrb[0].mxu0
      %3329 = vmatprep.mubr.f32.mxu0 0.0
      %3330 = vmatmul.mubr.f32.gmra.mrb[0].mxu0 %v3166
      %v3331 = vpop.f32.mrb[0].mxu0
      %v3332 = vadd.f32 0.0, %v3331
      %v3333 = vpop.f32.mrb[0].mxu0
      %3334 = vmatprep.mubr.f32.mxu0 0.0
      %3335 = vmatmul.mubr.f32.gmra.mrb[0].mxu0 %v3169
      %v3336 = vpop.f32.mrb[0].mxu0
      %v3337 = vadd.f32 0.0, %v3336
      %v3338 = vpop.f32.mrb[0].mxu0
      %3339 = vmatprep.mubr.f32.mxu0 0.0
      %3340 = vmatmul.mubr.f32.gmra.mrb[0].mxu0 %v3172
      %v3341 = vpop.f32.mrb[0].mxu0
      %v3342 = vadd.f32 0.0, %v3341
      %v3343 = vpop.f32.mrb[0].mxu0
      %3344 = vmatprep.mubr.f32.mxu0 0.0
      %3345 = vmatmul.mubr.f32.gmra.mrb[0].mxu0 %v3175
      %v3346 = vpop.f32.mrb[0].mxu0
      %v3347 = vadd.f32 0.0, %v3346
      %v3348 = vpop.f32.mrb[0].mxu0
      %3349 = vmatprep.mubr.f32.mxu0 0.0
      %3350 = vmatmul.mubr.f32.gmra.mrb[0].mxu0 %v3178
      %v3351 = vpop.f32.mrb[0].mxu0
      %v3352 = vadd.f32 0.0, %v3351
      %v3353 = vpop.f32.mrb[0].mxu0
      %3354 = vmatprep.mubr.f32.mxu0 0.0
      %3355 = vmatmul.mubr.f32.gmra.mrb[0].mxu0 %v3181
      %v3356 = vpop.f32.mrb[0].mxu0
      %v3357 = vadd.f32 0.0, %v3356
      %v3358 = vpop.f32.mrb[0].mxu0
      %3359 = vmatprep.mubr.f32.mxu0 0.0
      %3360 = vmatmul.mubr.f32.gmra.mrb[0].mxu0 %v3184
      %v3361 = vpop.f32.mrb[0].mxu0
      %v3362 = vadd.f32 0.0, %v3361
      %v3363 = vpop.f32.mrb[0].mxu0
      %3364 = vmatprep.mubr.f32.mxu0 0.0
      %3365 = vmatmul.mubr.f32.gmra.mrb[0].mxu0 %v3187
      %v3366 = vpop.f32.mrb[0].mxu0
      %v3367 = vadd.f32 0.0, %v3366
      %v3368 = vpop.f32.mrb[0].mxu0
      %3369 = vmatprep.mubr.f32.mxu0 0.0
      %3370 = vmatmul.mubr.f32.gmra.mrb[0].mxu0 %v3190
      %v3371 = vpop.f32.mrb[0].mxu0
      %v3372 = vadd.f32 0.0, %v3371
      %v3373 = vpop.f32.mrb[0].mxu0
      %3374 = vmatprep.mubr.f32.mxu0 0.0
      %3375 = vmatmul.mubr.f32.gmra.mrb[0].mxu0 %v3193
      %v3376 = vpop.f32.mrb[0].mxu0
      %v3377 = vadd.f32 0.0, %v3376
      %v3378 = vpop.f32.mrb[0].mxu0
      %3379 = vmatprep.mubr.f32.mxu0 0.0
      %3380 = vmatmul.mubr.f32.gmra.mrb[0].mxu0 %v3196
      %v3381 = vpop.f32.mrb[0].mxu0
      %v3382 = vadd.f32 0.0, %v3381
      %v3383 = vpop.f32.mrb[0].mxu0
      %3384 = vmatprep.mubr.f32.mxu0 0.0
      %3385 = vmatmul.mubr.f32.gmra.mrb[0].mxu0 %v3199
      %v3386 = vpop.f32.mrb[0].mxu0
      %v3387 = vadd.f32 0.0, %v3386
      %v3388 = vpop.f32.mrb[0].mxu0
      %3389 = vmatprep.mubr.f32.mxu0 0.0
      %3390 = vmatmul.mubr.f32.gmra.mrb[0].mxu0 %v3202
      %v3391 = vpop.f32.mrb[0].mxu0
      %v3392 = vadd.f32 0.0, %v3391
      %v3393 = vpop.f32.mrb[0].mxu0
      %3394 = vmatprep.mubr.f32.mxu0 0.0
      %3395 = vmatmul.mubr.f32.gmra.mrb[0].mxu0 %v3205
      %v3396 = vpop.f32.mrb[0].mxu0
      %v3397 = vadd.f32 0.0, %v3396
      %v3398 = vpop.f32.mrb[0].mxu0
      %3399 = vmatprep.mubr.f32.mxu0 0.0
      %3400 = vmatmul.mubr.f32.gmra.mrb[0].mxu0 %v3208
      %v3401 = vpop.f32.mrb[0].mxu0
      %v3402 = vadd.f32 0.0, %v3401
      %v3403 = vpop.f32.mrb[0].mxu0
      %3404 = vmatprep.mubr.f32.mxu0 0.0
      %3405 = vmatmul.mubr.f32.gmra.mrb[0].mxu0 %v3211
      %v3406 = vpop.f32.mrb[0].mxu0
      %v3407 = vadd.f32 0.0, %v3406
      %v3408 = vpop.f32.mrb[0].mxu0
      %3409 = vmatprep.mubr.f32.mxu0 0.0
      %3410 = vmatmul.mubr.f32.gmra.mrb[0].mxu0 %v3214
      %v3411 = vpop.f32.mrb[0].mxu0
      %v3412 = vadd.f32 0.0, %v3411
      %v3413 = vpop.f32.mrb[0].mxu0
      %3414 = vmatprep.mubr.f32.mxu0 0.0
      %3415 = vmatmul.mubr.f32.gmra.mrb[0].mxu0 %v3217
      %v3416 = vpop.f32.mrb[0].mxu0
      %v3417 = vadd.f32 0.0, %v3416
      %v3418 = vpop.f32.mrb[0].mxu0
      %3419 = vmatprep.mubr.f32.mxu0 0.0
      %3420 = vmatmul.mubr.f32.gmra.mrb[0].mxu0 %v3220
      %v3421 = vpop.f32.mrb[0].mxu0
      %v3422 = vadd.f32 0.0, %v3421
      %v3423 = vpop.f32.mrb[0].mxu0
      %3424 = vmatprep.mubr.f32.mxu0 0.0
      %3425 = vmatmul.mubr.f32.gmra.mrb[0].mxu0 %v3223
      %v3426 = vpop.f32.mrb[0].mxu0
      %v3427 = vadd.f32 0.0, %v3426
      %v3428 = vpop.f32.mrb[0].mxu0
      %3429 = vmatprep.mubr.f32.mxu0 0.0
      %3430 = vmatmul.mubr.f32.gmra.mrb[0].mxu0 %v3226
      %v3431 = vpop.f32.mrb[0].mxu0
      %v3432 = vadd.f32 0.0, %v3431
      %v3433 = vpop.f32.mrb[0].mxu0
      %3434 = vmatprep.mubr.f32.mxu0 0.0
      %3435 = vmatmul.mubr.f32.gmra.mrb[0].mxu0 %v3229
      %v3436 = vpop.f32.mrb[0].mxu0
      %v3437 = vadd.f32 0.0, %v3436
      %v3438 = vpop.f32.mrb[0].mxu0
      %3439 = vmatprep.mubr.f32.mxu0 0.0
      %3440 = vmatmul.mubr.f32.gmra.mrb[0].mxu0 %v3232
      %v3441 = vpop.f32.mrb[0].mxu0
      %v3442 = vadd.f32 0.0, %v3441
      %v3443 = vpop.f32.mrb[0].mxu0
      %3444 = vmatprep.mubr.f32.mxu0 0.0
      %3445 = vmatmul.mubr.f32.gmra.mrb[0].mxu0 %v3235
      %v3446 = vpop.f32.mrb[0].mxu0
      %v3447 = vadd.f32 0.0, %v3446
      %v3448 = vpop.f32.mrb[0].mxu0
      %3449 = vmatprep.mubr.f32.mxu0 0.0
      %3450 = vmatmul.mubr.f32.gmra.mrb[0].mxu0 %v3238
      %v3451 = vpop.f32.mrb[0].mxu0
      %v3452 = vadd.f32 0.0, %v3451
      %v3453 = vpop.f32.mrb[0].mxu0
      %3454 = vmatprep.mubr.f32.mxu0 0.0
      %3455 = vmatmul.mubr.f32.gmra.mrb[0].mxu0 %v3241
      %v3456 = vpop.f32.mrb[0].mxu0
      %v3457 = vadd.f32 0.0, %v3456
      %v3458 = vpop.f32.mrb[0].mxu0
      %3459 = vmatprep.mubr.f32.mxu0 0.0
      %3460 = vmatmul.mubr.f32.gmra.mrb[0].mxu0 %v3244
      %v3461 = vpop.f32.mrb[0].mxu0
      %v3462 = vadd.f32 0.0, %v3461
      %v3463 = vpop.f32.mrb[0].mxu0
      %3464 = vmatprep.mubr.f32.mxu0 0.0
      %3465 = vmatmul.mubr.f32.gmra.mrb[0].mxu0 %v3247
      %v3466 = vpop.f32.mrb[0].mxu0
      %v3467 = vadd.f32 0.0, %v3466
      %v3468 = vpop.f32.mrb[0].mxu0
      %3469 = vmatprep.mubr.f32.mxu0 0.0
      %3470 = vmatmul.mubr.f32.gmra.mrb[0].mxu0 %v3250
      %v3471 = vpop.f32.mrb[0].mxu0
      %v3472 = vadd.f32 0.0, %v3471
      %v3473 = vpop.f32.mrb[0].mxu0
      %3474 = vmatprep.mubr.f32.mxu0 0.0
      %3475 = vmatmul.mubr.f32.gmra.mrb[0].mxu0 %v3253
      %v3476 = vpop.f32.mrb[0].mxu0
      %v3477 = vadd.f32 0.0, %v3476
      %v3478 = vpop.f32.mrb[0].mxu0
      %3479 = vdwg.mxu0
      %v3480 = vadd.f32 %v3322, %v3327
      %v3481 = vadd.f32 %v3480, %v3332
      %v3482 = vadd.f32 %v3481, %v3337
      %v3483 = vadd.f32 %v3482, %v3342
      %v3484 = vadd.f32 %v3483, %v3347
      %v3485 = vadd.f32 %v3484, %v3352
      %v3486 = vadd.f32 %v3485, %v3357
      %v3487 = vadd.f32 %v3486, %v3362
      %v3488 = vadd.f32 %v3487, %v3367
      %v3489 = vadd.f32 %v3488, %v3372
      %v3490 = vadd.f32 %v3489, %v3377
      %v3491 = vadd.f32 %v3490, %v3382
      %v3492 = vadd.f32 %v3491, %v3387
      %v3493 = vadd.f32 %v3492, %v3392
      %v3494 = vadd.f32 %v3493, %v3397
      %v3495 = vadd.f32 %v3494, %v3402
      %v3496 = vadd.f32 %v3495, %v3407
      %v3497 = vadd.f32 %v3496, %v3412
      %v3498 = vadd.f32 %v3497, %v3417
      %v3499 = vadd.f32 %v3498, %v3422
      %v3500 = vadd.f32 %v3499, %v3427
      %v3501 = vadd.f32 %v3500, %v3432
      %v3502 = vadd.f32 %v3501, %v3437
      %v3503 = vadd.f32 %v3502, %v3442
      %v3504 = vadd.f32 %v3503, %v3447
      %v3505 = vadd.f32 %v3504, %v3452
      %v3506 = vadd.f32 %v3505, %v3457
      %v3507 = vadd.f32 %v3506, %v3462
      %v3508 = vadd.f32 %v3507, %v3467
      %v3509 = vadd.f32 %v3508, %v3472
      %v3510 = vadd.f32 %v3509, %v3477
      %v3511 = vrot.slane %v3510, 4
      %v3512 = vadd.f32 %v3510, %v3511
      %v3513 = vrot.slane %v3512, 2
      %v3514 = vadd.f32 %v3512, %v3513
      %v3515 = vrot.slane %v3514, 1
      %v3516 = vadd.f32 %v3514, %v3515
      %v3517 = vadd.f32 %v2869, %v3516
      %v3518 = vmul.f32 %v3322, %v3322
      %v3519 = vmul.f32 %v3327, %v3327
      %v3520 = vmul.f32 %v3332, %v3332
      %v3521 = vmul.f32 %v3337, %v3337
      %v3522 = vmul.f32 %v3342, %v3342
      %v3523 = vmul.f32 %v3347, %v3347
      %v3524 = vmul.f32 %v3352, %v3352
      %v3525 = vmul.f32 %v3357, %v3357
      %v3526 = vmul.f32 %v3362, %v3362
      %v3527 = vmul.f32 %v3367, %v3367
      %v3528 = vmul.f32 %v3372, %v3372
      %v3529 = vmul.f32 %v3377, %v3377
      %v3530 = vmul.f32 %v3382, %v3382
      %v3531 = vmul.f32 %v3387, %v3387
      %v3532 = vmul.f32 %v3392, %v3392
      %v3533 = vmul.f32 %v3397, %v3397
      %v3534 = vmul.f32 %v3402, %v3402
      %v3535 = vmul.f32 %v3407, %v3407
      %v3536 = vmul.f32 %v3412, %v3412
      %v3537 = vmul.f32 %v3417, %v3417
      %v3538 = vmul.f32 %v3422, %v3422
      %v3539 = vmul.f32 %v3427, %v3427
      %v3540 = vmul.f32 %v3432, %v3432
      %v3541 = vmul.f32 %v3437, %v3437
      %v3542 = vmul.f32 %v3442, %v3442
      %v3543 = vmul.f32 %v3447, %v3447
      %v3544 = vmul.f32 %v3452, %v3452
      %v3545 = vmul.f32 %v3457, %v3457
      %v3546 = vmul.f32 %v3462, %v3462
      %v3547 = vmul.f32 %v3467, %v3467
      %v3548 = vmul.f32 %v3472, %v3472
      %v3549 = vmul.f32 %v3477, %v3477
      %v3550 = vadd.f32 %v3518, %v3519
      %v3551 = vadd.f32 %v3550, %v3520
      %v3552 = vadd.f32 %v3551, %v3521
      %v3553 = vadd.f32 %v3552, %v3522
      %v3554 = vadd.f32 %v3553, %v3523
      %v3555 = vadd.f32 %v3554, %v3524
      %v3556 = vadd.f32 %v3555, %v3525
      %v3557 = vadd.f32 %v3556, %v3526
      %v3558 = vadd.f32 %v3557, %v3527
      %v3559 = vadd.f32 %v3558, %v3528
      %v3560 = vadd.f32 %v3559, %v3529
      %v3561 = vadd.f32 %v3560, %v3530
      %v3562 = vadd.f32 %v3561, %v3531
      %v3563 = vadd.f32 %v3562, %v3532
      %v3564 = vadd.f32 %v3563, %v3533
      %v3565 = vadd.f32 %v3564, %v3534
      %v3566 = vadd.f32 %v3565, %v3535
      %v3567 = vadd.f32 %v3566, %v3536
      %v3568 = vadd.f32 %v3567, %v3537
      %v3569 = vadd.f32 %v3568, %v3538
      %v3570 = vadd.f32 %v3569, %v3539
      %v3571 = vadd.f32 %v3570, %v3540
      %v3572 = vadd.f32 %v3571, %v3541
      %v3573 = vadd.f32 %v3572, %v3542
      %v3574 = vadd.f32 %v3573, %v3543
      %v3575 = vadd.f32 %v3574, %v3544
      %v3576 = vadd.f32 %v3575, %v3545
      %v3577 = vadd.f32 %v3576, %v3546
      %v3578 = vadd.f32 %v3577, %v3547
      %v3579 = vadd.f32 %v3578, %v3548
      %v3580 = vadd.f32 %v3579, %v3549
      %v3581 = vrot.slane %v3580, 4
      %v3582 = vadd.f32 %v3580, %v3581
      %v3583 = vrot.slane %v3582, 2
      %v3584 = vadd.f32 %v3582, %v3583
      %v3585 = vrot.slane %v3584, 1
      %v3586 = vadd.f32 %v3584, %v3585
      %v3587 = vadd.f32 %v2939, %v3586
      %s3588 = scalar_lea.vmem %s177, 768
      %3589 = vst [vmem:[%s3588] sm:$0xff] %v3322
      %3590 = vst [vmem:[%s3588 + $0x8] sm:$0xff] %v3327
      %3591 = vst [vmem:[%s3588 + $0x10] sm:$0xff] %v3332
      %3592 = vst [vmem:[%s3588 + $0x18] sm:$0xff] %v3337
      %3593 = vst [vmem:[%s3588 + $0x20] sm:$0xff] %v3342
      %3594 = vst [vmem:[%s3588 + $0x28] sm:$0xff] %v3347
      %3595 = vst [vmem:[%s3588 + $0x30] sm:$0xff] %v3352
      %3596 = vst [vmem:[%s3588 + $0x38] sm:$0xff] %v3357
      %3597 = vst [vmem:[%s3588 + $0x40] sm:$0xff] %v3362
      %3598 = vst [vmem:[%s3588 + $0x48] sm:$0xff] %v3367
      %3599 = vst [vmem:[%s3588 + $0x50] sm:$0xff] %v3372
      %3600 = vst [vmem:[%s3588 + $0x58] sm:$0xff] %v3377
      %3601 = vst [vmem:[%s3588 + $0x60] sm:$0xff] %v3382
      %3602 = vst [vmem:[%s3588 + $0x68] sm:$0xff] %v3387
      %3603 = vst [vmem:[%s3588 + $0x70] sm:$0xff] %v3392
      %3604 = vst [vmem:[%s3588 + $0x78] sm:$0xff] %v3397
      %3605 = vst [vmem:[%s3588 + $0x80] sm:$0xff] %v3402
      %3606 = vst [vmem:[%s3588 + $0x88] sm:$0xff] %v3407
      %3607 = vst [vmem:[%s3588 + $0x90] sm:$0xff] %v3412
      %3608 = vst [vmem:[%s3588 + $0x98] sm:$0xff] %v3417
      %3609 = vst [vmem:[%s3588 + $0xa0] sm:$0xff] %v3422
      %3610 = vst [vmem:[%s3588 + $0xa8] sm:$0xff] %v3427
      %3611 = vst [vmem:[%s3588 + $0xb0] sm:$0xff] %v3432
      %3612 = vst [vmem:[%s3588 + $0xb8] sm:$0xff] %v3437
      %3613 = vst [vmem:[%s3588 + $0xc0] sm:$0xff] %v3442
      %3614 = vst [vmem:[%s3588 + $0xc8] sm:$0xff] %v3447
      %3615 = vst [vmem:[%s3588 + $0xd0] sm:$0xff] %v3452
      %3616 = vst [vmem:[%s3588 + $0xd8] sm:$0xff] %v3457
      %3617 = vst [vmem:[%s3588 + $0xe0] sm:$0xff] %v3462
      %3618 = vst [vmem:[%s3588 + $0xe8] sm:$0xff] %v3467
      %3619 = vst [vmem:[%s3588 + $0xf0] sm:$0xff] %v3472
      %3620 = vst [vmem:[%s3588 + $0xf8] sm:$0xff] %v3477
      %vm3621 = vcmask 1040384
      %v3622 = vsel %vm3621, %v3517, %v3587
      %3623 = vst [vmem:[%s181] sm:$0x3] %v3622
      %p3624 = scmp.lt.s32.totalorder %s15, 1
      %s3625 = scalar_select %p3624, %s15, 1
      %s3626 = smul.addr %s3625, 128
      %s3627 = smul.addr %s3626, 8
      %s3628 = scalar_lea.vmem %s2, %s3627
      %p3629 = scmp.lt.s32.totalorder %s15, 1
      %s3630 = scalar_select %p3629, %s15, 1
      %s3631 = smul.addr %s3630, 2
      %s3632 = scalar_lea.vmem %s3, %s3631
      // Predicated region
      $region29: #{_up_conv_forward.2} parent=27 // pred_check
        %p3633 = pneg %p80
      $region30: #{_up_conv_forward.2} parent=27 // pred_check_branch
        %3635 = sbr.rel (%p3633) target = $region32
      $region31: #{_up_conv_forward.2} parent=27 // pred_region
        _
      $region32: #{_up_conv_forward.2} parent=27 // pred_fallthru
        _
      // Predicated region
      $region33: #{_up_conv_forward.2} parent=27 // pred_check
        %p3636 = pneg %p106
      $region34: #{_up_conv_forward.2} parent=27 // pred_check_branch
        %3638 = sbr.rel (%p3636) target = $region36
      $region35: #{_up_conv_forward.2} parent=27 // pred_region
        _
      $region36: #{_up_conv_forward.2} parent=27 // pred_fallthru
        _
    $region28: #{_up_conv_forward.2} parent=5 // pred_fallthru
      _
    %p3639 = scmp.le.s32.totalorder 2, %s10
    // Predicated region
    $region37: #{_up_conv_forward.2} parent=5 // pred_check
      %p3640 = pneg %p3639
    $region38: #{_up_conv_forward.2} parent=5 // pred_check_branch
      %3642 = sbr.rel (%p3640) target = $region40
    $region39: #{_up_conv_forward.2} parent=5 // pred_region
      %s3643 = ssub.s32 %s10, 2
      // Predicated region
      $region41: #{_up_conv_forward.2} parent=39 // pred_check
        %p3644 = pneg %p86
      $region42: #{_up_conv_forward.2} parent=39 // pred_check_branch
        %3646 = sbr.rel (%p3644) target = $region44
      $region43: #{_up_conv_forward.2} parent=39 // pred_region
        %p3647 = scmp.lt.s32.totalorder %s16, 1
        %s3648 = scalar_select %p3647, %s16, 1
        %s3649 = smul.addr %s3648, 128
        %s3650 = smul.addr %s3649, 8
        %s3651 = scalar_lea.vmem %s2, %s3650
      $region44: #{_up_conv_forward.2} parent=39 // pred_fallthru
        _
      // Predicated region
      $region45: #{_up_conv_forward.2} parent=39 // pred_check
        %p3652 = pneg %p112
      $region46: #{_up_conv_forward.2} parent=39 // pred_check_branch
        %3654 = sbr.rel (%p3652) target = $region48
      $region47: #{_up_conv_forward.2} parent=39 // pred_region
        %p3655 = scmp.lt.s32.totalorder %s16, 1
        %s3656 = scalar_select %p3655, %s16, 1
        %s3657 = smul.addr %s3656, 2
        %s3658 = scalar_lea.vmem %s3, %s3657
      $region48: #{_up_conv_forward.2} parent=39 // pred_fallthru
        _
    $region40: #{_up_conv_forward.2} parent=5 // pred_fallthru
      _
  $region6: #{_up_conv_forward.2} parent=0 // loop_footer
    %s14 = sadd.s32 1, %s10
  $region7: #{_up_conv_forward.2} parent=0 // loop_footer_branch
    %9 = sbr.rel target = $region3
  $region8: #{_up_conv_forward.2} parent=0 // loop_exit
    _

</llo_original>
